<compile_context>
chip_gen: v5e
topology: v5e:2x2
jax: 0.10.0
libtpu: 0.0.40
codegen_flags: <defaults>
</compile_context>

<pallas_src>
import math
import functools

import jax
import jax.numpy as jnp
from jax.experimental import pallas as pl
from jax.experimental.pallas import tpu as pltpu

LN_EPS = 1e-5                  # PyTorch nn.LayerNorm default
NHEADS = 8                     # nn.TransformerDecoderLayer(nhead=8)
DFF = 2048                     # nn.TransformerDecoderLayer default dim_feedforward
MXU_DTYPE = jnp.bfloat16       # matmul operand dtype (f32 accumulation)
ACT_DTYPE = jnp.bfloat16       # inter-kernel activation carry dtype
# Scoped VMEM cap: plenty for these kernels.  v6e can go to ~96 MiB for large
# dense tiles; keep <=64 MiB so it is also valid on v7x (64 MiB physical/TC).
VMEM_LIMIT = 64 * 1024 * 1024


# ----------------------------- in-kernel helpers ---------------------------

def _layernorm(y, g, b):
    # biased variance, eps=1e-5 (PyTorch LayerNorm), f32 math
    mu = jnp.mean(y, axis=-1, keepdims=True)
    var = jnp.mean((y - mu) ** 2, axis=-1, keepdims=True)
    return (y - mu) * jax.lax.rsqrt(var + LN_EPS) * g + b


def _mha(q, k, v, wo, mask, nheads):
    """q:(Lq,E), k/v:(Lk,E) f32, wo:(E,E) bf16, mask:(Lq,Lk) additive f32 or None.
    Softmax scale is pre-folded into the Q projection.  Per-head scores/context
    use a static head loop (dh < 128); the out-projection is a single matmul
    over the concatenated (Lq, E) context (full-depth MXU contraction)."""
    Lq, E = q.shape
    dh = E // nheads
    # hoist the bf16 casts out of the head loop
    qb = q.astype(MXU_DTYPE)
    kb = k.astype(MXU_DTYPE)
    vb = v.astype(MXU_DTYPE)
    ctx = []
    for h in range(nheads):
        sl = slice(h * dh, (h + 1) * dh)
        s = jax.lax.dot_general(qb[:, sl], kb[:, sl], (((1,), (1,)), ((), ())),
                                preferred_element_type=jnp.float32)   # (Lq, Lk)
        if mask is not None:
            s = s + mask
        s = s - jnp.max(s, axis=-1, keepdims=True)
        p = jnp.exp(s)
        p = p * pl.reciprocal(jnp.sum(p, axis=-1, keepdims=True), approx=True)
        ctx.append(jnp.dot(p.astype(MXU_DTYPE), vb[:, sl],
                           preferred_element_type=jnp.float32))        # (Lq, dh)
    ctx = jnp.concatenate(ctx, axis=-1).astype(MXU_DTYPE)              # (Lq, E)
    # single out-projection (no nheads tiny dh-deep matmuls + accumulates)
    return jnp.dot(ctx, wo, preferred_element_type=jnp.float32)


# ----------------------------- Pallas kernels ------------------------------

def _fuse_vis_pos_kernel(emb_ref, vis_ref, wt_ref, wv_ref, b_ref, pos_ref,
                         o_ref, *, scale):
    # per batch: relu(emb @ Wt + vis @ Wv + b) * sqrt(E) + pos_encoding
    t = emb_ref[0].astype(MXU_DTYPE)                    # (L, E)
    v = vis_ref[0].astype(MXU_DTYPE)                    # (1, Dv)  (vis shared over L)
    h = jnp.dot(t, wt_ref[...], preferred_element_type=jnp.float32)
    h = h + jnp.dot(v, wv_ref[...], preferred_element_type=jnp.float32)
    h = h + b_ref[...]
    o_ref[0] = (jnp.maximum(h, 0.0) * scale + pos_ref[...]).astype(o_ref.dtype)


def _decoder_layer_kernel(x_ref, mem_ref, causal_ref, pad_ref,
                          sa_wqkv_ref, sa_bqkv_ref, sa_wo_ref, sa_bo_ref,
                          ln1_g_ref, ln1_b_ref,
                          ca_wq_ref, ca_bq_ref, ca_wkv_ref, ca_bkv_ref,
                          ca_wo_ref, ca_bo_ref, ln2_g_ref, ln2_b_ref,
                          ff_w1_ref, ff_b1_ref, ff_w2_ref, ff_b2_ref,
                          ln3_g_ref, ln3_b_ref,
                          o_ref, *, nheads):
    """One full post-norm nn.TransformerDecoderLayer, fused per batch element."""
    x = x_ref[0].astype(jnp.float32)                    # (L, E)
    E = x.shape[-1]

    # ----- self-attention + residual + LN1 (softmax scale folded into Wq) -----
    qkv = jnp.dot(x.astype(MXU_DTYPE), sa_wqkv_ref[...],
                  preferred_element_type=jnp.float32) + sa_bqkv_ref[...]   # (L, 3E)
    # combined additive mask built in-kernel: causal (L,L) + key-pad row (1,L)
    mask = causal_ref[...] + pad_ref[0]
    sa = _mha(qkv[:, :E], qkv[:, E:2 * E], qkv[:, 2 * E:],
              sa_wo_ref[...], mask, nheads) + sa_bo_ref[...]
    x = _layernorm(x + sa, ln1_g_ref[...], ln1_b_ref[...])

    # ----- cross-attention over audio memory + residual + LN2 -----
    m = mem_ref[0]                                      # (Lm, E) bf16
    q = jnp.dot(x.astype(MXU_DTYPE), ca_wq_ref[...],
                preferred_element_type=jnp.float32) + ca_bq_ref[...]       # (L, E)
    kv = jnp.dot(m, ca_wkv_ref[...],
                 preferred_element_type=jnp.float32) + ca_bkv_ref[...]     # (Lm, 2E)
    ca = _mha(q, kv[:, :E], kv[:, E:], ca_wo_ref[...], None,
              nheads) + ca_bo_ref[...]
    x = _layernorm(x + ca, ln2_g_ref[...], ln2_b_ref[...])

    # ----- feed-forward + residual + LN3 -----
    h = jnp.dot(x.astype(MXU_DTYPE), ff_w1_ref[...],
                preferred_element_type=jnp.float32) + ff_b1_ref[...]
    h = jnp.maximum(h, 0.0)
    f = jnp.dot(h.astype(MXU_DTYPE), ff_w2_ref[...],
                preferred_element_type=jnp.float32) + ff_b2_ref[...]
    x = _layernorm(x + f, ln3_g_ref[...], ln3_b_ref[...])

    o_ref[0] = x.astype(o_ref.dtype)


def _linear_kernel(x_ref, w_ref, b_ref, o_ref):
    o_ref[...] = (jnp.dot(x_ref[...].astype(MXU_DTYPE), w_ref[...],
                          preferred_element_type=jnp.float32) + b_ref[...])


# ----------------------------- wrappers -------------------------------------

def fuse_vis_pos(emb, vis, wt, wv, b, pos, scale):
    B, L, E = emb.shape
    Dv = vis.shape[-1]
    return pl.pallas_call(
        functools.partial(_fuse_vis_pos_kernel, scale=scale),
        grid=(B,),
        in_specs=[pl.BlockSpec((1, L, E), lambda i: (i, 0, 0)),
                  pl.BlockSpec((1, 1, Dv), lambda i: (i, 0, 0)),
                  pl.BlockSpec((E, E), lambda i: (0, 0)),       # resident weights
                  pl.BlockSpec((Dv, E), lambda i: (0, 0)),
                  pl.BlockSpec((1, E), lambda i: (0, 0)),
                  pl.BlockSpec((L, E), lambda i: (0, 0))],
        out_specs=pl.BlockSpec((1, L, E), lambda i: (i, 0, 0)),
        out_shape=jax.ShapeDtypeStruct((B, L, E), ACT_DTYPE),   # bf16 carry
        compiler_params=pltpu.CompilerParams(
            dimension_semantics=("parallel",), vmem_limit_bytes=VMEM_LIMIT),
    )(emb, vis, wt, wv, b.reshape(1, -1), pos)


def decoder_layer(x, mem, causal, pad_add, p, nheads=NHEADS):
    """One fused TransformerDecoderLayer.  grid=(B,): at these shapes the whole
    (L,E)/(Lm,E) slabs fit VMEM trivially; for long sequences, tile queries
    (2-D grid) or fall back to per-sub-block kernels to bound VMEM."""
    B, L, E = x.shape
    Lm = mem.shape[1]
    dff = p["ff_w1"].shape[1]
    pad_idx = (lambda i: (0, 0, 0)) if pad_add.shape[0] == 1 else (lambda i: (i, 0, 0))
    c2 = lambda i: (0, 0)                               # resident (shared) operands
    return pl.pallas_call(
        functools.partial(_decoder_layer_kernel, nheads=nheads),
        grid=(B,),
        in_specs=[pl.BlockSpec((1, L, E), lambda i: (i, 0, 0)),     # x (bf16)
                  pl.BlockSpec((1, Lm, E), lambda i: (i, 0, 0)),    # memory (bf16)
                  pl.BlockSpec((L, L), c2),                         # causal mask (shared)
                  pl.BlockSpec((1, 1, L), pad_idx),                 # key-pad additive row
                  pl.BlockSpec((E, 3 * E), c2),                     # sa in_proj (packed, Q pre-scaled)
                  pl.BlockSpec((1, 3 * E), c2),
                  pl.BlockSpec((E, E), c2),                         # sa out_proj
                  pl.BlockSpec((1, E), c2),
                  pl.BlockSpec((1, E), c2),                         # ln1 gamma/beta
                  pl.BlockSpec((1, E), c2),
                  pl.BlockSpec((E, E), c2),                         # ca Wq (pre-scaled)
                  pl.BlockSpec((1, E), c2),
                  pl.BlockSpec((E, 2 * E), c2),                     # ca packed K/V proj
                  pl.BlockSpec((1, 2 * E), c2),
                  pl.BlockSpec((E, E), c2),                         # ca out_proj
                  pl.BlockSpec((1, E), c2),
                  pl.BlockSpec((1, E), c2),                         # ln2 gamma/beta
                  pl.BlockSpec((1, E), c2),
                  pl.BlockSpec((E, dff), c2),                       # ffn lin1
                  pl.BlockSpec((1, dff), c2),
                  pl.BlockSpec((dff, E), c2),                       # ffn lin2
                  pl.BlockSpec((1, E), c2),
                  pl.BlockSpec((1, E), c2),                         # ln3 gamma/beta
                  pl.BlockSpec((1, E), c2)],
        out_specs=pl.BlockSpec((1, L, E), lambda i: (i, 0, 0)),
        out_shape=jax.ShapeDtypeStruct((B, L, E), ACT_DTYPE),       # bf16 carry
        compiler_params=pltpu.CompilerParams(
            dimension_semantics=("parallel",), vmem_limit_bytes=VMEM_LIMIT),
    )(x, mem, causal, pad_add,
      p["sa_wqkv"], p["sa_bqkv"].reshape(1, -1),
      p["sa_wo"], p["sa_bo"].reshape(1, -1),
      p["ln1_g"].reshape(1, -1), p["ln1_b"].reshape(1, -1),
      p["ca_wq"], p["ca_bq"].reshape(1, -1),
      p["ca_wkv"], p["ca_bkv"].reshape(1, -1),
      p["ca_wo"], p["ca_bo"].reshape(1, -1),
      p["ln2_g"].reshape(1, -1), p["ln2_b"].reshape(1, -1),
      p["ff_w1"], p["ff_b1"].reshape(1, -1),
      p["ff_w2"], p["ff_b2"].reshape(1, -1),
      p["ln3_g"].reshape(1, -1), p["ln3_b"].reshape(1, -1))


def _round_up(n, m):
    return ((n + m - 1) // m) * m


def _pad_rows_and_tile(M):
    # Keep (8,128)-aligned, unmasked stores and double-buffered pipelining:
    # pad irregular M up instead of falling back to one giant block.
    if M >= 128:
        Mp = _round_up(M, 128)
        for t in (512, 256, 128):
            if Mp % t == 0:
                return Mp, t
        return Mp, 128
    Mp = _round_up(M, 8)
    return Mp, Mp


def linear_tiled(x2, w, b):
    M, K = x2.shape
    N = w.shape[1]
    Mp, tm = _pad_rows_and_tile(M)
    if Mp != M:
        x2 = jnp.pad(x2, ((0, Mp - M), (0, 0)))
    out = pl.pallas_call(
        _linear_kernel,
        grid=(Mp // tm,),
        in_specs=[pl.BlockSpec((tm, K), lambda i: (i, 0)),
                  pl.BlockSpec((K, N), lambda i: (0, 0)),       # resident weights
                  pl.BlockSpec((1, N), lambda i: (0, 0))],
        out_specs=pl.BlockSpec((tm, N), lambda i: (i, 0)),
        out_shape=jax.ShapeDtypeStruct((Mp, N), jnp.float32),
        compiler_params=pltpu.CompilerParams(
            dimension_semantics=("parallel",), vmem_limit_bytes=VMEM_LIMIT),
    )(x2, w, b.reshape(1, -1))
    return out[:M] if Mp != M else out


# ----------------------------- model ---------------------------------------

def make_pos_encoding(max_len, dim):
    pos = jnp.arange(max_len, dtype=jnp.float32)[:, None]
    div = jnp.exp(jnp.arange(0, dim, 2, dtype=jnp.float32)
                  * (-math.log(10000.0) / dim))
    pe = jnp.zeros((max_len, dim), jnp.float32)
    pe = pe.at[:, 0::2].set(jnp.sin(pos * div))
    pe = pe.at[:, 1::2].set(jnp.cos(pos * div))
    return pe                                           # (max_len, dim)


def get_tgt_mask(size):
    """Lower-triangular additive mask: 0 on/below diag, -inf above."""
    tril = jnp.tril(jnp.ones((size, size), jnp.bool_))
    return jnp.where(tril, 0.0, -jnp.inf).astype(jnp.float32)


def create_pad_mask(tokens, pad_token):
    return tokens == pad_token                          # (B, L) bool


def init_params(key, d_audio_H, d_vision, d_out, depth, max_target_len):
    """Weights stored pre-transposed ("as used": x @ W + b), matmul weights in
    bf16; biases / LayerNorm params in f32.  The 1/sqrt(dh) attention scale is
    folded into the Q projections.  When porting real PyTorch weights,
    transpose once here (W_pt.T), split fusion / in_proj weights and apply the
    same Q-column scaling."""
    E = d_audio_H
    dh = E // NHEADS
    qscale = 1.0 / math.sqrt(dh)

    def nrm(k, shape):
        return jax.random.normal(k, shape, jnp.float32) * 0.02

    keys = iter(jax.random.split(key, 8 + depth * 16))

    params = {
        "emb": nrm(next(keys), (d_out, E)),                                 # nn.Embedding
        "fusion_wt": nrm(next(keys), (E, E)).astype(MXU_DTYPE),             # fusion.weight[:, :E].T
        "fusion_wv": nrm(next(keys), (d_vision, E)).astype(MXU_DTYPE),      # fusion.weight[:, E:].T
        "fusion_b": nrm(next(keys), (E,)),
        "pos_enc": make_pos_encoding(max_target_len, E),
        "out_w": nrm(next(keys), (E, d_out)).astype(MXU_DTYPE),             # out.weight.T
        "out_b": nrm(next(keys), (d_out,)),
        "layers": [],
    }
    for _ in range(depth):
        # self-attention: in_proj packed as (E, 3E) = in_proj_weight.T,
        # Q columns/bias pre-scaled by 1/sqrt(dh)
        sa_wqkv = nrm(next(keys), (E, 3 * E)).at[:, :E].multiply(qscale)
        sa_bqkv = nrm(next(keys), (3 * E,)).at[:E].multiply(qscale)
        layer = {
            "sa_wqkv": sa_wqkv.astype(MXU_DTYPE),
            "sa_bqkv": sa_bqkv,
            "sa_wo": nrm(next(keys), (E, E)).astype(MXU_DTYPE),
            "sa_bo": nrm(next(keys), (E,)),
            # cross-attention: Q proj (E,E) pre-scaled, packed K/V proj (E, 2E)
            "ca_wq": (nrm(next(keys), (E, E)) * qscale).astype(MXU_DTYPE),
            "ca_bq": nrm(next(keys), (E,)) * qscale,
            "ca_wkv": nrm(next(keys), (E, 2 * E)).astype(MXU_DTYPE),
            "ca_bkv": nrm(next(keys), (2 * E,)),
            "ca_wo": nrm(next(keys), (E, E)).astype(MXU_DTYPE),
            "ca_bo": nrm(next(keys), (E,)),
            # feedforward (linear1.weight.T, linear2.weight.T)
            "ff_w1": nrm(next(keys), (E, DFF)).astype(MXU_DTYPE),
            "ff_b1": nrm(next(keys), (DFF,)),
            "ff_w2": nrm(next(keys), (DFF, E)).astype(MXU_DTYPE),
            "ff_b2": nrm(next(keys), (E,)),
            # layer norms
            "ln1_g": jnp.ones((E,), jnp.float32), "ln1_b": jnp.zeros((E,), jnp.float32),
            "ln2_g": jnp.ones((E,), jnp.float32), "ln2_b": jnp.zeros((E,), jnp.float32),
            "ln3_g": jnp.ones((E,), jnp.float32), "ln3_b": jnp.zeros((E,), jnp.float32),
        }
        params["layers"].append(layer)
    return params


def multimodal_decoder_forward(params, mem, vis, tgt_tokens,
                               tgt_mask=None, tgt_pad_mask=None):
    """mem: (B, d_audio_L, E) f32; vis: (B, 1, d_vision) f32;
    tgt_tokens: (B, L) int32.  Returns logits (B, L, d_out) f32."""
    B, L = tgt_tokens.shape
    E = params["emb"].shape[1]
    d_out = params["out_w"].shape[1]

    # embedding lookup (gather) stays in XLA; fusion(cat[emb,vis]) + relu
    # + *sqrt(E) + positional add is one fused kernel (dropout p=0 is identity)
    emb = jnp.take(params["emb"], tgt_tokens, axis=0)             # (B, L, E)
    pos = params["pos_enc"][:L]                                   # (L, E)
    x = fuse_vis_pos(emb, vis, params["fusion_wt"], params["fusion_wv"],
                     params["fusion_b"], pos, math.sqrt(E))       # bf16 carry

    # shared causal mask (L,L) + per-batch additive key-pad row (B,1,L);
    # the dense combined mask is built in-kernel (never materialized in HBM).
    causal = (tgt_mask.astype(jnp.float32) if tgt_mask is not None
              else jnp.zeros((L, L), jnp.float32))
    if tgt_pad_mask is not None:
        # NOTE: fully-padded query rows produce NaN (matches PyTorch behaviour).
        pad_add = jnp.where(tgt_pad_mask, -jnp.inf, 0.0).astype(jnp.float32)[:, None, :]
    else:
        pad_add = jnp.zeros((1, 1, L), jnp.float32)

    mem_b = mem.astype(ACT_DTYPE)       # cast once; re-read per layer in bf16

    # one fused kernel per layer: self-attn+LN1 -> cross-attn+LN2 -> FFN+LN3
    for layer in params["layers"]:
        x = decoder_layer(x, mem_b, causal, pad_add, layer)

    # TODO(synk): memory_key_padding_mask path of nn.TransformerDecoder not implemented.
    logits = linear_tiled(x.reshape(B * L, E), params["out_w"], params["out_b"])
    return logits.reshape(B, L, d_out)


# ----------------------------- main -----------------------------------------

if __name__ == "__main__":
    # module hyperparameters
    d_audio = (12, 32)        # (d_audio_L, d_audio_H)
    d_vision = 16
    d_out = 20                # vocab size
    depth = 2
    max_target_len = 16

    B, L_tgt = 2, 8
    d_audio_L, d_audio_H = d_audio

    key = jax.random.PRNGKey(0)
    k_params, k_mem, k_vis, k_tgt = jax.random.split(key, 4)

    params = init_params(k_params, d_audio_H, d_vision, d_out, depth,
                         max_target_len)

    mem = jax.random.normal(k_mem, (B, d_audio_L, d_audio_H), jnp.float32)
    vis = jax.random.normal(k_vis, (B, 1, d_vision), jnp.float32)
    tgt = jax.random.randint(k_tgt, (B, L_tgt), 0, d_out, jnp.int32)
    tgt_mask = get_tgt_mask(L_tgt)

    forward = jax.jit(multimodal_decoder_forward)
    logits = forward(params, mem, vis, tgt, tgt_mask=tgt_mask, tgt_pad_mask=None)
    logits = jax.block_until_ready(logits)

    assert logits.shape == (B, L_tgt, d_out)
    assert bool(jnp.all(jnp.isfinite(logits)))
    print("KERNEL_OK")
</pallas_src>

<mosaic_0001>
module attributes {stable_mosaic.version = 11 : i64} {
  func.func @_fuse_vis_pos_kernel(%arg0: i32, %arg1: memref<1x8x32xf32, #tpu.memory_space<vmem>>, %arg2: memref<1x1x16xf32, #tpu.memory_space<vmem>>, %arg3: memref<32x32xbf16, #tpu.memory_space<vmem>>, %arg4: memref<16x32xbf16, #tpu.memory_space<vmem>>, %arg5: memref<1x32xf32, #tpu.memory_space<vmem>>, %arg6: memref<8x32xf32, #tpu.memory_space<vmem>>, %arg7: memref<1x8x32xbf16, #tpu.memory_space<vmem>>) attributes {dimension_semantics = [#tpu.dimension_semantics<parallel>], iteration_bounds = array<i64: 2>, scalar_prefetch = 0 : i64, scratch_operands = 0 : i64, tpu.core_type = #tpu.core_type<tc>, window_params = [{transform_indices = @transform_0, window_bounds = array<i64: 1, 8, 32>}, {transform_indices = @transform_1, window_bounds = array<i64: 1, 1, 16>}, {pipeline_mode = #tpu.pipeline_mode<synchronous>, transform_indices = @transform_2, window_bounds = array<i64: 32, 32>}, {pipeline_mode = #tpu.pipeline_mode<synchronous>, transform_indices = @transform_3, window_bounds = array<i64: 16, 32>}, {pipeline_mode = #tpu.pipeline_mode<synchronous>, transform_indices = @transform_4, window_bounds = array<i64: 1, 32>}, {pipeline_mode = #tpu.pipeline_mode<synchronous>, transform_indices = @transform_5, window_bounds = array<i64: 8, 32>}, {transform_indices = @transform_6, window_bounds = array<i64: 1, 8, 32>}]} {
    %c0 = arith.constant 0 : index
    %c0_0 = arith.constant 0 : index
    %c0_1 = arith.constant 0 : index
    %0 = vector.load %arg1[%c0, %c0_0, %c0_1] : memref<1x8x32xf32, #tpu.memory_space<vmem>>, vector<1x8x32xf32>
    %1 = vector.shape_cast %0 : vector<1x8x32xf32> to vector<8x32xf32>
    %2 = arith.truncf %1 : vector<8x32xf32> to vector<8x32xbf16>
    %c0_2 = arith.constant 0 : index
    %c0_3 = arith.constant 0 : index
    %c0_4 = arith.constant 0 : index
    %3 = vector.load %arg2[%c0_2, %c0_3, %c0_4] : memref<1x1x16xf32, #tpu.memory_space<vmem>>, vector<1x1x16xf32>
    %4 = vector.shape_cast %3 : vector<1x1x16xf32> to vector<1x16xf32>
    %5 = arith.truncf %4 : vector<1x16xf32> to vector<1x16xbf16>
    %c0_5 = arith.constant 0 : index
    %c0_6 = arith.constant 0 : index
    %6 = vector.load %arg3[%c0_5, %c0_6] : memref<32x32xbf16, #tpu.memory_space<vmem>>, vector<32x32xbf16>
    %cst = arith.constant dense<0.000000e+00> : vector<8x32xf32>
    %7 = tpu.matmul %2, %6, %cst {dimension_numbers = #tpu.dot_dimension_numbers<[1], [0], [0], [1], [0, 0, 1, 1], [], []>} : vector<8x32xbf16>, vector<32x32xbf16>, vector<8x32xf32> -> vector<8x32xf32>
    %c0_7 = arith.constant 0 : index
    %c0_8 = arith.constant 0 : index
    %8 = vector.load %arg4[%c0_7, %c0_8] : memref<16x32xbf16, #tpu.memory_space<vmem>>, vector<16x32xbf16>
    %cst_9 = arith.constant dense<0.000000e+00> : vector<1x32xf32>
    %9 = tpu.matmul %5, %8, %cst_9 {dimension_numbers = #tpu.dot_dimension_numbers<[1], [0], [0], [1], [0, 0, 1, 1], [], []>} : vector<1x16xbf16>, vector<16x32xbf16>, vector<1x32xf32> -> vector<1x32xf32>
    %10 = vector.broadcast %9 : vector<1x32xf32> to vector<8x32xf32>
    %11 = arith.addf %7, %10 : vector<8x32xf32>
    %c0_10 = arith.constant 0 : index
    %c0_11 = arith.constant 0 : index
    %12 = vector.load %arg5[%c0_10, %c0_11] : memref<1x32xf32, #tpu.memory_space<vmem>>, vector<1x32xf32>
    %13 = vector.broadcast %12 : vector<1x32xf32> to vector<8x32xf32>
    %14 = arith.addf %11, %13 : vector<8x32xf32>
    %cst_12 = arith.constant 0.000000e+00 : f32
    %15 = vector.broadcast %cst_12 : f32 to vector<8x32xf32>
    %16 = arith.maximumf %14, %15 : vector<8x32xf32>
    %cst_13 = arith.constant 5.65685415 : f32
    %17 = vector.broadcast %cst_13 : f32 to vector<8x32xf32>
    %18 = arith.mulf %16, %17 : vector<8x32xf32>
    %c0_14 = arith.constant 0 : index
    %c0_15 = arith.constant 0 : index
    %19 = vector.load %arg6[%c0_14, %c0_15] : memref<8x32xf32, #tpu.memory_space<vmem>>, vector<8x32xf32>
    %20 = arith.addf %18, %19 : vector<8x32xf32>
    %21 = arith.truncf %20 : vector<8x32xf32> to vector<8x32xbf16>
    %c0_16 = arith.constant 0 : index
    %c0_17 = arith.constant 0 : index
    %c0_18 = arith.constant 0 : index
    %22 = vector.load %arg7[%c0_16, %c0_17, %c0_18] : memref<1x8x32xbf16, #tpu.memory_space<vmem>>, vector<1x8x32xbf16>
    %23 = vector.shape_cast %22 : vector<1x8x32xbf16> to vector<8x32xbf16>
    %24 = vector.shape_cast %21 : vector<8x32xbf16> to vector<1x8x32xbf16>
    tpu.vector_store %arg7[%c0_16, %c0_17, %c0_18], %24 {strides = array<i32>} : memref<1x8x32xbf16, #tpu.memory_space<vmem>>, vector<1x8x32xbf16>,
    return
  }
  func.func @transform_0(%arg0: i32) -> (i32, i32, i32) {
    %c0_i32 = arith.constant 0 : i32
    %c0_i32_0 = arith.constant 0 : i32
    %c0_i32_1 = arith.constant 0 : i32
    return %arg0, %c0_i32, %c0_i32_0 : i32, i32, i32
  }
  func.func @transform_1(%arg0: i32) -> (i32, i32, i32) {
    %c0_i32 = arith.constant 0 : i32
    %c0_i32_0 = arith.constant 0 : i32
    %c0_i32_1 = arith.constant 0 : i32
    return %arg0, %c0_i32, %c0_i32_0 : i32, i32, i32
  }
  func.func @transform_2(%arg0: i32) -> (i32, i32) {
    %c0_i32 = arith.constant 0 : i32
    %c0_i32_0 = arith.constant 0 : i32
    %c0_i32_1 = arith.constant 0 : i32
    return %c0_i32, %c0_i32_0 : i32, i32
  }
  func.func @transform_3(%arg0: i32) -> (i32, i32) {
    %c0_i32 = arith.constant 0 : i32
    %c0_i32_0 = arith.constant 0 : i32
    %c0_i32_1 = arith.constant 0 : i32
    return %c0_i32, %c0_i32_0 : i32, i32
  }
  func.func @transform_4(%arg0: i32) -> (i32, i32) {
    %c0_i32 = arith.constant 0 : i32
    %c0_i32_0 = arith.constant 0 : i32
    %c0_i32_1 = arith.constant 0 : i32
    return %c0_i32, %c0_i32_0 : i32, i32
  }
  func.func @transform_5(%arg0: i32) -> (i32, i32) {
    %c0_i32 = arith.constant 0 : i32
    %c0_i32_0 = arith.constant 0 : i32
    %c0_i32_1 = arith.constant 0 : i32
    return %c0_i32, %c0_i32_0 : i32, i32
  }
  func.func @transform_6(%arg0: i32) -> (i32, i32, i32) {
    %c0_i32 = arith.constant 0 : i32
    %c0_i32_0 = arith.constant 0 : i32
    %c0_i32_1 = arith.constant 0 : i32
    return %arg0, %c0_i32, %c0_i32_0 : i32, i32, i32
  }
}

module attributes {stable_mosaic.version = 11 : i64} {
  func.func @_linear_kernel(%arg0: i32, %arg1: memref<16x32xbf16, #tpu.memory_space<vmem>>, %arg2: memref<32x20xbf16, #tpu.memory_space<vmem>>, %arg3: memref<1x20xf32, #tpu.memory_space<vmem>>, %arg4: memref<16x20xf32, #tpu.memory_space<vmem>>) attributes {dimension_semantics = [#tpu.dimension_semantics<parallel>], iteration_bounds = array<i64: 1>, scalar_prefetch = 0 : i64, scratch_operands = 0 : i64, tpu.core_type = #tpu.core_type<tc>, window_params = [{transform_indices = @transform_0, window_bounds = array<i64: 16, 32>}, {pipeline_mode = #tpu.pipeline_mode<synchronous>, transform_indices = @transform_1, window_bounds = array<i64: 32, 20>}, {pipeline_mode = #tpu.pipeline_mode<synchronous>, transform_indices = @transform_2, window_bounds = array<i64: 1, 20>}, {transform_indices = @transform_3, window_bounds = array<i64: 16, 20>}]} {
    %c0 = arith.constant 0 : index
    %c0_0 = arith.constant 0 : index
    %0 = vector.load %arg1[%c0, %c0_0] : memref<16x32xbf16, #tpu.memory_space<vmem>>, vector<16x32xbf16>
    %c0_1 = arith.constant 0 : index
    %c0_2 = arith.constant 0 : index
    %1 = vector.load %arg2[%c0_1, %c0_2] : memref<32x20xbf16, #tpu.memory_space<vmem>>, vector<32x20xbf16>
    %cst = arith.constant dense<0.000000e+00> : vector<16x20xf32>
    %2 = tpu.matmul %0, %1, %cst {dimension_numbers = #tpu.dot_dimension_numbers<[1], [0], [0], [1], [0, 0, 1, 1], [], []>} : vector<16x32xbf16>, vector<32x20xbf16>, vector<16x20xf32> -> vector<16x20xf32>
    %c0_3 = arith.constant 0 : index
    %c0_4 = arith.constant 0 : index
    %3 = vector.load %arg3[%c0_3, %c0_4] : memref<1x20xf32, #tpu.memory_space<vmem>>, vector<1x20xf32>
    %4 = vector.broadcast %3 : vector<1x20xf32> to vector<16x20xf32>
    %5 = arith.addf %2, %4 : vector<16x20xf32>
    %c0_5 = arith.constant 0 : index
    %c0_6 = arith.constant 0 : index
    %6 = vector.load %arg4[%c0_5, %c0_6] : memref<16x20xf32, #tpu.memory_space<vmem>>, vector<16x20xf32>
    tpu.vector_store %arg4[%c0_5, %c0_6], %5 {strides = array<i32>} : memref<16x20xf32, #tpu.memory_space<vmem>>, vector<16x20xf32>,
    return
  }
  func.func @transform_0(%arg0: i32) -> (i32, i32) {
    %c0_i32 = arith.constant 0 : i32
    %c0_i32_0 = arith.constant 0 : i32
    return %arg0, %c0_i32 : i32, i32
  }
  func.func @transform_1(%arg0: i32) -> (i32, i32) {
    %c0_i32 = arith.constant 0 : i32
    %c0_i32_0 = arith.constant 0 : i32
    %c0_i32_1 = arith.constant 0 : i32
    return %c0_i32, %c0_i32_0 : i32, i32
  }
  func.func @transform_2(%arg0: i32) -> (i32, i32) {
    %c0_i32 = arith.constant 0 : i32
    %c0_i32_0 = arith.constant 0 : i32
    %c0_i32_1 = arith.constant 0 : i32
    return %c0_i32, %c0_i32_0 : i32, i32
  }
  func.func @transform_3(%arg0: i32) -> (i32, i32) {
    %c0_i32 = arith.constant 0 : i32
    %c0_i32_0 = arith.constant 0 : i32
    return %arg0, %c0_i32 : i32, i32
  }
}

module attributes {stable_mosaic.version = 11 : i64} {
  func.func @_decoder_layer_kernel(%arg0: i32, %arg1: memref<1x8x32xbf16, #tpu.memory_space<vmem>>, %arg2: memref<1x12x32xbf16, #tpu.memory_space<vmem>>, %arg3: memref<8x8xf32, #tpu.memory_space<vmem>>, %arg4: memref<1x1x8xf32, #tpu.memory_space<vmem>>, %arg5: memref<32x96xbf16, #tpu.memory_space<vmem>>, %arg6: memref<1x96xf32, #tpu.memory_space<vmem>>, %arg7: memref<32x32xbf16, #tpu.memory_space<vmem>>, %arg8: memref<1x32xf32, #tpu.memory_space<vmem>>, %arg9: memref<1x32xf32, #tpu.memory_space<vmem>>, %arg10: memref<1x32xf32, #tpu.memory_space<vmem>>, %arg11: memref<32x32xbf16, #tpu.memory_space<vmem>>, %arg12: memref<1x32xf32, #tpu.memory_space<vmem>>, %arg13: memref<32x64xbf16, #tpu.memory_space<vmem>>, %arg14: memref<1x64xf32, #tpu.memory_space<vmem>>, %arg15: memref<32x32xbf16, #tpu.memory_space<vmem>>, %arg16: memref<1x32xf32, #tpu.memory_space<vmem>>, %arg17: memref<1x32xf32, #tpu.memory_space<vmem>>, %arg18: memref<1x32xf32, #tpu.memory_space<vmem>>, %arg19: memref<32x2048xbf16, #tpu.memory_space<vmem>>, %arg20: memref<1x2048xf32, #tpu.memory_space<vmem>>, %arg21: memref<2048x32xbf16, #tpu.memory_space<vmem>>, %arg22: memref<1x32xf32, #tpu.memory_space<vmem>>, %arg23: memref<1x32xf32, #tpu.memory_space<vmem>>, %arg24: memref<1x32xf32, #tpu.memory_space<vmem>>, %arg25: memref<1x8x32xbf16, #tpu.memory_space<vmem>>) attributes {dimension_semantics = [#tpu.dimension_semantics<parallel>], iteration_bounds = array<i64: 2>, scalar_prefetch = 0 : i64, scratch_operands = 0 : i64, tpu.core_type = #tpu.core_type<tc>, window_params = [{transform_indices = @transform_0, window_bounds = array<i64: 1, 8, 32>}, {transform_indices = @transform_1, window_bounds = array<i64: 1, 12, 32>}, {pipeline_mode = #tpu.pipeline_mode<synchronous>, transform_indices = @transform_2, window_bounds = array<i64: 8, 8>}, {pipeline_mode = #tpu.pipeline_mode<synchronous>, transform_indices = @transform_3, window_bounds = array<i64: 1, 1, 8>}, {pipeline_mode = #tpu.pipeline_mode<synchronous>, transform_indices = @transform_4, window_bounds = array<i64: 32, 96>}, {pipeline_mode = #tpu.pipeline_mode<synchronous>, transform_indices = @transform_5, window_bounds = array<i64: 1, 96>}, {pipeline_mode = #tpu.pipeline_mode<synchronous>, transform_indices = @transform_6, window_bounds = array<i64: 32, 32>}, {pipeline_mode = #tpu.pipeline_mode<synchronous>, transform_indices = @transform_7, window_bounds = array<i64: 1, 32>}, {pipeline_mode = #tpu.pipeline_mode<synchronous>, transform_indices = @transform_8, window_bounds = array<i64: 1, 32>}, {pipeline_mode = #tpu.pipeline_mode<synchronous>, transform_indices = @transform_9, window_bounds = array<i64: 1, 32>}, {pipeline_mode = #tpu.pipeline_mode<synchronous>, transform_indices = @transform_10, window_bounds = array<i64: 32, 32>}, {pipeline_mode = #tpu.pipeline_mode<synchronous>, transform_indices = @transform_11, window_bounds = array<i64: 1, 32>}, {pipeline_mode = #tpu.pipeline_mode<synchronous>, transform_indices = @transform_12, window_bounds = array<i64: 32, 64>}, {pipeline_mode = #tpu.pipeline_mode<synchronous>, transform_indices = @transform_13, window_bounds = array<i64: 1, 64>}, {pipeline_mode = #tpu.pipeline_mode<synchronous>, transform_indices = @transform_14, window_bounds = array<i64: 32, 32>}, {pipeline_mode = #tpu.pipeline_mode<synchronous>, transform_indices = @transform_15, window_bounds = array<i64: 1, 32>}, {pipeline_mode = #tpu.pipeline_mode<synchronous>, transform_indices = @transform_16, window_bounds = array<i64: 1, 32>}, {pipeline_mode = #tpu.pipeline_mode<synchronous>, transform_indices = @transform_17, window_bounds = array<i64: 1, 32>}, {pipeline_mode = #tpu.pipeline_mode<synchronous>, transform_indices = @transform_18, window_bounds = array<i64: 32, 2048>}, {pipeline_mode = #tpu.pipeline_mode<synchronous>, transform_indices = @transform_19, window_bounds = array<i64: 1, 2048>}, {pipeline_mode = #tpu.pipeline_mode<synchronous>, transform_indices = @transform_20, window_bounds = array<i64: 2048, 32>}, {pipeline_mode = #tpu.pipeline_mode<synchronous>, transform_indices = @transform_21, window_bounds = array<i64: 1, 32>}, {pipeline_mode = #tpu.pipeline_mode<synchronous>, transform_indices = @transform_22, window_bounds = array<i64: 1, 32>}, {pipeline_mode = #tpu.pipeline_mode<synchronous>, transform_indices = @transform_23, window_bounds = array<i64: 1, 32>}, {transform_indices = @transform_24, window_bounds = array<i64: 1, 8, 32>}]} {
    %c0 = arith.constant 0 : index
    %c0_0 = arith.constant 0 : index
    %c0_1 = arith.constant 0 : index
    %0 = vector.load %arg1[%c0, %c0_0, %c0_1] : memref<1x8x32xbf16, #tpu.memory_space<vmem>>, vector<1x8x32xbf16>
    %1 = vector.shape_cast %0 : vector<1x8x32xbf16> to vector<8x32xbf16>
    %2 = arith.extf %1 : vector<8x32xbf16> to vector<8x32xf32>
    %3 = arith.truncf %2 : vector<8x32xf32> to vector<8x32xbf16>
    %c0_2 = arith.constant 0 : index
    %c0_3 = arith.constant 0 : index
    %4 = vector.load %arg5[%c0_2, %c0_3] : memref<32x96xbf16, #tpu.memory_space<vmem>>, vector<32x96xbf16>
    %cst = arith.constant dense<0.000000e+00> : vector<8x96xf32>
    %5 = tpu.matmul %3, %4, %cst {dimension_numbers = #tpu.dot_dimension_numbers<[1], [0], [0], [1], [0, 0, 1, 1], [], []>} : vector<8x32xbf16>, vector<32x96xbf16>, vector<8x96xf32> -> vector<8x96xf32>
    %c0_4 = arith.constant 0 : index
    %c0_5 = arith.constant 0 : index
    %6 = vector.load %arg6[%c0_4, %c0_5] : memref<1x96xf32, #tpu.memory_space<vmem>>, vector<1x96xf32>
    %7 = vector.broadcast %6 : vector<1x96xf32> to vector<8x96xf32>
    %8 = arith.addf %5, %7 : vector<8x96xf32>
    %c0_6 = arith.constant 0 : index
    %c0_7 = arith.constant 0 : index
    %9 = vector.load %arg3[%c0_6, %c0_7] : memref<8x8xf32, #tpu.memory_space<vmem>>, vector<8x8xf32>
    %c0_8 = arith.constant 0 : index
    %c0_9 = arith.constant 0 : index
    %c0_10 = arith.constant 0 : index
    %10 = vector.load %arg4[%c0_8, %c0_9, %c0_10] : memref<1x1x8xf32, #tpu.memory_space<vmem>>, vector<1x1x8xf32>
    %11 = vector.shape_cast %10 : vector<1x1x8xf32> to vector<1x8xf32>
    %12 = vector.broadcast %11 : vector<1x8xf32> to vector<8x8xf32>
    %13 = arith.addf %9, %12 : vector<8x8xf32>
    %14 = vector.extract_strided_slice %8 {offsets = [0, 0], sizes = [8, 32], strides = [1, 1]} : vector<8x96xf32> to vector<8x32xf32>
    %15 = vector.extract_strided_slice %8 {offsets = [0, 32], sizes = [8, 32], strides = [1, 1]} : vector<8x96xf32> to vector<8x32xf32>
    %16 = vector.extract_strided_slice %8 {offsets = [0, 64], sizes = [8, 32], strides = [1, 1]} : vector<8x96xf32> to vector<8x32xf32>
    %c0_11 = arith.constant 0 : index
    %c0_12 = arith.constant 0 : index
    %17 = vector.load %arg7[%c0_11, %c0_12] : memref<32x32xbf16, #tpu.memory_space<vmem>>, vector<32x32xbf16>
    %18 = arith.truncf %14 : vector<8x32xf32> to vector<8x32xbf16>
    %19 = arith.truncf %15 : vector<8x32xf32> to vector<8x32xbf16>
    %20 = arith.truncf %16 : vector<8x32xf32> to vector<8x32xbf16>
    %21 = vector.extract_strided_slice %18 {offsets = [0, 0], sizes = [8, 4], strides = [1, 1]} : vector<8x32xbf16> to vector<8x4xbf16>
    %22 = vector.extract_strided_slice %19 {offsets = [0, 0], sizes = [8, 4], strides = [1, 1]} : vector<8x32xbf16> to vector<8x4xbf16>
    %cst_13 = arith.constant dense<0.000000e+00> : vector<8x8xf32>
    %23 = tpu.matmul %21, %22, %cst_13 {dimension_numbers = #tpu.dot_dimension_numbers<[1], [1], [0], [0], [0, 0, 1, 0], [], []>} : vector<8x4xbf16>, vector<8x4xbf16>, vector<8x8xf32> -> vector<8x8xf32>
    %24 = arith.addf %23, %13 : vector<8x8xf32>
    %cst_14 = arith.constant dense<0xFF800000> : vector<8xf32>
    %25 = vector.multi_reduction <maximumf>, %24, %cst_14 [1] : vector<8x8xf32> to vector<8xf32>
    %26 = vector.shape_cast %25 : vector<8xf32> to vector<8x1xf32>
    %27 = vector.broadcast %26 : vector<8x1xf32> to vector<8x8xf32>
    %28 = arith.subf %24, %27 : vector<8x8xf32>
    %29 = math.exp %28 : vector<8x8xf32>
    %cst_15 = arith.constant dense<0.000000e+00> : vector<8xf32>
    %30 = vector.multi_reduction <add>, %29, %cst_15 [1] : vector<8x8xf32> to vector<8xf32>
    %31 = vector.shape_cast %30 : vector<8xf32> to vector<8x1xf32>
    %32 = tpu.reciprocal %31 {approx = true} : vector<8x1xf32> -> vector<8x1xf32>
    %33 = vector.broadcast %32 : vector<8x1xf32> to vector<8x8xf32>
    %34 = arith.mulf %29, %33 : vector<8x8xf32>
    %35 = arith.truncf %34 : vector<8x8xf32> to vector<8x8xbf16>
    %36 = vector.extract_strided_slice %20 {offsets = [0, 0], sizes = [8, 4], strides = [1, 1]} : vector<8x32xbf16> to vector<8x4xbf16>
    %cst_16 = arith.constant dense<0.000000e+00> : vector<8x4xf32>
    %37 = tpu.matmul %35, %36, %cst_16 {dimension_numbers = #tpu.dot_dimension_numbers<[1], [0], [0], [1], [0, 0, 1, 1], [], []>} : vector<8x8xbf16>, vector<8x4xbf16>, vector<8x4xf32> -> vector<8x4xf32>
    %38 = vector.extract_strided_slice %18 {offsets = [0, 4], sizes = [8, 4], strides = [1, 1]} : vector<8x32xbf16> to vector<8x4xbf16>
    %39 = vector.extract_strided_slice %19 {offsets = [0, 4], sizes = [8, 4], strides = [1, 1]} : vector<8x32xbf16> to vector<8x4xbf16>
    %cst_17 = arith.constant dense<0.000000e+00> : vector<8x8xf32>
    %40 = tpu.matmul %38, %39, %cst_17 {dimension_numbers = #tpu.dot_dimension_numbers<[1], [1], [0], [0], [0, 0, 1, 0], [], []>} : vector<8x4xbf16>, vector<8x4xbf16>, vector<8x8xf32> -> vector<8x8xf32>
    %41 = arith.addf %40, %13 : vector<8x8xf32>
    %cst_18 = arith.constant dense<0xFF800000> : vector<8xf32>
    %42 = vector.multi_reduction <maximumf>, %41, %cst_18 [1] : vector<8x8xf32> to vector<8xf32>
    %43 = vector.shape_cast %42 : vector<8xf32> to vector<8x1xf32>
    %44 = vector.broadcast %43 : vector<8x1xf32> to vector<8x8xf32>
    %45 = arith.subf %41, %44 : vector<8x8xf32>
    %46 = math.exp %45 : vector<8x8xf32>
    %cst_19 = arith.constant dense<0.000000e+00> : vector<8xf32>
    %47 = vector.multi_reduction <add>, %46, %cst_19 [1] : vector<8x8xf32> to vector<8xf32>
    %48 = vector.shape_cast %47 : vector<8xf32> to vector<8x1xf32>
    %49 = tpu.reciprocal %48 {approx = true} : vector<8x1xf32> -> vector<8x1xf32>
    %50 = vector.broadcast %49 : vector<8x1xf32> to vector<8x8xf32>
    %51 = arith.mulf %46, %50 : vector<8x8xf32>
    %52 = arith.truncf %51 : vector<8x8xf32> to vector<8x8xbf16>
    %53 = vector.extract_strided_slice %20 {offsets = [0, 4], sizes = [8, 4], strides = [1, 1]} : vector<8x32xbf16> to vector<8x4xbf16>
    %cst_20 = arith.constant dense<0.000000e+00> : vector<8x4xf32>
    %54 = tpu.matmul %52, %53, %cst_20 {dimension_numbers = #tpu.dot_dimension_numbers<[1], [0], [0], [1], [0, 0, 1, 1], [], []>} : vector<8x8xbf16>, vector<8x4xbf16>, vector<8x4xf32> -> vector<8x4xf32>
    %55 = vector.extract_strided_slice %18 {offsets = [0, 8], sizes = [8, 4], strides = [1, 1]} : vector<8x32xbf16> to vector<8x4xbf16>
    %56 = vector.extract_strided_slice %19 {offsets = [0, 8], sizes = [8, 4], strides = [1, 1]} : vector<8x32xbf16> to vector<8x4xbf16>
    %cst_21 = arith.constant dense<0.000000e+00> : vector<8x8xf32>
    %57 = tpu.matmul %55, %56, %cst_21 {dimension_numbers = #tpu.dot_dimension_numbers<[1], [1], [0], [0], [0, 0, 1, 0], [], []>} : vector<8x4xbf16>, vector<8x4xbf16>, vector<8x8xf32> -> vector<8x8xf32>
    %58 = arith.addf %57, %13 : vector<8x8xf32>
    %cst_22 = arith.constant dense<0xFF800000> : vector<8xf32>
    %59 = vector.multi_reduction <maximumf>, %58, %cst_22 [1] : vector<8x8xf32> to vector<8xf32>
    %60 = vector.shape_cast %59 : vector<8xf32> to vector<8x1xf32>
    %61 = vector.broadcast %60 : vector<8x1xf32> to vector<8x8xf32>
    %62 = arith.subf %58, %61 : vector<8x8xf32>
    %63 = math.exp %62 : vector<8x8xf32>
    %cst_23 = arith.constant dense<0.000000e+00> : vector<8xf32>
    %64 = vector.multi_reduction <add>, %63, %cst_23 [1] : vector<8x8xf32> to vector<8xf32>
    %65 = vector.shape_cast %64 : vector<8xf32> to vector<8x1xf32>
    %66 = tpu.reciprocal %65 {approx = true} : vector<8x1xf32> -> vector<8x1xf32>
    %67 = vector.broadcast %66 : vector<8x1xf32> to vector<8x8xf32>
    %68 = arith.mulf %63, %67 : vector<8x8xf32>
    %69 = arith.truncf %68 : vector<8x8xf32> to vector<8x8xbf16>
    %70 = vector.extract_strided_slice %20 {offsets = [0, 8], sizes = [8, 4], strides = [1, 1]} : vector<8x32xbf16> to vector<8x4xbf16>
    %cst_24 = arith.constant dense<0.000000e+00> : vector<8x4xf32>
    %71 = tpu.matmul %69, %70, %cst_24 {dimension_numbers = #tpu.dot_dimension_numbers<[1], [0], [0], [1], [0, 0, 1, 1], [], []>} : vector<8x8xbf16>, vector<8x4xbf16>, vector<8x4xf32> -> vector<8x4xf32>
    %72 = vector.extract_strided_slice %18 {offsets = [0, 12], sizes = [8, 4], strides = [1, 1]} : vector<8x32xbf16> to vector<8x4xbf16>
    %73 = vector.extract_strided_slice %19 {offsets = [0, 12], sizes = [8, 4], strides = [1, 1]} : vector<8x32xbf16> to vector<8x4xbf16>
    %cst_25 = arith.constant dense<0.000000e+00> : vector<8x8xf32>
    %74 = tpu.matmul %72, %73, %cst_25 {dimension_numbers = #tpu.dot_dimension_numbers<[1], [1], [0], [0], [0, 0, 1, 0], [], []>} : vector<8x4xbf16>, vector<8x4xbf16>, vector<8x8xf32> -> vector<8x8xf32>
    %75 = arith.addf %74, %13 : vector<8x8xf32>
    %cst_26 = arith.constant dense<0xFF800000> : vector<8xf32>
    %76 = vector.multi_reduction <maximumf>, %75, %cst_26 [1] : vector<8x8xf32> to vector<8xf32>
    %77 = vector.shape_cast %76 : vector<8xf32> to vector<8x1xf32>
    %78 = vector.broadcast %77 : vector<8x1xf32> to vector<8x8xf32>
    %79 = arith.subf %75, %78 : vector<8x8xf32>
    %80 = math.exp %79 : vector<8x8xf32>
    %cst_27 = arith.constant dense<0.000000e+00> : vector<8xf32>
    %81 = vector.multi_reduction <add>, %80, %cst_27 [1] : vector<8x8xf32> to vector<8xf32>
    %82 = vector.shape_cast %81 : vector<8xf32> to vector<8x1xf32>
    %83 = tpu.reciprocal %82 {approx = true} : vector<8x1xf32> -> vector<8x1xf32>
    %84 = vector.broadcast %83 : vector<8x1xf32> to vector<8x8xf32>
    %85 = arith.mulf %80, %84 : vector<8x8xf32>
    %86 = arith.truncf %85 : vector<8x8xf32> to vector<8x8xbf16>
    %87 = vector.extract_strided_slice %20 {offsets = [0, 12], sizes = [8, 4], strides = [1, 1]} : vector<8x32xbf16> to vector<8x4xbf16>
    %cst_28 = arith.constant dense<0.000000e+00> : vector<8x4xf32>
    %88 = tpu.matmul %86, %87, %cst_28 {dimension_numbers = #tpu.dot_dimension_numbers<[1], [0], [0], [1], [0, 0, 1, 1], [], []>} : vector<8x8xbf16>, vector<8x4xbf16>, vector<8x4xf32> -> vector<8x4xf32>
    %89 = vector.extract_strided_slice %18 {offsets = [0, 16], sizes = [8, 4], strides = [1, 1]} : vector<8x32xbf16> to vector<8x4xbf16>
    %90 = vector.extract_strided_slice %19 {offsets = [0, 16], sizes = [8, 4], strides = [1, 1]} : vector<8x32xbf16> to vector<8x4xbf16>
    %cst_29 = arith.constant dense<0.000000e+00> : vector<8x8xf32>
    %91 = tpu.matmul %89, %90, %cst_29 {dimension_numbers = #tpu.dot_dimension_numbers<[1], [1], [0], [0], [0, 0, 1, 0], [], []>} : vector<8x4xbf16>, vector<8x4xbf16>, vector<8x8xf32> -> vector<8x8xf32>
    %92 = arith.addf %91, %13 : vector<8x8xf32>
    %cst_30 = arith.constant dense<0xFF800000> : vector<8xf32>
    %93 = vector.multi_reduction <maximumf>, %92, %cst_30 [1] : vector<8x8xf32> to vector<8xf32>
    %94 = vector.shape_cast %93 : vector<8xf32> to vector<8x1xf32>
    %95 = vector.broadcast %94 : vector<8x1xf32> to vector<8x8xf32>
    %96 = arith.subf %92, %95 : vector<8x8xf32>
    %97 = math.exp %96 : vector<8x8xf32>
    %cst_31 = arith.constant dense<0.000000e+00> : vector<8xf32>
    %98 = vector.multi_reduction <add>, %97, %cst_31 [1] : vector<8x8xf32> to vector<8xf32>
    %99 = vector.shape_cast %98 : vector<8xf32> to vector<8x1xf32>
    %100 = tpu.reciprocal %99 {approx = true} : vector<8x1xf32> -> vector<8x1xf32>
    %101 = vector.broadcast %100 : vector<8x1xf32> to vector<8x8xf32>
    %102 = arith.mulf %97, %101 : vector<8x8xf32>
    %103 = arith.truncf %102 : vector<8x8xf32> to vector<8x8xbf16>
    %104 = vector.extract_strided_slice %20 {offsets = [0, 16], sizes = [8, 4], strides = [1, 1]} : vector<8x32xbf16> to vector<8x4xbf16>
    %cst_32 = arith.constant dense<0.000000e+00> : vector<8x4xf32>
    %105 = tpu.matmul %103, %104, %cst_32 {dimension_numbers = #tpu.dot_dimension_numbers<[1], [0], [0], [1], [0, 0, 1, 1], [], []>} : vector<8x8xbf16>, vector<8x4xbf16>, vector<8x4xf32> -> vector<8x4xf32>
    %106 = vector.extract_strided_slice %18 {offsets = [0, 20], sizes = [8, 4], strides = [1, 1]} : vector<8x32xbf16> to vector<8x4xbf16>
    %107 = vector.extract_strided_slice %19 {offsets = [0, 20], sizes = [8, 4], strides = [1, 1]} : vector<8x32xbf16> to vector<8x4xbf16>
    %cst_33 = arith.constant dense<0.000000e+00> : vector<8x8xf32>
    %108 = tpu.matmul %106, %107, %cst_33 {dimension_numbers = #tpu.dot_dimension_numbers<[1], [1], [0], [0], [0, 0, 1, 0], [], []>} : vector<8x4xbf16>, vector<8x4xbf16>, vector<8x8xf32> -> vector<8x8xf32>
    %109 = arith.addf %108, %13 : vector<8x8xf32>
    %cst_34 = arith.constant dense<0xFF800000> : vector<8xf32>
    %110 = vector.multi_reduction <maximumf>, %109, %cst_34 [1] : vector<8x8xf32> to vector<8xf32>
    %111 = vector.shape_cast %110 : vector<8xf32> to vector<8x1xf32>
    %112 = vector.broadcast %111 : vector<8x1xf32> to vector<8x8xf32>
    %113 = arith.subf %109, %112 : vector<8x8xf32>
    %114 = math.exp %113 : vector<8x8xf32>
    %cst_35 = arith.constant dense<0.000000e+00> : vector<8xf32>
    %115 = vector.multi_reduction <add>, %114, %cst_35 [1] : vector<8x8xf32> to vector<8xf32>
    %116 = vector.shape_cast %115 : vector<8xf32> to vector<8x1xf32>
    %117 = tpu.reciprocal %116 {approx = true} : vector<8x1xf32> -> vector<8x1xf32>
    %118 = vector.broadcast %117 : vector<8x1xf32> to vector<8x8xf32>
    %119 = arith.mulf %114, %118 : vector<8x8xf32>
    %120 = arith.truncf %119 : vector<8x8xf32> to vector<8x8xbf16>
    %121 = vector.extract_strided_slice %20 {offsets = [0, 20], sizes = [8, 4], strides = [1, 1]} : vector<8x32xbf16> to vector<8x4xbf16>
    %cst_36 = arith.constant dense<0.000000e+00> : vector<8x4xf32>
    %122 = tpu.matmul %120, %121, %cst_36 {dimension_numbers = #tpu.dot_dimension_numbers<[1], [0], [0], [1], [0, 0, 1, 1], [], []>} : vector<8x8xbf16>, vector<8x4xbf16>, vector<8x4xf32> -> vector<8x4xf32>
    %123 = vector.extract_strided_slice %18 {offsets = [0, 24], sizes = [8, 4], strides = [1, 1]} : vector<8x32xbf16> to vector<8x4xbf16>
    %124 = vector.extract_strided_slice %19 {offsets = [0, 24], sizes = [8, 4], strides = [1, 1]} : vector<8x32xbf16> to vector<8x4xbf16>
    %cst_37 = arith.constant dense<0.000000e+00> : vector<8x8xf32>
    %125 = tpu.matmul %123, %124, %cst_37 {dimension_numbers = #tpu.dot_dimension_numbers<[1], [1], [0], [0], [0, 0, 1, 0], [], []>} : vector<8x4xbf16>, vector<8x4xbf16>, vector<8x8xf32> -> vector<8x8xf32>
    %126 = arith.addf %125, %13 : vector<8x8xf32>
    %cst_38 = arith.constant dense<0xFF800000> : vector<8xf32>
    %127 = vector.multi_reduction <maximumf>, %126, %cst_38 [1] : vector<8x8xf32> to vector<8xf32>
    %128 = vector.shape_cast %127 : vector<8xf32> to vector<8x1xf32>
    %129 = vector.broadcast %128 : vector<8x1xf32> to vector<8x8xf32>
    %130 = arith.subf %126, %129 : vector<8x8xf32>
    %131 = math.exp %130 : vector<8x8xf32>
    %cst_39 = arith.constant dense<0.000000e+00> : vector<8xf32>
    %132 = vector.multi_reduction <add>, %131, %cst_39 [1] : vector<8x8xf32> to vector<8xf32>
    %133 = vector.shape_cast %132 : vector<8xf32> to vector<8x1xf32>
    %134 = tpu.reciprocal %133 {approx = true} : vector<8x1xf32> -> vector<8x1xf32>
    %135 = vector.broadcast %134 : vector<8x1xf32> to vector<8x8xf32>
    %136 = arith.mulf %131, %135 : vector<8x8xf32>
    %137 = arith.truncf %136 : vector<8x8xf32> to vector<8x8xbf16>
    %138 = vector.extract_strided_slice %20 {offsets = [0, 24], sizes = [8, 4], strides = [1, 1]} : vector<8x32xbf16> to vector<8x4xbf16>
    %cst_40 = arith.constant dense<0.000000e+00> : vector<8x4xf32>
    %139 = tpu.matmul %137, %138, %cst_40 {dimension_numbers = #tpu.dot_dimension_numbers<[1], [0], [0], [1], [0, 0, 1, 1], [], []>} : vector<8x8xbf16>, vector<8x4xbf16>, vector<8x4xf32> -> vector<8x4xf32>
    %140 = vector.extract_strided_slice %18 {offsets = [0, 28], sizes = [8, 4], strides = [1, 1]} : vector<8x32xbf16> to vector<8x4xbf16>
    %141 = vector.extract_strided_slice %19 {offsets = [0, 28], sizes = [8, 4], strides = [1, 1]} : vector<8x32xbf16> to vector<8x4xbf16>
    %cst_41 = arith.constant dense<0.000000e+00> : vector<8x8xf32>
    %142 = tpu.matmul %140, %141, %cst_41 {dimension_numbers = #tpu.dot_dimension_numbers<[1], [1], [0], [0], [0, 0, 1, 0], [], []>} : vector<8x4xbf16>, vector<8x4xbf16>, vector<8x8xf32> -> vector<8x8xf32>
    %143 = arith.addf %142, %13 : vector<8x8xf32>
    %cst_42 = arith.constant dense<0xFF800000> : vector<8xf32>
    %144 = vector.multi_reduction <maximumf>, %143, %cst_42 [1] : vector<8x8xf32> to vector<8xf32>
    %145 = vector.shape_cast %144 : vector<8xf32> to vector<8x1xf32>
    %146 = vector.broadcast %145 : vector<8x1xf32> to vector<8x8xf32>
    %147 = arith.subf %143, %146 : vector<8x8xf32>
    %148 = math.exp %147 : vector<8x8xf32>
    %cst_43 = arith.constant dense<0.000000e+00> : vector<8xf32>
    %149 = vector.multi_reduction <add>, %148, %cst_43 [1] : vector<8x8xf32> to vector<8xf32>
    %150 = vector.shape_cast %149 : vector<8xf32> to vector<8x1xf32>
    %151 = tpu.reciprocal %150 {approx = true} : vector<8x1xf32> -> vector<8x1xf32>
    %152 = vector.broadcast %151 : vector<8x1xf32> to vector<8x8xf32>
    %153 = arith.mulf %148, %152 : vector<8x8xf32>
    %154 = arith.truncf %153 : vector<8x8xf32> to vector<8x8xbf16>
    %155 = vector.extract_strided_slice %20 {offsets = [0, 28], sizes = [8, 4], strides = [1, 1]} : vector<8x32xbf16> to vector<8x4xbf16>
    %cst_44 = arith.constant dense<0.000000e+00> : vector<8x4xf32>
    %156 = tpu.matmul %154, %155, %cst_44 {dimension_numbers = #tpu.dot_dimension_numbers<[1], [0], [0], [1], [0, 0, 1, 1], [], []>} : vector<8x8xbf16>, vector<8x4xbf16>, vector<8x4xf32> -> vector<8x4xf32>
    %157 = tpu.concatenate %37, %54, %71, %88, %105, %122, %139, %156 in 1 : vector<8x4xf32>, vector<8x4xf32>, vector<8x4xf32>, vector<8x4xf32>, vector<8x4xf32>, vector<8x4xf32>, vector<8x4xf32>, vector<8x4xf32> -> vector<8x32xf32>
    %158 = arith.truncf %157 : vector<8x32xf32> to vector<8x32xbf16>
    %cst_45 = arith.constant dense<0.000000e+00> : vector<8x32xf32>
    %159 = tpu.matmul %158, %17, %cst_45 {dimension_numbers = #tpu.dot_dimension_numbers<[1], [0], [0], [1], [0, 0, 1, 1], [], []>} : vector<8x32xbf16>, vector<32x32xbf16>, vector<8x32xf32> -> vector<8x32xf32>
    %c0_46 = arith.constant 0 : index
    %c0_47 = arith.constant 0 : index
    %160 = vector.load %arg8[%c0_46, %c0_47] : memref<1x32xf32, #tpu.memory_space<vmem>>, vector<1x32xf32>
    %161 = vector.broadcast %160 : vector<1x32xf32> to vector<8x32xf32>
    %162 = arith.addf %159, %161 : vector<8x32xf32>
    %163 = arith.addf %2, %162 : vector<8x32xf32>
    %c0_48 = arith.constant 0 : index
    %c0_49 = arith.constant 0 : index
    %164 = vector.load %arg9[%c0_48, %c0_49] : memref<1x32xf32, #tpu.memory_space<vmem>>, vector<1x32xf32>
    %c0_50 = arith.constant 0 : index
    %c0_51 = arith.constant 0 : index
    %165 = vector.load %arg10[%c0_50, %c0_51] : memref<1x32xf32, #tpu.memory_space<vmem>>, vector<1x32xf32>
    %cst_52 = arith.constant dense<0.000000e+00> : vector<8xf32>
    %166 = vector.multi_reduction <add>, %163, %cst_52 [1] : vector<8x32xf32> to vector<8xf32>
    %167 = vector.shape_cast %166 : vector<8xf32> to vector<8x1xf32>
    %cst_53 = arith.constant 3.200000e+01 : f32
    %168 = vector.broadcast %cst_53 : f32 to vector<8x1xf32>
    %169 = arith.divf %167, %168 : vector<8x1xf32>
    %170 = vector.broadcast %169 : vector<8x1xf32> to vector<8x32xf32>
    %171 = arith.subf %163, %170 : vector<8x32xf32>
    %172 = arith.mulf %171, %171 : vector<8x32xf32>
    %cst_54 = arith.constant dense<0.000000e+00> : vector<8xf32>
    %173 = vector.multi_reduction <add>, %172, %cst_54 [1] : vector<8x32xf32> to vector<8xf32>
    %174 = vector.shape_cast %173 : vector<8xf32> to vector<8x1xf32>
    %cst_55 = arith.constant 3.200000e+01 : f32
    %175 = vector.broadcast %cst_55 : f32 to vector<8x1xf32>
    %176 = arith.divf %174, %175 : vector<8x1xf32>
    %177 = vector.broadcast %169 : vector<8x1xf32> to vector<8x32xf32>
    %178 = arith.subf %163, %177 : vector<8x32xf32>
    %cst_56 = arith.constant 9.99999974E-6 : f32
    %179 = vector.broadcast %cst_56 : f32 to vector<8x1xf32>
    %180 = arith.addf %176, %179 : vector<8x1xf32>
    %181 = math.rsqrt %180 : vector<8x1xf32>
    %182 = vector.broadcast %181 : vector<8x1xf32> to vector<8x32xf32>
    %183 = arith.mulf %178, %182 : vector<8x32xf32>
    %184 = vector.broadcast %164 : vector<1x32xf32> to vector<8x32xf32>
    %185 = arith.mulf %183, %184 : vector<8x32xf32>
    %186 = vector.broadcast %165 : vector<1x32xf32> to vector<8x32xf32>
    %187 = arith.addf %185, %186 : vector<8x32xf32>
    %c0_57 = arith.constant 0 : index
    %c0_58 = arith.constant 0 : index
    %c0_59 = arith.constant 0 : index
    %188 = vector.load %arg2[%c0_57, %c0_58, %c0_59] : memref<1x12x32xbf16, #tpu.memory_space<vmem>>, vector<1x12x32xbf16>
    %189 = vector.shape_cast %188 : vector<1x12x32xbf16> to vector<12x32xbf16>
    %190 = arith.truncf %187 : vector<8x32xf32> to vector<8x32xbf16>
    %c0_60 = arith.constant 0 : index
    %c0_61 = arith.constant 0 : index
    %191 = vector.load %arg11[%c0_60, %c0_61] : memref<32x32xbf16, #tpu.memory_space<vmem>>, vector<32x32xbf16>
    %cst_62 = arith.constant dense<0.000000e+00> : vector<8x32xf32>
    %192 = tpu.matmul %190, %191, %cst_62 {dimension_numbers = #tpu.dot_dimension_numbers<[1], [0], [0], [1], [0, 0, 1, 1], [], []>} : vector<8x32xbf16>, vector<32x32xbf16>, vector<8x32xf32> -> vector<8x32xf32>
    %c0_63 = arith.constant 0 : index
    %c0_64 = arith.constant 0 : index
    %193 = vector.load %arg12[%c0_63, %c0_64] : memref<1x32xf32, #tpu.memory_space<vmem>>, vector<1x32xf32>
    %194 = vector.broadcast %193 : vector<1x32xf32> to vector<8x32xf32>
    %195 = arith.addf %192, %194 : vector<8x32xf32>
    %c0_65 = arith.constant 0 : index
    %c0_66 = arith.constant 0 : index
    %196 = vector.load %arg13[%c0_65, %c0_66] : memref<32x64xbf16, #tpu.memory_space<vmem>>, vector<32x64xbf16>
    %cst_67 = arith.constant dense<0.000000e+00> : vector<12x64xf32>
    %197 = tpu.matmul %189, %196, %cst_67 {dimension_numbers = #tpu.dot_dimension_numbers<[1], [0], [0], [1], [0, 0, 1, 1], [], []>} : vector<12x32xbf16>, vector<32x64xbf16>, vector<12x64xf32> -> vector<12x64xf32>
    %c0_68 = arith.constant 0 : index
    %c0_69 = arith.constant 0 : index
    %198 = vector.load %arg14[%c0_68, %c0_69] : memref<1x64xf32, #tpu.memory_space<vmem>>, vector<1x64xf32>
    %199 = vector.broadcast %198 : vector<1x64xf32> to vector<12x64xf32>
    %200 = arith.addf %197, %199 : vector<12x64xf32>
    %201 = vector.extract_strided_slice %200 {offsets = [0, 0], sizes = [12, 32], strides = [1, 1]} : vector<12x64xf32> to vector<12x32xf32>
    %202 = vector.extract_strided_slice %200 {offsets = [0, 32], sizes = [12, 32], strides = [1, 1]} : vector<12x64xf32> to vector<12x32xf32>
    %c0_70 = arith.constant 0 : index
    %c0_71 = arith.constant 0 : index
    %203 = vector.load %arg15[%c0_70, %c0_71] : memref<32x32xbf16, #tpu.memory_space<vmem>>, vector<32x32xbf16>
    %204 = arith.truncf %195 : vector<8x32xf32> to vector<8x32xbf16>
    %205 = arith.truncf %201 : vector<12x32xf32> to vector<12x32xbf16>
    %206 = arith.truncf %202 : vector<12x32xf32> to vector<12x32xbf16>
    %207 = vector.extract_strided_slice %204 {offsets = [0, 0], sizes = [8, 4], strides = [1, 1]} : vector<8x32xbf16> to vector<8x4xbf16>
    %208 = vector.extract_strided_slice %205 {offsets = [0, 0], sizes = [12, 4], strides = [1, 1]} : vector<12x32xbf16> to vector<12x4xbf16>
    %cst_72 = arith.constant dense<0.000000e+00> : vector<8x12xf32>
    %209 = tpu.matmul %207, %208, %cst_72 {dimension_numbers = #tpu.dot_dimension_numbers<[1], [1], [0], [0], [0, 0, 1, 0], [], []>} : vector<8x4xbf16>, vector<12x4xbf16>, vector<8x12xf32> -> vector<8x12xf32>
    %cst_73 = arith.constant dense<0xFF800000> : vector<8xf32>
    %210 = vector.multi_reduction <maximumf>, %209, %cst_73 [1] : vector<8x12xf32> to vector<8xf32>
    %211 = vector.shape_cast %210 : vector<8xf32> to vector<8x1xf32>
    %212 = vector.broadcast %211 : vector<8x1xf32> to vector<8x12xf32>
    %213 = arith.subf %209, %212 : vector<8x12xf32>
    %214 = math.exp %213 : vector<8x12xf32>
    %cst_74 = arith.constant dense<0.000000e+00> : vector<8xf32>
    %215 = vector.multi_reduction <add>, %214, %cst_74 [1] : vector<8x12xf32> to vector<8xf32>
    %216 = vector.shape_cast %215 : vector<8xf32> to vector<8x1xf32>
    %217 = tpu.reciprocal %216 {approx = true} : vector<8x1xf32> -> vector<8x1xf32>
    %218 = vector.broadcast %217 : vector<8x1xf32> to vector<8x12xf32>
    %219 = arith.mulf %214, %218 : vector<8x12xf32>
    %220 = arith.truncf %219 : vector<8x12xf32> to vector<8x12xbf16>
    %221 = vector.extract_strided_slice %206 {offsets = [0, 0], sizes = [12, 4], strides = [1, 1]} : vector<12x32xbf16> to vector<12x4xbf16>
    %cst_75 = arith.constant dense<0.000000e+00> : vector<8x4xf32>
    %222 = tpu.matmul %220, %221, %cst_75 {dimension_numbers = #tpu.dot_dimension_numbers<[1], [0], [0], [1], [0, 0, 1, 1], [], []>} : vector<8x12xbf16>, vector<12x4xbf16>, vector<8x4xf32> -> vector<8x4xf32>
    %223 = vector.extract_strided_slice %204 {offsets = [0, 4], sizes = [8, 4], strides = [1, 1]} : vector<8x32xbf16> to vector<8x4xbf16>
    %224 = vector.extract_strided_slice %205 {offsets = [0, 4], sizes = [12, 4], strides = [1, 1]} : vector<12x32xbf16> to vector<12x4xbf16>
    %cst_76 = arith.constant dense<0.000000e+00> : vector<8x12xf32>
    %225 = tpu.matmul %223, %224, %cst_76 {dimension_numbers = #tpu.dot_dimension_numbers<[1], [1], [0], [0], [0, 0, 1, 0], [], []>} : vector<8x4xbf16>, vector<12x4xbf16>, vector<8x12xf32> -> vector<8x12xf32>
    %cst_77 = arith.constant dense<0xFF800000> : vector<8xf32>
    %226 = vector.multi_reduction <maximumf>, %225, %cst_77 [1] : vector<8x12xf32> to vector<8xf32>
    %227 = vector.shape_cast %226 : vector<8xf32> to vector<8x1xf32>
    %228 = vector.broadcast %227 : vector<8x1xf32> to vector<8x12xf32>
    %229 = arith.subf %225, %228 : vector<8x12xf32>
    %230 = math.exp %229 : vector<8x12xf32>
    %cst_78 = arith.constant dense<0.000000e+00> : vector<8xf32>
    %231 = vector.multi_reduction <add>, %230, %cst_78 [1] : vector<8x12xf32> to vector<8xf32>
    %232 = vector.shape_cast %231 : vector<8xf32> to vector<8x1xf32>
    %233 = tpu.reciprocal %232 {approx = true} : vector<8x1xf32> -> vector<8x1xf32>
    %234 = vector.broadcast %233 : vector<8x1xf32> to vector<8x12xf32>
    %235 = arith.mulf %230, %234 : vector<8x12xf32>
    %236 = arith.truncf %235 : vector<8x12xf32> to vector<8x12xbf16>
    %237 = vector.extract_strided_slice %206 {offsets = [0, 4], sizes = [12, 4], strides = [1, 1]} : vector<12x32xbf16> to vector<12x4xbf16>
    %cst_79 = arith.constant dense<0.000000e+00> : vector<8x4xf32>
    %238 = tpu.matmul %236, %237, %cst_79 {dimension_numbers = #tpu.dot_dimension_numbers<[1], [0], [0], [1], [0, 0, 1, 1], [], []>} : vector<8x12xbf16>, vector<12x4xbf16>, vector<8x4xf32> -> vector<8x4xf32>
    %239 = vector.extract_strided_slice %204 {offsets = [0, 8], sizes = [8, 4], strides = [1, 1]} : vector<8x32xbf16> to vector<8x4xbf16>
    %240 = vector.extract_strided_slice %205 {offsets = [0, 8], sizes = [12, 4], strides = [1, 1]} : vector<12x32xbf16> to vector<12x4xbf16>
    %cst_80 = arith.constant dense<0.000000e+00> : vector<8x12xf32>
    %241 = tpu.matmul %239, %240, %cst_80 {dimension_numbers = #tpu.dot_dimension_numbers<[1], [1], [0], [0], [0, 0, 1, 0], [], []>} : vector<8x4xbf16>, vector<12x4xbf16>, vector<8x12xf32> -> vector<8x12xf32>
    %cst_81 = arith.constant dense<0xFF800000> : vector<8xf32>
    %242 = vector.multi_reduction <maximumf>, %241, %cst_81 [1] : vector<8x12xf32> to vector<8xf32>
    %243 = vector.shape_cast %242 : vector<8xf32> to vector<8x1xf32>
    %244 = vector.broadcast %243 : vector<8x1xf32> to vector<8x12xf32>
    %245 = arith.subf %241, %244 : vector<8x12xf32>
    %246 = math.exp %245 : vector<8x12xf32>
    %cst_82 = arith.constant dense<0.000000e+00> : vector<8xf32>
    %247 = vector.multi_reduction <add>, %246, %cst_82 [1] : vector<8x12xf32> to vector<8xf32>
    %248 = vector.shape_cast %247 : vector<8xf32> to vector<8x1xf32>
    %249 = tpu.reciprocal %248 {approx = true} : vector<8x1xf32> -> vector<8x1xf32>
    %250 = vector.broadcast %249 : vector<8x1xf32> to vector<8x12xf32>
    %251 = arith.mulf %246, %250 : vector<8x12xf32>
    %252 = arith.truncf %251 : vector<8x12xf32> to vector<8x12xbf16>
    %253 = vector.extract_strided_slice %206 {offsets = [0, 8], sizes = [12, 4], strides = [1, 1]} : vector<12x32xbf16> to vector<12x4xbf16>
    %cst_83 = arith.constant dense<0.000000e+00> : vector<8x4xf32>
    %254 = tpu.matmul %252, %253, %cst_83 {dimension_numbers = #tpu.dot_dimension_numbers<[1], [0], [0], [1], [0, 0, 1, 1], [], []>} : vector<8x12xbf16>, vector<12x4xbf16>, vector<8x4xf32> -> vector<8x4xf32>
    %255 = vector.extract_strided_slice %204 {offsets = [0, 12], sizes = [8, 4], strides = [1, 1]} : vector<8x32xbf16> to vector<8x4xbf16>
    %256 = vector.extract_strided_slice %205 {offsets = [0, 12], sizes = [12, 4], strides = [1, 1]} : vector<12x32xbf16> to vector<12x4xbf16>
    %cst_84 = arith.constant dense<0.000000e+00> : vector<8x12xf32>
    %257 = tpu.matmul %255, %256, %cst_84 {dimension_numbers = #tpu.dot_dimension_numbers<[1], [1], [0], [0], [0, 0, 1, 0], [], []>} : vector<8x4xbf16>, vector<12x4xbf16>, vector<8x12xf32> -> vector<8x12xf32>
    %cst_85 = arith.constant dense<0xFF800000> : vector<8xf32>
    %258 = vector.multi_reduction <maximumf>, %257, %cst_85 [1] : vector<8x12xf32> to vector<8xf32>
    %259 = vector.shape_cast %258 : vector<8xf32> to vector<8x1xf32>
    %260 = vector.broadcast %259 : vector<8x1xf32> to vector<8x12xf32>
    %261 = arith.subf %257, %260 : vector<8x12xf32>
    %262 = math.exp %261 : vector<8x12xf32>
    %cst_86 = arith.constant dense<0.000000e+00> : vector<8xf32>
    %263 = vector.multi_reduction <add>, %262, %cst_86 [1] : vector<8x12xf32> to vector<8xf32>
    %264 = vector.shape_cast %263 : vector<8xf32> to vector<8x1xf32>
    %265 = tpu.reciprocal %264 {approx = true} : vector<8x1xf32> -> vector<8x1xf32>
    %266 = vector.broadcast %265 : vector<8x1xf32> to vector<8x12xf32>
    %267 = arith.mulf %262, %266 : vector<8x12xf32>
    %268 = arith.truncf %267 : vector<8x12xf32> to vector<8x12xbf16>
    %269 = vector.extract_strided_slice %206 {offsets = [0, 12], sizes = [12, 4], strides = [1, 1]} : vector<12x32xbf16> to vector<12x4xbf16>
    %cst_87 = arith.constant dense<0.000000e+00> : vector<8x4xf32>
    %270 = tpu.matmul %268, %269, %cst_87 {dimension_numbers = #tpu.dot_dimension_numbers<[1], [0], [0], [1], [0, 0, 1, 1], [], []>} : vector<8x12xbf16>, vector<12x4xbf16>, vector<8x4xf32> -> vector<8x4xf32>
    %271 = vector.extract_strided_slice %204 {offsets = [0, 16], sizes = [8, 4], strides = [1, 1]} : vector<8x32xbf16> to vector<8x4xbf16>
    %272 = vector.extract_strided_slice %205 {offsets = [0, 16], sizes = [12, 4], strides = [1, 1]} : vector<12x32xbf16> to vector<12x4xbf16>
    %cst_88 = arith.constant dense<0.000000e+00> : vector<8x12xf32>
    %273 = tpu.matmul %271, %272, %cst_88 {dimension_numbers = #tpu.dot_dimension_numbers<[1], [1], [0], [0], [0, 0, 1, 0], [], []>} : vector<8x4xbf16>, vector<12x4xbf16>, vector<8x12xf32> -> vector<8x12xf32>
    %cst_89 = arith.constant dense<0xFF800000> : vector<8xf32>
    %274 = vector.multi_reduction <maximumf>, %273, %cst_89 [1] : vector<8x12xf32> to vector<8xf32>
    %275 = vector.shape_cast %274 : vector<8xf32> to vector<8x1xf32>
    %276 = vector.broadcast %275 : vector<8x1xf32> to vector<8x12xf32>
    %277 = arith.subf %273, %276 : vector<8x12xf32>
    %278 = math.exp %277 : vector<8x12xf32>
    %cst_90 = arith.constant dense<0.000000e+00> : vector<8xf32>
    %279 = vector.multi_reduction <add>, %278, %cst_90 [1] : vector<8x12xf32> to vector<8xf32>
    %280 = vector.shape_cast %279 : vector<8xf32> to vector<8x1xf32>
    %281 = tpu.reciprocal %280 {approx = true} : vector<8x1xf32> -> vector<8x1xf32>
    %282 = vector.broadcast %281 : vector<8x1xf32> to vector<8x12xf32>
    %283 = arith.mulf %278, %282 : vector<8x12xf32>
    %284 = arith.truncf %283 : vector<8x12xf32> to vector<8x12xbf16>
    %285 = vector.extract_strided_slice %206 {offsets = [0, 16], sizes = [12, 4], strides = [1, 1]} : vector<12x32xbf16> to vector<12x4xbf16>
    %cst_91 = arith.constant dense<0.000000e+00> : vector<8x4xf32>
    %286 = tpu.matmul %284, %285, %cst_91 {dimension_numbers = #tpu.dot_dimension_numbers<[1], [0], [0], [1], [0, 0, 1, 1], [], []>} : vector<8x12xbf16>, vector<12x4xbf16>, vector<8x4xf32> -> vector<8x4xf32>
    %287 = vector.extract_strided_slice %204 {offsets = [0, 20], sizes = [8, 4], strides = [1, 1]} : vector<8x32xbf16> to vector<8x4xbf16>
    %288 = vector.extract_strided_slice %205 {offsets = [0, 20], sizes = [12, 4], strides = [1, 1]} : vector<12x32xbf16> to vector<12x4xbf16>
    %cst_92 = arith.constant dense<0.000000e+00> : vector<8x12xf32>
    %289 = tpu.matmul %287, %288, %cst_92 {dimension_numbers = #tpu.dot_dimension_numbers<[1], [1], [0], [0], [0, 0, 1, 0], [], []>} : vector<8x4xbf16>, vector<12x4xbf16>, vector<8x12xf32> -> vector<8x12xf32>
    %cst_93 = arith.constant dense<0xFF800000> : vector<8xf32>
    %290 = vector.multi_reduction <maximumf>, %289, %cst_93 [1] : vector<8x12xf32> to vector<8xf32>
    %291 = vector.shape_cast %290 : vector<8xf32> to vector<8x1xf32>
    %292 = vector.broadcast %291 : vector<8x1xf32> to vector<8x12xf32>
    %293 = arith.subf %289, %292 : vector<8x12xf32>
    %294 = math.exp %293 : vector<8x12xf32>
    %cst_94 = arith.constant dense<0.000000e+00> : vector<8xf32>
    %295 = vector.multi_reduction <add>, %294, %cst_94 [1] : vector<8x12xf32> to vector<8xf32>
    %296 = vector.shape_cast %295 : vector<8xf32> to vector<8x1xf32>
    %297 = tpu.reciprocal %296 {approx = true} : vector<8x1xf32> -> vector<8x1xf32>
    %298 = vector.broadcast %297 : vector<8x1xf32> to vector<8x12xf32>
    %299 = arith.mulf %294, %298 : vector<8x12xf32>
    %300 = arith.truncf %299 : vector<8x12xf32> to vector<8x12xbf16>
    %301 = vector.extract_strided_slice %206 {offsets = [0, 20], sizes = [12, 4], strides = [1, 1]} : vector<12x32xbf16> to vector<12x4xbf16>
    %cst_95 = arith.constant dense<0.000000e+00> : vector<8x4xf32>
    %302 = tpu.matmul %300, %301, %cst_95 {dimension_numbers = #tpu.dot_dimension_numbers<[1], [0], [0], [1], [0, 0, 1, 1], [], []>} : vector<8x12xbf16>, vector<12x4xbf16>, vector<8x4xf32> -> vector<8x4xf32>
    %303 = vector.extract_strided_slice %204 {offsets = [0, 24], sizes = [8, 4], strides = [1, 1]} : vector<8x32xbf16> to vector<8x4xbf16>
    %304 = vector.extract_strided_slice %205 {offsets = [0, 24], sizes = [12, 4], strides = [1, 1]} : vector<12x32xbf16> to vector<12x4xbf16>
    %cst_96 = arith.constant dense<0.000000e+00> : vector<8x12xf32>
    %305 = tpu.matmul %303, %304, %cst_96 {dimension_numbers = #tpu.dot_dimension_numbers<[1], [1], [0], [0], [0, 0, 1, 0], [], []>} : vector<8x4xbf16>, vector<12x4xbf16>, vector<8x12xf32> -> vector<8x12xf32>
    %cst_97 = arith.constant dense<0xFF800000> : vector<8xf32>
    %306 = vector.multi_reduction <maximumf>, %305, %cst_97 [1] : vector<8x12xf32> to vector<8xf32>
    %307 = vector.shape_cast %306 : vector<8xf32> to vector<8x1xf32>
    %308 = vector.broadcast %307 : vector<8x1xf32> to vector<8x12xf32>
    %309 = arith.subf %305, %308 : vector<8x12xf32>
    %310 = math.exp %309 : vector<8x12xf32>
    %cst_98 = arith.constant dense<0.000000e+00> : vector<8xf32>
    %311 = vector.multi_reduction <add>, %310, %cst_98 [1] : vector<8x12xf32> to vector<8xf32>
    %312 = vector.shape_cast %311 : vector<8xf32> to vector<8x1xf32>
    %313 = tpu.reciprocal %312 {approx = true} : vector<8x1xf32> -> vector<8x1xf32>
    %314 = vector.broadcast %313 : vector<8x1xf32> to vector<8x12xf32>
    %315 = arith.mulf %310, %314 : vector<8x12xf32>
    %316 = arith.truncf %315 : vector<8x12xf32> to vector<8x12xbf16>
    %317 = vector.extract_strided_slice %206 {offsets = [0, 24], sizes = [12, 4], strides = [1, 1]} : vector<12x32xbf16> to vector<12x4xbf16>
    %cst_99 = arith.constant dense<0.000000e+00> : vector<8x4xf32>
    %318 = tpu.matmul %316, %317, %cst_99 {dimension_numbers = #tpu.dot_dimension_numbers<[1], [0], [0], [1], [0, 0, 1, 1], [], []>} : vector<8x12xbf16>, vector<12x4xbf16>, vector<8x4xf32> -> vector<8x4xf32>
    %319 = vector.extract_strided_slice %204 {offsets = [0, 28], sizes = [8, 4], strides = [1, 1]} : vector<8x32xbf16> to vector<8x4xbf16>
    %320 = vector.extract_strided_slice %205 {offsets = [0, 28], sizes = [12, 4], strides = [1, 1]} : vector<12x32xbf16> to vector<12x4xbf16>
    %cst_100 = arith.constant dense<0.000000e+00> : vector<8x12xf32>
    %321 = tpu.matmul %319, %320, %cst_100 {dimension_numbers = #tpu.dot_dimension_numbers<[1], [1], [0], [0], [0, 0, 1, 0], [], []>} : vector<8x4xbf16>, vector<12x4xbf16>, vector<8x12xf32> -> vector<8x12xf32>
    %cst_101 = arith.constant dense<0xFF800000> : vector<8xf32>
    %322 = vector.multi_reduction <maximumf>, %321, %cst_101 [1] : vector<8x12xf32> to vector<8xf32>
    %323 = vector.shape_cast %322 : vector<8xf32> to vector<8x1xf32>
    %324 = vector.broadcast %323 : vector<8x1xf32> to vector<8x12xf32>
    %325 = arith.subf %321, %324 : vector<8x12xf32>
    %326 = math.exp %325 : vector<8x12xf32>
    %cst_102 = arith.constant dense<0.000000e+00> : vector<8xf32>
    %327 = vector.multi_reduction <add>, %326, %cst_102 [1] : vector<8x12xf32> to vector<8xf32>
    %328 = vector.shape_cast %327 : vector<8xf32> to vector<8x1xf32>
    %329 = tpu.reciprocal %328 {approx = true} : vector<8x1xf32> -> vector<8x1xf32>
    %330 = vector.broadcast %329 : vector<8x1xf32> to vector<8x12xf32>
    %331 = arith.mulf %326, %330 : vector<8x12xf32>
    %332 = arith.truncf %331 : vector<8x12xf32> to vector<8x12xbf16>
    %333 = vector.extract_strided_slice %206 {offsets = [0, 28], sizes = [12, 4], strides = [1, 1]} : vector<12x32xbf16> to vector<12x4xbf16>
    %cst_103 = arith.constant dense<0.000000e+00> : vector<8x4xf32>
    %334 = tpu.matmul %332, %333, %cst_103 {dimension_numbers = #tpu.dot_dimension_numbers<[1], [0], [0], [1], [0, 0, 1, 1], [], []>} : vector<8x12xbf16>, vector<12x4xbf16>, vector<8x4xf32> -> vector<8x4xf32>
    %335 = tpu.concatenate %222, %238, %254, %270, %286, %302, %318, %334 in 1 : vector<8x4xf32>, vector<8x4xf32>, vector<8x4xf32>, vector<8x4xf32>, vector<8x4xf32>, vector<8x4xf32>, vector<8x4xf32>, vector<8x4xf32> -> vector<8x32xf32>
    %336 = arith.truncf %335 : vector<8x32xf32> to vector<8x32xbf16>
    %cst_104 = arith.constant dense<0.000000e+00> : vector<8x32xf32>
    %337 = tpu.matmul %336, %203, %cst_104 {dimension_numbers = #tpu.dot_dimension_numbers<[1], [0], [0], [1], [0, 0, 1, 1], [], []>} : vector<8x32xbf16>, vector<32x32xbf16>, vector<8x32xf32> -> vector<8x32xf32>
    %c0_105 = arith.constant 0 : index
    %c0_106 = arith.constant 0 : index
    %338 = vector.load %arg16[%c0_105, %c0_106] : memref<1x32xf32, #tpu.memory_space<vmem>>, vector<1x32xf32>
    %339 = vector.broadcast %338 : vector<1x32xf32> to vector<8x32xf32>
    %340 = arith.addf %337, %339 : vector<8x32xf32>
    %341 = arith.addf %187, %340 : vector<8x32xf32>
    %c0_107 = arith.constant 0 : index
    %c0_108 = arith.constant 0 : index
    %342 = vector.load %arg17[%c0_107, %c0_108] : memref<1x32xf32, #tpu.memory_space<vmem>>, vector<1x32xf32>
    %c0_109 = arith.constant 0 : index
    %c0_110 = arith.constant 0 : index
    %343 = vector.load %arg18[%c0_109, %c0_110] : memref<1x32xf32, #tpu.memory_space<vmem>>, vector<1x32xf32>
    %cst_111 = arith.constant dense<0.000000e+00> : vector<8xf32>
    %344 = vector.multi_reduction <add>, %341, %cst_111 [1] : vector<8x32xf32> to vector<8xf32>
    %345 = vector.shape_cast %344 : vector<8xf32> to vector<8x1xf32>
    %cst_112 = arith.constant 3.200000e+01 : f32
    %346 = vector.broadcast %cst_112 : f32 to vector<8x1xf32>
    %347 = arith.divf %345, %346 : vector<8x1xf32>
    %348 = vector.broadcast %347 : vector<8x1xf32> to vector<8x32xf32>
    %349 = arith.subf %341, %348 : vector<8x32xf32>
    %350 = arith.mulf %349, %349 : vector<8x32xf32>
    %cst_113 = arith.constant dense<0.000000e+00> : vector<8xf32>
    %351 = vector.multi_reduction <add>, %350, %cst_113 [1] : vector<8x32xf32> to vector<8xf32>
    %352 = vector.shape_cast %351 : vector<8xf32> to vector<8x1xf32>
    %cst_114 = arith.constant 3.200000e+01 : f32
    %353 = vector.broadcast %cst_114 : f32 to vector<8x1xf32>
    %354 = arith.divf %352, %353 : vector<8x1xf32>
    %355 = vector.broadcast %347 : vector<8x1xf32> to vector<8x32xf32>
    %356 = arith.subf %341, %355 : vector<8x32xf32>
    %cst_115 = arith.constant 9.99999974E-6 : f32
    %357 = vector.broadcast %cst_115 : f32 to vector<8x1xf32>
    %358 = arith.addf %354, %357 : vector<8x1xf32>
    %359 = math.rsqrt %358 : vector<8x1xf32>
    %360 = vector.broadcast %359 : vector<8x1xf32> to vector<8x32xf32>
    %361 = arith.mulf %356, %360 : vector<8x32xf32>
    %362 = vector.broadcast %342 : vector<1x32xf32> to vector<8x32xf32>
    %363 = arith.mulf %361, %362 : vector<8x32xf32>
    %364 = vector.broadcast %343 : vector<1x32xf32> to vector<8x32xf32>
    %365 = arith.addf %363, %364 : vector<8x32xf32>
    %366 = arith.truncf %365 : vector<8x32xf32> to vector<8x32xbf16>
    %c0_116 = arith.constant 0 : index
    %c0_117 = arith.constant 0 : index
    %367 = vector.load %arg19[%c0_116, %c0_117] : memref<32x2048xbf16, #tpu.memory_space<vmem>>, vector<32x2048xbf16>
    %cst_118 = arith.constant dense<0.000000e+00> : vector<8x2048xf32>
    %368 = tpu.matmul %366, %367, %cst_118 {dimension_numbers = #tpu.dot_dimension_numbers<[1], [0], [0], [1], [0, 0, 1, 1], [], []>} : vector<8x32xbf16>, vector<32x2048xbf16>, vector<8x2048xf32> -> vector<8x2048xf32>
    %c0_119 = arith.constant 0 : index
    %c0_120 = arith.constant 0 : index
    %369 = vector.load %arg20[%c0_119, %c0_120] : memref<1x2048xf32, #tpu.memory_space<vmem>>, vector<1x2048xf32>
    %370 = vector.broadcast %369 : vector<1x2048xf32> to vector<8x2048xf32>
    %371 = arith.addf %368, %370 : vector<8x2048xf32>
    %cst_121 = arith.constant 0.000000e+00 : f32
    %372 = vector.broadcast %cst_121 : f32 to vector<8x2048xf32>
    %373 = arith.maximumf %371, %372 : vector<8x2048xf32>
    %374 = arith.truncf %373 : vector<8x2048xf32> to vector<8x2048xbf16>
    %c0_122 = arith.constant 0 : index
    %c0_123 = arith.constant 0 : index
    %375 = vector.load %arg21[%c0_122, %c0_123] : memref<2048x32xbf16, #tpu.memory_space<vmem>>, vector<2048x32xbf16>
    %cst_124 = arith.constant dense<0.000000e+00> : vector<8x32xf32>
    %376 = tpu.matmul %374, %375, %cst_124 {dimension_numbers = #tpu.dot_dimension_numbers<[1], [0], [0], [1], [0, 0, 1, 1], [], []>} : vector<8x2048xbf16>, vector<2048x32xbf16>, vector<8x32xf32> -> vector<8x32xf32>
    %c0_125 = arith.constant 0 : index
    %c0_126 = arith.constant 0 : index
    %377 = vector.load %arg22[%c0_125, %c0_126] : memref<1x32xf32, #tpu.memory_space<vmem>>, vector<1x32xf32>
    %378 = vector.broadcast %377 : vector<1x32xf32> to vector<8x32xf32>
    %379 = arith.addf %376, %378 : vector<8x32xf32>
    %380 = arith.addf %365, %379 : vector<8x32xf32>
    %c0_127 = arith.constant 0 : index
    %c0_128 = arith.constant 0 : index
    %381 = vector.load %arg23[%c0_127, %c0_128] : memref<1x32xf32, #tpu.memory_space<vmem>>, vector<1x32xf32>
    %c0_129 = arith.constant 0 : index
    %c0_130 = arith.constant 0 : index
    %382 = vector.load %arg24[%c0_129, %c0_130] : memref<1x32xf32, #tpu.memory_space<vmem>>, vector<1x32xf32>
    %cst_131 = arith.constant dense<0.000000e+00> : vector<8xf32>
    %383 = vector.multi_reduction <add>, %380, %cst_131 [1] : vector<8x32xf32> to vector<8xf32>
    %384 = vector.shape_cast %383 : vector<8xf32> to vector<8x1xf32>
    %cst_132 = arith.constant 3.200000e+01 : f32
    %385 = vector.broadcast %cst_132 : f32 to vector<8x1xf32>
    %386 = arith.divf %384, %385 : vector<8x1xf32>
    %387 = vector.broadcast %386 : vector<8x1xf32> to vector<8x32xf32>
    %388 = arith.subf %380, %387 : vector<8x32xf32>
    %389 = arith.mulf %388, %388 : vector<8x32xf32>
    %cst_133 = arith.constant dense<0.000000e+00> : vector<8xf32>
    %390 = vector.multi_reduction <add>, %389, %cst_133 [1] : vector<8x32xf32> to vector<8xf32>
    %391 = vector.shape_cast %390 : vector<8xf32> to vector<8x1xf32>
    %cst_134 = arith.constant 3.200000e+01 : f32
    %392 = vector.broadcast %cst_134 : f32 to vector<8x1xf32>
    %393 = arith.divf %391, %392 : vector<8x1xf32>
    %394 = vector.broadcast %386 : vector<8x1xf32> to vector<8x32xf32>
    %395 = arith.subf %380, %394 : vector<8x32xf32>
    %cst_135 = arith.constant 9.99999974E-6 : f32
    %396 = vector.broadcast %cst_135 : f32 to vector<8x1xf32>
    %397 = arith.addf %393, %396 : vector<8x1xf32>
    %398 = math.rsqrt %397 : vector<8x1xf32>
    %399 = vector.broadcast %398 : vector<8x1xf32> to vector<8x32xf32>
    %400 = arith.mulf %395, %399 : vector<8x32xf32>
    %401 = vector.broadcast %381 : vector<1x32xf32> to vector<8x32xf32>
    %402 = arith.mulf %400, %401 : vector<8x32xf32>
    %403 = vector.broadcast %382 : vector<1x32xf32> to vector<8x32xf32>
    %404 = arith.addf %402, %403 : vector<8x32xf32>
    %405 = arith.truncf %404 : vector<8x32xf32> to vector<8x32xbf16>
    %c0_136 = arith.constant 0 : index
    %c0_137 = arith.constant 0 : index
    %c0_138 = arith.constant 0 : index
    %406 = vector.load %arg25[%c0_136, %c0_137, %c0_138] : memref<1x8x32xbf16, #tpu.memory_space<vmem>>, vector<1x8x32xbf16>
    %407 = vector.shape_cast %406 : vector<1x8x32xbf16> to vector<8x32xbf16>
    %408 = vector.shape_cast %405 : vector<8x32xbf16> to vector<1x8x32xbf16>
    tpu.vector_store %arg25[%c0_136, %c0_137, %c0_138], %408 {strides = array<i32>} : memref<1x8x32xbf16, #tpu.memory_space<vmem>>, vector<1x8x32xbf16>,
    return
  }
  func.func @transform_0(%arg0: i32) -> (i32, i32, i32) {
    %c0_i32 = arith.constant 0 : i32
    %c0_i32_0 = arith.constant 0 : i32
    %c0_i32_1 = arith.constant 0 : i32
    return %arg0, %c0_i32, %c0_i32_0 : i32, i32, i32
  }
  func.func @transform_1(%arg0: i32) -> (i32, i32, i32) {
    %c0_i32 = arith.constant 0 : i32
    %c0_i32_0 = arith.constant 0 : i32
    %c0_i32_1 = arith.constant 0 : i32
    return %arg0, %c0_i32, %c0_i32_0 : i32, i32, i32
  }
  func.func @transform_2(%arg0: i32) -> (i32, i32) {
    %c0_i32 = arith.constant 0 : i32
    %c0_i32_0 = arith.constant 0 : i32
    %c0_i32_1 = arith.constant 0 : i32
    return %c0_i32, %c0_i32_0 : i32, i32
  }
  func.func @transform_3(%arg0: i32) -> (i32, i32, i32) {
    %c0_i32 = arith.constant 0 : i32
    %c0_i32_0 = arith.constant 0 : i32
    %c0_i32_1 = arith.constant 0 : i32
    %c0_i32_2 = arith.constant 0 : i32
    return %c0_i32, %c0_i32_0, %c0_i32_1 : i32, i32, i32
  }
  func.func @transform_4(%arg0: i32) -> (i32, i32) {
    %c0_i32 = arith.constant 0 : i32
    %c0_i32_0 = arith.constant 0 : i32
    %c0_i32_1 = arith.constant 0 : i32
    return %c0_i32, %c0_i32_0 : i32, i32
  }
  func.func @transform_5(%arg0: i32) -> (i32, i32) {
    %c0_i32 = arith.constant 0 : i32
    %c0_i32_0 = arith.constant 0 : i32
    %c0_i32_1 = arith.constant 0 : i32
    return %c0_i32, %c0_i32_0 : i32, i32
  }
  func.func @transform_6(%arg0: i32) -> (i32, i32) {
    %c0_i32 = arith.constant 0 : i32
    %c0_i32_0 = arith.constant 0 : i32
    %c0_i32_1 = arith.constant 0 : i32
    return %c0_i32, %c0_i32_0 : i32, i32
  }
  func.func @transform_7(%arg0: i32) -> (i32, i32) {
    %c0_i32 = arith.constant 0 : i32
    %c0_i32_0 = arith.constant 0 : i32
    %c0_i32_1 = arith.constant 0 : i32
    return %c0_i32, %c0_i32_0 : i32, i32
  }
  func.func @transform_8(%arg0: i32) -> (i32, i32) {
    %c0_i32 = arith.constant 0 : i32
    %c0_i32_0 = arith.constant 0 : i32
    %c0_i32_1 = arith.constant 0 : i32
    return %c0_i32, %c0_i32_0 : i32, i32
  }
  func.func @transform_9(%arg0: i32) -> (i32, i32) {
    %c0_i32 = arith.constant 0 : i32
    %c0_i32_0 = arith.constant 0 : i32
    %c0_i32_1 = arith.constant 0 : i32
    return %c0_i32, %c0_i32_0 : i32, i32
  }
  func.func @transform_10(%arg0: i32) -> (i32, i32) {
    %c0_i32 = arith.constant 0 : i32
    %c0_i32_0 = arith.constant 0 : i32
    %c0_i32_1 = arith.constant 0 : i32
    return %c0_i32, %c0_i32_0 : i32, i32
  }
  func.func @transform_11(%arg0: i32) -> (i32, i32) {
    %c0_i32 = arith.constant 0 : i32
    %c0_i32_0 = arith.constant 0 : i32
    %c0_i32_1 = arith.constant 0 : i32
    return %c0_i32, %c0_i32_0 : i32, i32
  }
  func.func @transform_12(%arg0: i32) -> (i32, i32) {
    %c0_i32 = arith.constant 0 : i32
    %c0_i32_0 = arith.constant 0 : i32
    %c0_i32_1 = arith.constant 0 : i32
    return %c0_i32, %c0_i32_0 : i32, i32
  }
  func.func @transform_13(%arg0: i32) -> (i32, i32) {
    %c0_i32 = arith.constant 0 : i32
    %c0_i32_0 = arith.constant 0 : i32
    %c0_i32_1 = arith.constant 0 : i32
    return %c0_i32, %c0_i32_0 : i32, i32
  }
  func.func @transform_14(%arg0: i32) -> (i32, i32) {
    %c0_i32 = arith.constant 0 : i32
    %c0_i32_0 = arith.constant 0 : i32
    %c0_i32_1 = arith.constant 0 : i32
    return %c0_i32, %c0_i32_0 : i32, i32
  }
  func.func @transform_15(%arg0: i32) -> (i32, i32) {
    %c0_i32 = arith.constant 0 : i32
    %c0_i32_0 = arith.constant 0 : i32
    %c0_i32_1 = arith.constant 0 : i32
    return %c0_i32, %c0_i32_0 : i32, i32
  }
  func.func @transform_16(%arg0: i32) -> (i32, i32) {
    %c0_i32 = arith.constant 0 : i32
    %c0_i32_0 = arith.constant 0 : i32
    %c0_i32_1 = arith.constant 0 : i32
    return %c0_i32, %c0_i32_0 : i32, i32
  }
  func.func @transform_17(%arg0: i32) -> (i32, i32) {
    %c0_i32 = arith.constant 0 : i32
    %c0_i32_0 = arith.constant 0 : i32
    %c0_i32_1 = arith.constant 0 : i32
    return %c0_i32, %c0_i32_0 : i32, i32
  }
  func.func @transform_18(%arg0: i32) -> (i32, i32) {
    %c0_i32 = arith.constant 0 : i32
    %c0_i32_0 = arith.constant 0 : i32
    %c0_i32_1 = arith.constant 0 : i32
    return %c0_i32, %c0_i32_0 : i32, i32
  }
  func.func @transform_19(%arg0: i32) -> (i32, i32) {
    %c0_i32 = arith.constant 0 : i32
    %c0_i32_0 = arith.constant 0 : i32
    %c0_i32_1 = arith.constant 0 : i32
    return %c0_i32, %c0_i32_0 : i32, i32
  }
  func.func @transform_20(%arg0: i32) -> (i32, i32) {
    %c0_i32 = arith.constant 0 : i32
    %c0_i32_0 = arith.constant 0 : i32
    %c0_i32_1 = arith.constant 0 : i32
    return %c0_i32, %c0_i32_0 : i32, i32
  }
  func.func @transform_21(%arg0: i32) -> (i32, i32) {
    %c0_i32 = arith.constant 0 : i32
    %c0_i32_0 = arith.constant 0 : i32
    %c0_i32_1 = arith.constant 0 : i32
    return %c0_i32, %c0_i32_0 : i32, i32
  }
  func.func @transform_22(%arg0: i32) -> (i32, i32) {
    %c0_i32 = arith.constant 0 : i32
    %c0_i32_0 = arith.constant 0 : i32
    %c0_i32_1 = arith.constant 0 : i32
    return %c0_i32, %c0_i32_0 : i32, i32
  }
  func.func @transform_23(%arg0: i32) -> (i32, i32) {
    %c0_i32 = arith.constant 0 : i32
    %c0_i32_0 = arith.constant 0 : i32
    %c0_i32_1 = arith.constant 0 : i32
    return %c0_i32, %c0_i32_0 : i32, i32
  }
  func.func @transform_24(%arg0: i32) -> (i32, i32, i32) {
    %c0_i32 = arith.constant 0 : i32
    %c0_i32_0 = arith.constant 0 : i32
    %c0_i32_1 = arith.constant 0 : i32
    return %arg0, %c0_i32, %c0_i32_0 : i32, i32, i32
  }
}

</mosaic_0001>

<llo_original>
// kernel: multimodal_decoder_forward.7
$region0: #{multimodal_decoder_forward.7}
  #allocation0 [shape = 'u32[]', space=smem, size = 0x4, offset = 0x4, fixed_abs, tag = 'smem constant byte address 0x4 - core index']
  #allocation1 [shape = 'u32[72,128]{1,0:T(1,128)}', space=vmem, size = 0x9000, scoped, tag = 'internal scratch']
  %s0 = inlined_call_operand.vmem [shape: bf16[16,32], index: 0, kind: input, shape index: {}]
  %s1 = inlined_call_operand.vmem [shape: bf16[32,20], index: 1, kind: input, shape index: {}]
  %s2 = inlined_call_operand.vmem [shape: f32[1,20], index: 2, kind: input, shape index: {}]
  %s3 = inlined_call_operand.hbm [shape: f32[16,20], index: 3, kind: output, shape index: {}]
  %s4 = sld [smem:[#allocation0]]
  $region22: #{multimodal_decoder_forward.7} parent=0
    _
  %s6 = ssub.s32 1, %s4
  %s7 = scalar_select 0, %s6, %s4
  $region1: #{multimodal_decoder_forward.7} parent=0
    #allocation2 [shape = 'u8[8192]{0}', space=vmem, size = 0x2000, scoped, tag = 'output window, operand 0, single buffered']
    #allocation3 [shape = 's32[1]{0}', space=sflag, size = 0x4, scoped, tag = 'scoped memory for multimodal_decoder_forward.7']
    %8 = vsyncpa [#allocation3], 0
    // Predicated region
    $region2: #{multimodal_decoder_forward.7} parent=1 // pred_check
      _
    $region3: #{multimodal_decoder_forward.7} parent=1 // pred_check_branch
      %10 = sbr.rel (0) target = $region5
    $region4: #{multimodal_decoder_forward.7} parent=1 // pred_region
      _
    $region5: #{multimodal_decoder_forward.7} parent=1 // pred_fallthru
      _
    // Predicated region
    $region6: #{multimodal_decoder_forward.7} parent=1 // pred_check
      _
    $region7: #{multimodal_decoder_forward.7} parent=1 // pred_check_branch
      %12 = sbr.rel (0) target = $region9
    $region8: #{multimodal_decoder_forward.7} parent=1 // pred_region
      _
    $region9: #{multimodal_decoder_forward.7} parent=1 // pred_fallthru
      _
    // Predicated region
    $region10: #{multimodal_decoder_forward.7} parent=1 // pred_check
      _
    $region11: #{multimodal_decoder_forward.7} parent=1 // pred_check_branch
      %14 = sbr.rel (0) target = $region13
    $region12: #{multimodal_decoder_forward.7} parent=1 // pred_region
      _
    $region13: #{multimodal_decoder_forward.7} parent=1 // pred_fallthru
      _
    %v16 = vld [vmem:[%s0] sm:$0xf]
    %v17 = vld [vmem:[%s0 + $0x4] sm:$0xf]
    %v18 = vld [vmem:[%s1] sm:$0xf]
    %v19 = vld [vmem:[%s1 + $0x4] sm:$0xf]
    %v20 = vld [vmem:[%s1 + $0x8] sm:$0xf]
    %v21 = vld [vmem:[%s1 + $0xc] sm:$0xf]
    %v22 = vld [vmem:[%s2] sm:$0x1]
    %v24 = vperm.slane %v22, 0
    %v28 = vunpack.c.l.b16 %v16
    %v29 = vunpack.c.l.b16 %v17
    %v30 = vpack.c.b16 %v29, %v28
    %v35 = vunpack.c.l.b16 %v18
    %v36 = vunpack.c.l.b16 %v19
    %v37 = vunpack.c.l.b16 %v20
    %v38 = vunpack.c.l.b16 %v21
    %v39 = vpack.c.b16 %v36, %v35
    %v40 = vpack.c.b16 %v38, %v37
    %vm43 = vcmask 261120
    %v45 = vsel %vm43, %v30, 0
    %47 = vmatpush.bf16.msra.mxu0 0
    %48 = vmatpush.bf16.msra.mxu0 0
    %49 = vmatpush.bf16.msra.mxu0 0
    %50 = vmatpush.bf16.msra.mxu0 0
    %51 = vmatpush.bf16.msra.mxu0 0
    %52 = vmatpush.bf16.msra.mxu0 0
    %53 = vmatpush.bf16.msra.mxu0 %v40
    %54 = vmatpush.bf16.msra.mxu0 %v39
    %55 = vmatmul.bf16.gmra.mxu0 %v45
    %v56 = vpop.f32.mrf.mxu0
    %v57 = vadd.f32 %v24, %v56
    %v58 = vpop.f32.mrf.mxu0
    %v59 = vadd.f32 %v24, %v58
    %60 = vdwg.mxu0
    %vm61 = vcmask 162816
    %62 = vst.msk [vmem:[#allocation2] sm:$0xff] %vm61, %v57
    %63 = vst.msk [vmem:[#allocation2 + $0x8] sm:$0xff] %vm61, %v59
    // Predicated region
    $region14: #{multimodal_decoder_forward.7} parent=1 // pred_check
      _
    $region15: #{multimodal_decoder_forward.7} parent=1 // pred_check_branch
      %65 = sbr.rel (0) target = $region17
    $region16: #{multimodal_decoder_forward.7} parent=1 // pred_region
      %67 = vsyncadd [#allocation3], 0
      %s68 = sshll.u32 [#allocation2], 4
      %s69 = int_to_ptr.vmem [resolvable:$true] %s68
      %s70 = sshll.u32 %s3, 4
      %s71 = int_to_ptr.hbm [resolvable:$true] %s70
      %76 = dma.vmem_to_hbm [thread:$0]  %s69, 256, %s71, [#allocation3], 128, 128, 8
    $region17: #{multimodal_decoder_forward.7} parent=1 // pred_fallthru
      _
    // Predicated region
    $region18: #{multimodal_decoder_forward.7} parent=1 // pred_check
      _
    $region19: #{multimodal_decoder_forward.7} parent=1 // pred_check_branch
      %78 = sbr.rel (0) target = $region21
    $region20: #{multimodal_decoder_forward.7} parent=1 // pred_region
      %80 = dma.done [#allocation3], 256
    $region21: #{multimodal_decoder_forward.7} parent=1 // pred_fallthru
      _
    %81 = vsyncpa [#allocation3], 1

// kernel: multimodal_decoder_forward.4
$region0: #{multimodal_decoder_forward.4}
  #allocation0 [shape = 'u32[]', space=smem, size = 0x4, offset = 0x4, fixed_abs, tag = 'smem constant byte address 0x4 - core index']
  #allocation1 [shape = 'u32[72,128]{1,0:T(1,128)}', space=vmem, size = 0x9000, scoped, tag = 'internal scratch']
  %s0 = inlined_call_operand.vmem [shape: f32[2,8,32], index: 0, kind: input, shape index: {}]
  %s1 = inlined_call_operand.vmem [shape: f32[2,1,16], index: 1, kind: input, shape index: {}]
  %s2 = inlined_call_operand.vmem [shape: bf16[32,32], index: 2, kind: input, shape index: {}]
  %s3 = inlined_call_operand.hbm [shape: bf16[16,32], index: 3, kind: input, shape index: {}]
  %s4 = inlined_call_operand.hbm [shape: f32[1,32], index: 4, kind: input, shape index: {}]
  %s5 = inlined_call_operand.vmem [shape: f32[8,32], index: 5, kind: input, shape index: {}]
  %s6 = inlined_call_operand.vmem [shape: bf16[2,8,32], index: 6, kind: output, shape index: {}]
  %s7 = sld [smem:[#allocation0]]
  $region65: #{multimodal_decoder_forward.4} parent=0
    _
  %s9 = ssub.s32 1, %s7
  %s10 = scalar_select 0, %s9, %s7
  $region1: #{multimodal_decoder_forward.4} parent=0
    #allocation2 [shape = 'u8[4096]{0}', space=vmem, size = 0x1000, scoped, tag = 'input window, operand 3, single buffered']
    #allocation3 [shape = 's32[2]{0}', space=sflag, size = 0x8, scoped, tag = 'scoped memory for multimodal_decoder_forward.4']
    #allocation4 [shape = 'u8[512]{0}', space=vmem, size = 0x400, scoped, tag = 'input window, operand 4, single buffered']
    #allocation5 [shape = 's32[1]{0}', space=sflag, size = 0x4, scoped, tag = 'scoped memory for multimodal_decoder_forward.4']
    %11 = vsyncpa [#allocation3], 0
    %12 = vsyncpa [#allocation5], 0
    loop: start=0, step=1, limit=4
    $region2: #{multimodal_decoder_forward.4} parent=1 // loop_pre_header
      _
    $region3: #{multimodal_decoder_forward.4} parent=1 // loop_header
      %s14 = sphi 0, %s18
      %p15 = scmp.ge.s32.totalorder %s14, 4
      %s24 = sphi 0, %s26
      %s27 = sphi 0, %s24
      %s28 = sphi 0, %s27
      %s44 = sphi 0, %s28
      %s50 = sphi 0, %s52
      %s53 = sphi 0, %s50
      %s54 = sphi 0, %s53
      %s70 = sphi 0, %s54
      %s74 = sphi 0, %s74
      %s76 = sphi 0, %s74
      %s77 = sphi 0, %s76
      %s91 = sphi 0, %s77
      %s95 = sphi 0, %s95
      %s97 = sphi 0, %s95
      %s98 = sphi 0, %s97
      %s112 = sphi 0, %s98
      %s116 = sphi 0, %s116
      %s118 = sphi 0, %s116
      %s119 = sphi 0, %s118
      %s133 = sphi 0, %s119
      %s137 = sphi 0, %s137
      %s139 = sphi 0, %s137
      %s140 = sphi 0, %s139
      %s154 = sphi 0, %s140
      %s160 = sphi 0, %s162
      %s163 = sphi 0, %s160
      %s164 = sphi 0, %s163
      %s180 = sphi 0, %s164
    $region4: #{multimodal_decoder_forward.4} parent=1 // loop_header_branch
      %17 = sbr.rel (%p15) target = $region8
    $region5: #{multimodal_decoder_forward.4} parent=1 // loop_body
      %s19 = ssub.s32 %s14, 1
      %s20 = ssub.s32 %s14, 2
      %s21 = sadd.s32 %s14, 1
      %s22 = ssub.s32 %s14, %s21
      %p23 = scmp.eq.s32.totalorder %s22, 0
      %s25 = sadd.s32 %s24, 1
      %s26 = scalar_select %p23, %s24, %s25
      %p29 = pneg %p23
      %p30 = scmp.eq.s32.totalorder %s14, 1
      %p31 = por %p29, %p30
      %p32 = scmp.ne.s32.totalorder %s24, %s27
      %p33 = scmp.eq.s32.totalorder %s14, 0
      %p34 = por %p32, %p33
      %p35 = scmp.ne.s32.totalorder %s24, %s27
      %p36 = scmp.eq.s32.totalorder %s19, 1
      %p37 = por %p35, %p36
      %p38 = scmp.ne.s32.totalorder %s27, %s28
      %p39 = scmp.eq.s32.totalorder %s19, 0
      %p40 = por %p38, %p39
      %p41 = scmp.ne.s32.totalorder %s27, %s28
      %p42 = scmp.eq.s32.totalorder %s20, 1
      %p43 = por %p41, %p42
      %p45 = scmp.ne.s32.totalorder %s28, %s44
      %p46 = scmp.eq.s32.totalorder %s20, 0
      %p47 = por %p45, %p46
      %s48 = ssub.s32 %s14, %s21
      %p49 = scmp.eq.s32.totalorder %s48, 0
      %s51 = sadd.s32 %s50, 1
      %s52 = scalar_select %p49, %s50, %s51
      %p55 = pneg %p49
      %p56 = scmp.eq.s32.totalorder %s14, 1
      %p57 = por %p55, %p56
      %p58 = scmp.ne.s32.totalorder %s50, %s53
      %p59 = scmp.eq.s32.totalorder %s14, 0
      %p60 = por %p58, %p59
      %p61 = scmp.ne.s32.totalorder %s50, %s53
      %p62 = scmp.eq.s32.totalorder %s19, 1
      %p63 = por %p61, %p62
      %p64 = scmp.ne.s32.totalorder %s53, %s54
      %p65 = scmp.eq.s32.totalorder %s19, 0
      %p66 = por %p64, %p65
      %p67 = scmp.ne.s32.totalorder %s53, %s54
      %p68 = scmp.eq.s32.totalorder %s20, 1
      %p69 = por %p67, %p68
      %p71 = scmp.ne.s32.totalorder %s54, %s70
      %p72 = scmp.eq.s32.totalorder %s20, 0
      %p73 = por %p71, %p72
      %s75 = sadd.s32 %s74, 1
      %p78 = scmp.eq.s32.totalorder %s14, 1
      %p79 = scmp.ne.s32.totalorder %s74, %s76
      %p80 = scmp.eq.s32.totalorder %s14, 0
      %p81 = por %p79, %p80
      %p82 = scmp.ne.s32.totalorder %s74, %s76
      %p83 = scmp.eq.s32.totalorder %s19, 1
      %p84 = por %p82, %p83
      %p85 = scmp.ne.s32.totalorder %s76, %s77
      %p86 = scmp.eq.s32.totalorder %s19, 0
      %p87 = por %p85, %p86
      %p88 = scmp.ne.s32.totalorder %s76, %s77
      %p89 = scmp.eq.s32.totalorder %s20, 1
      %p90 = por %p88, %p89
      %p92 = scmp.ne.s32.totalorder %s77, %s91
      %p93 = scmp.eq.s32.totalorder %s20, 0
      %p94 = por %p92, %p93
      %s96 = sadd.s32 %s95, 1
      %p99 = scmp.eq.s32.totalorder %s14, 1
      %p100 = scmp.ne.s32.totalorder %s95, %s97
      %p101 = scmp.eq.s32.totalorder %s14, 0
      %p102 = por %p100, %p101
      %p103 = scmp.ne.s32.totalorder %s95, %s97
      %p104 = scmp.eq.s32.totalorder %s19, 1
      %p105 = por %p103, %p104
      %p106 = scmp.ne.s32.totalorder %s97, %s98
      %p107 = scmp.eq.s32.totalorder %s19, 0
      %p108 = por %p106, %p107
      %p109 = scmp.ne.s32.totalorder %s97, %s98
      %p110 = scmp.eq.s32.totalorder %s20, 1
      %p111 = por %p109, %p110
      %p113 = scmp.ne.s32.totalorder %s98, %s112
      %p114 = scmp.eq.s32.totalorder %s20, 0
      %p115 = por %p113, %p114
      %s117 = sadd.s32 %s116, 1
      %p120 = scmp.eq.s32.totalorder %s14, 1
      %p121 = scmp.ne.s32.totalorder %s116, %s118
      %p122 = scmp.eq.s32.totalorder %s14, 0
      %p123 = por %p121, %p122
      %p124 = scmp.ne.s32.totalorder %s116, %s118
      %p125 = scmp.eq.s32.totalorder %s19, 1
      %p126 = por %p124, %p125
      %p127 = scmp.ne.s32.totalorder %s118, %s119
      %p128 = scmp.eq.s32.totalorder %s19, 0
      %p129 = por %p127, %p128
      %p130 = scmp.ne.s32.totalorder %s118, %s119
      %p131 = scmp.eq.s32.totalorder %s20, 1
      %p132 = por %p130, %p131
      %p134 = scmp.ne.s32.totalorder %s119, %s133
      %p135 = scmp.eq.s32.totalorder %s20, 0
      %p136 = por %p134, %p135
      %s138 = sadd.s32 %s137, 1
      %p141 = scmp.eq.s32.totalorder %s14, 1
      %p142 = scmp.ne.s32.totalorder %s137, %s139
      %p143 = scmp.eq.s32.totalorder %s14, 0
      %p144 = por %p142, %p143
      %p145 = scmp.ne.s32.totalorder %s137, %s139
      %p146 = scmp.eq.s32.totalorder %s19, 1
      %p147 = por %p145, %p146
      %p148 = scmp.ne.s32.totalorder %s139, %s140
      %p149 = scmp.eq.s32.totalorder %s19, 0
      %p150 = por %p148, %p149
      %p151 = scmp.ne.s32.totalorder %s139, %s140
      %p152 = scmp.eq.s32.totalorder %s20, 1
      %p153 = por %p151, %p152
      %p155 = scmp.ne.s32.totalorder %s140, %s154
      %p156 = scmp.eq.s32.totalorder %s20, 0
      %p157 = por %p155, %p156
      %s158 = ssub.s32 %s14, %s21
      %p159 = scmp.eq.s32.totalorder %s158, 0
      %s161 = sadd.s32 %s160, 1
      %s162 = scalar_select %p159, %s160, %s161
      %p165 = pneg %p159
      %p166 = scmp.eq.s32.totalorder %s14, 1
      %p167 = por %p165, %p166
      %p168 = scmp.ne.s32.totalorder %s160, %s163
      %p169 = scmp.eq.s32.totalorder %s14, 0
      %p170 = por %p168, %p169
      %p171 = scmp.ne.s32.totalorder %s160, %s163
      %p172 = scmp.eq.s32.totalorder %s19, 1
      %p173 = por %p171, %p172
      %p174 = scmp.ne.s32.totalorder %s163, %s164
      %p175 = scmp.eq.s32.totalorder %s19, 0
      %p176 = por %p174, %p175
      %p177 = scmp.ne.s32.totalorder %s163, %s164
      %p178 = scmp.eq.s32.totalorder %s20, 1
      %p179 = por %p177, %p178
      %p181 = scmp.ne.s32.totalorder %s164, %s180
      %p182 = scmp.eq.s32.totalorder %s20, 0
      %p183 = por %p181, %p182
      %p184 = scmp.le.s32.totalorder 1, %s14
      %p185 = scmp.lt.s32.totalorder %s14, 3
      %p186 = pnand %p184, %p185
      %p187 = pneg %p186
      // Predicated region
      $region9: #{multimodal_decoder_forward.4} parent=5 // pred_check
        _
      $region10: #{multimodal_decoder_forward.4} parent=5 // pred_check_branch
        %189 = sbr.rel (%p186) target = $region12
      $region11: #{multimodal_decoder_forward.4} parent=5 // pred_region
        %s190 = ssub.s32 %s14, 1
        // Predicated region
        $region13: #{multimodal_decoder_forward.4} parent=11 // pred_check
          %p191 = pneg %p87
        $region14: #{multimodal_decoder_forward.4} parent=11 // pred_check_branch
          %193 = sbr.rel (%p191) target = $region16
        $region15: #{multimodal_decoder_forward.4} parent=11 // pred_region
          _
        $region16: #{multimodal_decoder_forward.4} parent=11 // pred_fallthru
          _
        // Predicated region
        $region17: #{multimodal_decoder_forward.4} parent=11 // pred_check
          %p194 = pneg %p108
        $region18: #{multimodal_decoder_forward.4} parent=11 // pred_check_branch
          %196 = sbr.rel (%p194) target = $region20
        $region19: #{multimodal_decoder_forward.4} parent=11 // pred_region
          %198 = vsyncadd [#allocation3], 0
          %s199 = sshll.u32 %s3, 4
          %s200 = int_to_ptr.hbm [resolvable:$true] %s199
          %s201 = sshll.u32 [#allocation2], 4
          %s202 = int_to_ptr.vmem [resolvable:$true] %s201
          %207 = dma.hbm_to_vmem [thread:$0]  %s200, 128, %s202, [#allocation3], 64, 64, 4
        $region20: #{multimodal_decoder_forward.4} parent=11 // pred_fallthru
          _
        // Predicated region
        $region21: #{multimodal_decoder_forward.4} parent=11 // pred_check
          %p208 = pneg %p129
        $region22: #{multimodal_decoder_forward.4} parent=11 // pred_check_branch
          %210 = sbr.rel (%p208) target = $region24
        $region23: #{multimodal_decoder_forward.4} parent=11 // pred_region
          %212 = vsyncadd [#allocation5], 0
          %s214 = sshll.u32 %s4, 4
          %s215 = int_to_ptr.hbm [resolvable:$true] %s214
          %s216 = sshll.u32 [#allocation4], 4
          %s217 = int_to_ptr.vmem [resolvable:$true] %s216
          %219 = dma.hbm_to_vmem [thread:$0]  %s215, 16, %s217, [#allocation5]
        $region24: #{multimodal_decoder_forward.4} parent=11 // pred_fallthru
          _
        // Predicated region
        $region25: #{multimodal_decoder_forward.4} parent=11 // pred_check
          %p220 = pneg %p150
        $region26: #{multimodal_decoder_forward.4} parent=11 // pred_check_branch
          %222 = sbr.rel (%p220) target = $region28
        $region27: #{multimodal_decoder_forward.4} parent=11 // pred_region
          _
        $region28: #{multimodal_decoder_forward.4} parent=11 // pred_fallthru
          _
      $region12: #{multimodal_decoder_forward.4} parent=5 // pred_fallthru
        _
      %p223 = scmp.lt.s32.totalorder %s14, 2
      // Predicated region
      $region29: #{multimodal_decoder_forward.4} parent=5 // pred_check
        %p224 = pneg %p223
      $region30: #{multimodal_decoder_forward.4} parent=5 // pred_check_branch
        %226 = sbr.rel (%p224) target = $region32
      $region31: #{multimodal_decoder_forward.4} parent=5 // pred_region
        // Predicated region
        $region33: #{multimodal_decoder_forward.4} parent=31 // pred_check
          %p227 = pneg %p34
        $region34: #{multimodal_decoder_forward.4} parent=31 // pred_check_branch
          %229 = sbr.rel (%p227) target = $region36
        $region35: #{multimodal_decoder_forward.4} parent=31 // pred_region
          %p230 = scmp.lt.s32.totalorder %s14, 1
          %s231 = scalar_select %p230, %s14, 1
          %s232 = smul.addr %s231, 8
          %s233 = scalar_lea.vmem %s0, %s232
        $region36: #{multimodal_decoder_forward.4} parent=31 // pred_fallthru
          _
        // Predicated region
        $region37: #{multimodal_decoder_forward.4} parent=31 // pred_check
          %p234 = pneg %p60
        $region38: #{multimodal_decoder_forward.4} parent=31 // pred_check_branch
          %236 = sbr.rel (%p234) target = $region40
        $region39: #{multimodal_decoder_forward.4} parent=31 // pred_region
          %p237 = scmp.lt.s32.totalorder %s14, 1
          %s238 = scalar_select %p237, %s14, 1
          %s239 = scalar_lea.vmem %s1, %s238
        $region40: #{multimodal_decoder_forward.4} parent=31 // pred_fallthru
          _
      $region32: #{multimodal_decoder_forward.4} parent=5 // pred_fallthru
        _
      %p240 = scmp.le.s32.totalorder 1, %s14
      %p241 = scmp.lt.s32.totalorder %s14, 3
      %p242 = pnand %p240, %p241
      %p243 = pneg %p242
      // Predicated region
      $region41: #{multimodal_decoder_forward.4} parent=5 // pred_check
        _
      $region42: #{multimodal_decoder_forward.4} parent=5 // pred_check_branch
        %245 = sbr.rel (%p242) target = $region44
      $region43: #{multimodal_decoder_forward.4} parent=5 // pred_region
        %s246 = ssub.s32 %s14, 1
        // Predicated region
        $region45: #{multimodal_decoder_forward.4} parent=43 // pred_check
          %p247 = pneg %p108
        $region46: #{multimodal_decoder_forward.4} parent=43 // pred_check_branch
          %249 = sbr.rel (%p247) target = $region48
        $region47: #{multimodal_decoder_forward.4} parent=43 // pred_region
          %251 = dma.done [#allocation3], 128
        $region48: #{multimodal_decoder_forward.4} parent=43 // pred_fallthru
          _
        // Predicated region
        $region49: #{multimodal_decoder_forward.4} parent=43 // pred_check
          %p252 = pneg %p129
        $region50: #{multimodal_decoder_forward.4} parent=43 // pred_check_branch
          %254 = sbr.rel (%p252) target = $region52
        $region51: #{multimodal_decoder_forward.4} parent=43 // pred_region
          %256 = dma.done [#allocation5], 16
        $region52: #{multimodal_decoder_forward.4} parent=43 // pred_fallthru
          _
        %p257 = scmp.lt.s32.totalorder %s19, 1
        %s258 = scalar_select %p257, %s19, 1
        %s259 = smul.addr %s258, 8
        %s260 = scalar_lea.vmem %s0, %s259
        %p261 = pneg %p40
        %p262 = pneg %p37
        %p263 = scmp.lt.s32.totalorder %s19, 1
        %s264 = scalar_select %p263, %s19, 1
        %s265 = scalar_lea.vmem %s1, %s264
        %p266 = pneg %p66
        %p267 = pneg %p63
        %p268 = pneg %p87
        %p269 = pneg %p84
        %p270 = pneg %p108
        %p271 = pneg %p105
        %p272 = pneg %p129
        %p273 = pneg %p126
        %p274 = pneg %p150
        %p275 = pneg %p147
        %p276 = pneg %p176
        %p277 = pneg %p173
        %p278 = scmp.lt.s32.totalorder %s19, 1
        %s279 = scalar_select %p278, %s19, 1
        %s280 = smul.addr %s279, 4
        %s281 = scalar_lea.vmem %s6, %s280
        %p282 = scmp.lt.s32.totalorder %s19, 1
        %s283 = scalar_select %p282, %s19, 1
        %s284 = smul.addr %s283, 8
        %s285 = scalar_lea.vmem %s0, %s284
        %p286 = scmp.lt.s32.totalorder %s19, 1
        %s287 = scalar_select %p286, %s19, 1
        %s288 = scalar_lea.vmem %s1, %s287
        %p289 = scmp.lt.s32.totalorder %s19, 1
        %s290 = scalar_select %p289, %s19, 1
        %s291 = smul.addr %s290, 4
        %s292 = scalar_lea.vmem %s6, %s291
        %v294 = vld [vmem:[%s285] sm:$0xff]
        %v295 = vpack.c.bf16 %v294, %v294
        %v296 = vld [vmem:[%s288] sm:$0x1]
        %v297 = vpack.c.bf16 %v296, %v296
        %v298 = vld [vmem:[%s2] sm:$0xf]
        %v299 = vld [vmem:[%s2 + $0x4] sm:$0xf]
        %v300 = vld [vmem:[%s2 + $0x8] sm:$0xf]
        %v301 = vld [vmem:[%s2 + $0xc] sm:$0xf]
        %v302 = vld [vmem:[#allocation2] sm:$0xf]
        %v303 = vld [vmem:[#allocation2 + $0x4] sm:$0xf]
        %v306 = vunpack.c.l.b16 %v302
        %v307 = vunpack.c.l.b16 %v303
        %v308 = vpack.c.b16 %v307, %v306
        %vm310 = vcmask 130048
        %v312 = vsel %vm310, %v297, 0
        %314 = vmatpush.bf16.msra.mxu0 0
        %315 = vmatpush.bf16.msra.mxu0 0
        %316 = vmatpush.bf16.msra.mxu0 0
        %317 = vmatpush.bf16.msra.mxu0 0
        %318 = vmatpush.bf16.msra.mxu0 0
        %319 = vmatpush.bf16.msra.mxu0 0
        %320 = vmatpush.bf16.msra.mxu0 0
        %321 = vmatpush.bf16.msra.mxu0 %v308
        %322 = vmatmul.bf16.gmra.mxu0 %v312
        %v323 = vpop.f32.mrf.mxu0
        %v324 = vadd.f32 0.0, %v323
        %v325 = vpop.f32.mrf.mxu0
        %326 = vdwg.mxu0
        %v327 = vperm.slane %v324, 0
        %v332 = vunpack.c.l.b16 %v298
        %v333 = vunpack.c.l.b16 %v299
        %v334 = vunpack.c.l.b16 %v300
        %v335 = vunpack.c.l.b16 %v301
        %v336 = vpack.c.b16 %v333, %v332
        %v337 = vpack.c.b16 %v335, %v334
        %vm340 = vcmask 261120
        %v342 = vsel %vm340, %v295, 0
        %344 = vmatpush.bf16.msra.mxu0 0
        %345 = vmatpush.bf16.msra.mxu0 0
        %346 = vmatpush.bf16.msra.mxu0 0
        %347 = vmatpush.bf16.msra.mxu0 0
        %348 = vmatpush.bf16.msra.mxu0 0
        %349 = vmatpush.bf16.msra.mxu0 0
        %350 = vmatpush.bf16.msra.mxu0 %v337
        %351 = vmatpush.bf16.msra.mxu0 %v336
        %352 = vmatmul.bf16.gmra.mxu0 %v342
        %v353 = vpop.f32.mrf.mxu0
        %v354 = vadd.f32 %v327, %v353
        %v355 = vpop.f32.mrf.mxu0
        %356 = vdwg.mxu0
        %v357 = vld [vmem:[#allocation4] sm:$0x1]
        %v359 = vperm.slane %v357, 0
        %v361 = vadd.f32 %v354, %v359
        %v362 = vmax.f32 %v361, 0.0
        %v363 = vmul.f32 %v362, 5.656854
        %v364 = vld [vmem:[%s5] sm:$0xff]
        %v365 = vadd.f32 %v363, %v364
        %v366 = vpack.c.bf16 %v365, %v365
        %vm367 = vcmask 257024
        %368 = vst.msk [vmem:[%s292] sm:$0xf] %vm367, %v366
        %p369 = scmp.lt.s32.totalorder %s19, 1
        %s370 = scalar_select %p369, %s19, 1
        %s371 = smul.addr %s370, 4
        %s372 = scalar_lea.vmem %s6, %s371
        // Predicated region
        $region53: #{multimodal_decoder_forward.4} parent=43 // pred_check
          %p373 = pneg %p173
        $region54: #{multimodal_decoder_forward.4} parent=43 // pred_check_branch
          %375 = sbr.rel (%p373) target = $region56
        $region55: #{multimodal_decoder_forward.4} parent=43 // pred_region
          _
        $region56: #{multimodal_decoder_forward.4} parent=43 // pred_fallthru
          _
      $region44: #{multimodal_decoder_forward.4} parent=5 // pred_fallthru
        _
      %p376 = scmp.le.s32.totalorder 2, %s14
      // Predicated region
      $region57: #{multimodal_decoder_forward.4} parent=5 // pred_check
        %p377 = pneg %p376
      $region58: #{multimodal_decoder_forward.4} parent=5 // pred_check_branch
        %379 = sbr.rel (%p377) target = $region60
      $region59: #{multimodal_decoder_forward.4} parent=5 // pred_region
        %s380 = ssub.s32 %s14, 2
        // Predicated region
        $region61: #{multimodal_decoder_forward.4} parent=59 // pred_check
          %p381 = pneg %p179
        $region62: #{multimodal_decoder_forward.4} parent=59 // pred_check_branch
          %383 = sbr.rel (%p381) target = $region64
        $region63: #{multimodal_decoder_forward.4} parent=59 // pred_region
          %p384 = scmp.lt.s32.totalorder %s20, 1
          %s385 = scalar_select %p384, %s20, 1
          %s386 = smul.addr %s385, 4
          %s387 = scalar_lea.vmem %s6, %s386
        $region64: #{multimodal_decoder_forward.4} parent=59 // pred_fallthru
          _
      $region60: #{multimodal_decoder_forward.4} parent=5 // pred_fallthru
        _
    $region6: #{multimodal_decoder_forward.4} parent=1 // loop_footer
      %s18 = sadd.s32 1, %s14
    $region7: #{multimodal_decoder_forward.4} parent=1 // loop_footer_branch
      %13 = sbr.rel target = $region3
    $region8: #{multimodal_decoder_forward.4} parent=1 // loop_exit
      _
    %388 = vsyncpa [#allocation3], 1
    %s389 = scalar_lea.sflag [#allocation3], 1
    %390 = vsyncpa %s389, 1
    %391 = vsyncpa [#allocation5], 1

// kernel: multimodal_decoder_forward.5
$region0: #{multimodal_decoder_forward.5}
  #allocation0 [shape = 'u32[]', space=smem, size = 0x4, offset = 0x4, fixed_abs, tag = 'smem constant byte address 0x4 - core index']
  #allocation1 [shape = 'u32[72,128]{1,0:T(1,128)}', space=vmem, size = 0x9000, scoped, tag = 'internal scratch']
  %s0 = inlined_call_operand.vmem [shape: bf16[2,8,32], index: 0, kind: input, shape index: {}]
  %s1 = inlined_call_operand.vmem [shape: bf16[2,12,32], index: 1, kind: input, shape index: {}]
  %s2 = inlined_call_operand.vmem [shape: f32[8,8], index: 2, kind: input, shape index: {}]
  %s3 = inlined_call_operand.vmem [shape: f32[1,1,8], index: 3, kind: input, shape index: {}]
  %s4 = inlined_call_operand.vmem [shape: bf16[32,96], index: 4, kind: input, shape index: {}]
  %s5 = inlined_call_operand.vmem [shape: f32[1,96], index: 5, kind: input, shape index: {}]
  %s6 = inlined_call_operand.vmem [shape: bf16[32,32], index: 6, kind: input, shape index: {}]
  %s7 = inlined_call_operand.vmem [shape: f32[1,32], index: 7, kind: input, shape index: {}]
  %s8 = inlined_call_operand.vmem [shape: f32[1,32], index: 8, kind: input, shape index: {}]
  %s9 = inlined_call_operand.vmem [shape: f32[1,32], index: 9, kind: input, shape index: {}]
  %s10 = inlined_call_operand.vmem [shape: bf16[32,32], index: 10, kind: input, shape index: {}]
  %s11 = inlined_call_operand.vmem [shape: f32[1,32], index: 11, kind: input, shape index: {}]
  %s12 = inlined_call_operand.vmem [shape: bf16[32,64], index: 12, kind: input, shape index: {}]
  %s13 = inlined_call_operand.vmem [shape: f32[1,64], index: 13, kind: input, shape index: {}]
  %s14 = inlined_call_operand.vmem [shape: bf16[32,32], index: 14, kind: input, shape index: {}]
  %s15 = inlined_call_operand.vmem [shape: f32[1,32], index: 15, kind: input, shape index: {}]
  %s16 = inlined_call_operand.vmem [shape: f32[1,32], index: 16, kind: input, shape index: {}]
  %s17 = inlined_call_operand.vmem [shape: f32[1,32], index: 17, kind: input, shape index: {}]
  %s18 = inlined_call_operand.vmem [shape: bf16[32,2048], index: 18, kind: input, shape index: {}]
  %s19 = inlined_call_operand.vmem [shape: f32[1,2048], index: 19, kind: input, shape index: {}]
  %s20 = inlined_call_operand.vmem [shape: bf16[2048,32], index: 20, kind: input, shape index: {}]
  %s21 = inlined_call_operand.vmem [shape: f32[1,32], index: 21, kind: input, shape index: {}]
  %s22 = inlined_call_operand.vmem [shape: f32[1,32], index: 22, kind: input, shape index: {}]
  %s23 = inlined_call_operand.vmem [shape: f32[1,32], index: 23, kind: input, shape index: {}]
  %s24 = inlined_call_operand.vmem [shape: bf16[2,8,32], index: 24, kind: output, shape index: {}]
  %s25 = sld [smem:[#allocation0]]
  $region129: #{multimodal_decoder_forward.5} parent=0
    _
  %s27 = ssub.s32 1, %s25
  %s28 = scalar_select 0, %s27, %s25
  loop: start=0, step=1, limit=4
  $region2: #{multimodal_decoder_forward.5} parent=0 // loop_pre_header
    _
  $region3: #{multimodal_decoder_forward.5} parent=0 // loop_header
    %s30 = sphi 0, %s34
    %p31 = scmp.ge.s32.totalorder %s30, 4
    %s40 = sphi 0, %s42
    %s43 = sphi 0, %s40
    %s44 = sphi 0, %s43
    %s60 = sphi 0, %s44
    %s66 = sphi 0, %s68
    %s69 = sphi 0, %s66
    %s70 = sphi 0, %s69
    %s86 = sphi 0, %s70
    %s90 = sphi 0, %s90
    %s92 = sphi 0, %s90
    %s93 = sphi 0, %s92
    %s107 = sphi 0, %s93
    %s111 = sphi 0, %s111
    %s113 = sphi 0, %s111
    %s114 = sphi 0, %s113
    %s128 = sphi 0, %s114
    %s132 = sphi 0, %s132
    %s134 = sphi 0, %s132
    %s135 = sphi 0, %s134
    %s149 = sphi 0, %s135
    %s153 = sphi 0, %s153
    %s155 = sphi 0, %s153
    %s156 = sphi 0, %s155
    %s170 = sphi 0, %s156
    %s174 = sphi 0, %s174
    %s176 = sphi 0, %s174
    %s177 = sphi 0, %s176
    %s191 = sphi 0, %s177
    %s195 = sphi 0, %s195
    %s197 = sphi 0, %s195
    %s198 = sphi 0, %s197
    %s212 = sphi 0, %s198
    %s216 = sphi 0, %s216
    %s218 = sphi 0, %s216
    %s219 = sphi 0, %s218
    %s233 = sphi 0, %s219
    %s237 = sphi 0, %s237
    %s239 = sphi 0, %s237
    %s240 = sphi 0, %s239
    %s254 = sphi 0, %s240
    %s258 = sphi 0, %s258
    %s260 = sphi 0, %s258
    %s261 = sphi 0, %s260
    %s275 = sphi 0, %s261
    %s279 = sphi 0, %s279
    %s281 = sphi 0, %s279
    %s282 = sphi 0, %s281
    %s296 = sphi 0, %s282
    %s300 = sphi 0, %s300
    %s302 = sphi 0, %s300
    %s303 = sphi 0, %s302
    %s317 = sphi 0, %s303
    %s321 = sphi 0, %s321
    %s323 = sphi 0, %s321
    %s324 = sphi 0, %s323
    %s338 = sphi 0, %s324
    %s342 = sphi 0, %s342
    %s344 = sphi 0, %s342
    %s345 = sphi 0, %s344
    %s359 = sphi 0, %s345
    %s363 = sphi 0, %s363
    %s365 = sphi 0, %s363
    %s366 = sphi 0, %s365
    %s380 = sphi 0, %s366
    %s384 = sphi 0, %s384
    %s386 = sphi 0, %s384
    %s387 = sphi 0, %s386
    %s401 = sphi 0, %s387
    %s405 = sphi 0, %s405
    %s407 = sphi 0, %s405
    %s408 = sphi 0, %s407
    %s422 = sphi 0, %s408
    %s426 = sphi 0, %s426
    %s428 = sphi 0, %s426
    %s429 = sphi 0, %s428
    %s443 = sphi 0, %s429
    %s447 = sphi 0, %s447
    %s449 = sphi 0, %s447
    %s450 = sphi 0, %s449
    %s464 = sphi 0, %s450
    %s468 = sphi 0, %s468
    %s470 = sphi 0, %s468
    %s471 = sphi 0, %s470
    %s485 = sphi 0, %s471
    %s489 = sphi 0, %s489
    %s491 = sphi 0, %s489
    %s492 = sphi 0, %s491
    %s506 = sphi 0, %s492
    %s510 = sphi 0, %s510
    %s512 = sphi 0, %s510
    %s513 = sphi 0, %s512
    %s527 = sphi 0, %s513
    %s531 = sphi 0, %s531
    %s533 = sphi 0, %s531
    %s534 = sphi 0, %s533
    %s548 = sphi 0, %s534
    %s554 = sphi 0, %s556
    %s557 = sphi 0, %s554
    %s558 = sphi 0, %s557
    %s574 = sphi 0, %s558
  $region4: #{multimodal_decoder_forward.5} parent=0 // loop_header_branch
    %33 = sbr.rel (%p31) target = $region8
  $region5: #{multimodal_decoder_forward.5} parent=0 // loop_body
    %s35 = ssub.s32 %s30, 1
    %s36 = ssub.s32 %s30, 2
    %s37 = sadd.s32 %s30, 1
    %s38 = ssub.s32 %s30, %s37
    %p39 = scmp.eq.s32.totalorder %s38, 0
    %s41 = sadd.s32 %s40, 1
    %s42 = scalar_select %p39, %s40, %s41
    %p45 = pneg %p39
    %p46 = scmp.eq.s32.totalorder %s30, 1
    %p47 = por %p45, %p46
    %p48 = scmp.ne.s32.totalorder %s40, %s43
    %p49 = scmp.eq.s32.totalorder %s30, 0
    %p50 = por %p48, %p49
    %p51 = scmp.ne.s32.totalorder %s40, %s43
    %p52 = scmp.eq.s32.totalorder %s35, 1
    %p53 = por %p51, %p52
    %p54 = scmp.ne.s32.totalorder %s43, %s44
    %p55 = scmp.eq.s32.totalorder %s35, 0
    %p56 = por %p54, %p55
    %p57 = scmp.ne.s32.totalorder %s43, %s44
    %p58 = scmp.eq.s32.totalorder %s36, 1
    %p59 = por %p57, %p58
    %p61 = scmp.ne.s32.totalorder %s44, %s60
    %p62 = scmp.eq.s32.totalorder %s36, 0
    %p63 = por %p61, %p62
    %s64 = ssub.s32 %s30, %s37
    %p65 = scmp.eq.s32.totalorder %s64, 0
    %s67 = sadd.s32 %s66, 1
    %s68 = scalar_select %p65, %s66, %s67
    %p71 = pneg %p65
    %p72 = scmp.eq.s32.totalorder %s30, 1
    %p73 = por %p71, %p72
    %p74 = scmp.ne.s32.totalorder %s66, %s69
    %p75 = scmp.eq.s32.totalorder %s30, 0
    %p76 = por %p74, %p75
    %p77 = scmp.ne.s32.totalorder %s66, %s69
    %p78 = scmp.eq.s32.totalorder %s35, 1
    %p79 = por %p77, %p78
    %p80 = scmp.ne.s32.totalorder %s69, %s70
    %p81 = scmp.eq.s32.totalorder %s35, 0
    %p82 = por %p80, %p81
    %p83 = scmp.ne.s32.totalorder %s69, %s70
    %p84 = scmp.eq.s32.totalorder %s36, 1
    %p85 = por %p83, %p84
    %p87 = scmp.ne.s32.totalorder %s70, %s86
    %p88 = scmp.eq.s32.totalorder %s36, 0
    %p89 = por %p87, %p88
    %s91 = sadd.s32 %s90, 1
    %p94 = scmp.eq.s32.totalorder %s30, 1
    %p95 = scmp.ne.s32.totalorder %s90, %s92
    %p96 = scmp.eq.s32.totalorder %s30, 0
    %p97 = por %p95, %p96
    %p98 = scmp.ne.s32.totalorder %s90, %s92
    %p99 = scmp.eq.s32.totalorder %s35, 1
    %p100 = por %p98, %p99
    %p101 = scmp.ne.s32.totalorder %s92, %s93
    %p102 = scmp.eq.s32.totalorder %s35, 0
    %p103 = por %p101, %p102
    %p104 = scmp.ne.s32.totalorder %s92, %s93
    %p105 = scmp.eq.s32.totalorder %s36, 1
    %p106 = por %p104, %p105
    %p108 = scmp.ne.s32.totalorder %s93, %s107
    %p109 = scmp.eq.s32.totalorder %s36, 0
    %p110 = por %p108, %p109
    %s112 = sadd.s32 %s111, 1
    %p115 = scmp.eq.s32.totalorder %s30, 1
    %p116 = scmp.ne.s32.totalorder %s111, %s113
    %p117 = scmp.eq.s32.totalorder %s30, 0
    %p118 = por %p116, %p117
    %p119 = scmp.ne.s32.totalorder %s111, %s113
    %p120 = scmp.eq.s32.totalorder %s35, 1
    %p121 = por %p119, %p120
    %p122 = scmp.ne.s32.totalorder %s113, %s114
    %p123 = scmp.eq.s32.totalorder %s35, 0
    %p124 = por %p122, %p123
    %p125 = scmp.ne.s32.totalorder %s113, %s114
    %p126 = scmp.eq.s32.totalorder %s36, 1
    %p127 = por %p125, %p126
    %p129 = scmp.ne.s32.totalorder %s114, %s128
    %p130 = scmp.eq.s32.totalorder %s36, 0
    %p131 = por %p129, %p130
    %s133 = sadd.s32 %s132, 1
    %p136 = scmp.eq.s32.totalorder %s30, 1
    %p137 = scmp.ne.s32.totalorder %s132, %s134
    %p138 = scmp.eq.s32.totalorder %s30, 0
    %p139 = por %p137, %p138
    %p140 = scmp.ne.s32.totalorder %s132, %s134
    %p141 = scmp.eq.s32.totalorder %s35, 1
    %p142 = por %p140, %p141
    %p143 = scmp.ne.s32.totalorder %s134, %s135
    %p144 = scmp.eq.s32.totalorder %s35, 0
    %p145 = por %p143, %p144
    %p146 = scmp.ne.s32.totalorder %s134, %s135
    %p147 = scmp.eq.s32.totalorder %s36, 1
    %p148 = por %p146, %p147
    %p150 = scmp.ne.s32.totalorder %s135, %s149
    %p151 = scmp.eq.s32.totalorder %s36, 0
    %p152 = por %p150, %p151
    %s154 = sadd.s32 %s153, 1
    %p157 = scmp.eq.s32.totalorder %s30, 1
    %p158 = scmp.ne.s32.totalorder %s153, %s155
    %p159 = scmp.eq.s32.totalorder %s30, 0
    %p160 = por %p158, %p159
    %p161 = scmp.ne.s32.totalorder %s153, %s155
    %p162 = scmp.eq.s32.totalorder %s35, 1
    %p163 = por %p161, %p162
    %p164 = scmp.ne.s32.totalorder %s155, %s156
    %p165 = scmp.eq.s32.totalorder %s35, 0
    %p166 = por %p164, %p165
    %p167 = scmp.ne.s32.totalorder %s155, %s156
    %p168 = scmp.eq.s32.totalorder %s36, 1
    %p169 = por %p167, %p168
    %p171 = scmp.ne.s32.totalorder %s156, %s170
    %p172 = scmp.eq.s32.totalorder %s36, 0
    %p173 = por %p171, %p172
    %s175 = sadd.s32 %s174, 1
    %p178 = scmp.eq.s32.totalorder %s30, 1
    %p179 = scmp.ne.s32.totalorder %s174, %s176
    %p180 = scmp.eq.s32.totalorder %s30, 0
    %p181 = por %p179, %p180
    %p182 = scmp.ne.s32.totalorder %s174, %s176
    %p183 = scmp.eq.s32.totalorder %s35, 1
    %p184 = por %p182, %p183
    %p185 = scmp.ne.s32.totalorder %s176, %s177
    %p186 = scmp.eq.s32.totalorder %s35, 0
    %p187 = por %p185, %p186
    %p188 = scmp.ne.s32.totalorder %s176, %s177
    %p189 = scmp.eq.s32.totalorder %s36, 1
    %p190 = por %p188, %p189
    %p192 = scmp.ne.s32.totalorder %s177, %s191
    %p193 = scmp.eq.s32.totalorder %s36, 0
    %p194 = por %p192, %p193
    %s196 = sadd.s32 %s195, 1
    %p199 = scmp.eq.s32.totalorder %s30, 1
    %p200 = scmp.ne.s32.totalorder %s195, %s197
    %p201 = scmp.eq.s32.totalorder %s30, 0
    %p202 = por %p200, %p201
    %p203 = scmp.ne.s32.totalorder %s195, %s197
    %p204 = scmp.eq.s32.totalorder %s35, 1
    %p205 = por %p203, %p204
    %p206 = scmp.ne.s32.totalorder %s197, %s198
    %p207 = scmp.eq.s32.totalorder %s35, 0
    %p208 = por %p206, %p207
    %p209 = scmp.ne.s32.totalorder %s197, %s198
    %p210 = scmp.eq.s32.totalorder %s36, 1
    %p211 = por %p209, %p210
    %p213 = scmp.ne.s32.totalorder %s198, %s212
    %p214 = scmp.eq.s32.totalorder %s36, 0
    %p215 = por %p213, %p214
    %s217 = sadd.s32 %s216, 1
    %p220 = scmp.eq.s32.totalorder %s30, 1
    %p221 = scmp.ne.s32.totalorder %s216, %s218
    %p222 = scmp.eq.s32.totalorder %s30, 0
    %p223 = por %p221, %p222
    %p224 = scmp.ne.s32.totalorder %s216, %s218
    %p225 = scmp.eq.s32.totalorder %s35, 1
    %p226 = por %p224, %p225
    %p227 = scmp.ne.s32.totalorder %s218, %s219
    %p228 = scmp.eq.s32.totalorder %s35, 0
    %p229 = por %p227, %p228
    %p230 = scmp.ne.s32.totalorder %s218, %s219
    %p231 = scmp.eq.s32.totalorder %s36, 1
    %p232 = por %p230, %p231
    %p234 = scmp.ne.s32.totalorder %s219, %s233
    %p235 = scmp.eq.s32.totalorder %s36, 0
    %p236 = por %p234, %p235
    %s238 = sadd.s32 %s237, 1
    %p241 = scmp.eq.s32.totalorder %s30, 1
    %p242 = scmp.ne.s32.totalorder %s237, %s239
    %p243 = scmp.eq.s32.totalorder %s30, 0
    %p244 = por %p242, %p243
    %p245 = scmp.ne.s32.totalorder %s237, %s239
    %p246 = scmp.eq.s32.totalorder %s35, 1
    %p247 = por %p245, %p246
    %p248 = scmp.ne.s32.totalorder %s239, %s240
    %p249 = scmp.eq.s32.totalorder %s35, 0
    %p250 = por %p248, %p249
    %p251 = scmp.ne.s32.totalorder %s239, %s240
    %p252 = scmp.eq.s32.totalorder %s36, 1
    %p253 = por %p251, %p252
    %p255 = scmp.ne.s32.totalorder %s240, %s254
    %p256 = scmp.eq.s32.totalorder %s36, 0
    %p257 = por %p255, %p256
    %s259 = sadd.s32 %s258, 1
    %p262 = scmp.eq.s32.totalorder %s30, 1
    %p263 = scmp.ne.s32.totalorder %s258, %s260
    %p264 = scmp.eq.s32.totalorder %s30, 0
    %p265 = por %p263, %p264
    %p266 = scmp.ne.s32.totalorder %s258, %s260
    %p267 = scmp.eq.s32.totalorder %s35, 1
    %p268 = por %p266, %p267
    %p269 = scmp.ne.s32.totalorder %s260, %s261
    %p270 = scmp.eq.s32.totalorder %s35, 0
    %p271 = por %p269, %p270
    %p272 = scmp.ne.s32.totalorder %s260, %s261
    %p273 = scmp.eq.s32.totalorder %s36, 1
    %p274 = por %p272, %p273
    %p276 = scmp.ne.s32.totalorder %s261, %s275
    %p277 = scmp.eq.s32.totalorder %s36, 0
    %p278 = por %p276, %p277
    %s280 = sadd.s32 %s279, 1
    %p283 = scmp.eq.s32.totalorder %s30, 1
    %p284 = scmp.ne.s32.totalorder %s279, %s281
    %p285 = scmp.eq.s32.totalorder %s30, 0
    %p286 = por %p284, %p285
    %p287 = scmp.ne.s32.totalorder %s279, %s281
    %p288 = scmp.eq.s32.totalorder %s35, 1
    %p289 = por %p287, %p288
    %p290 = scmp.ne.s32.totalorder %s281, %s282
    %p291 = scmp.eq.s32.totalorder %s35, 0
    %p292 = por %p290, %p291
    %p293 = scmp.ne.s32.totalorder %s281, %s282
    %p294 = scmp.eq.s32.totalorder %s36, 1
    %p295 = por %p293, %p294
    %p297 = scmp.ne.s32.totalorder %s282, %s296
    %p298 = scmp.eq.s32.totalorder %s36, 0
    %p299 = por %p297, %p298
    %s301 = sadd.s32 %s300, 1
    %p304 = scmp.eq.s32.totalorder %s30, 1
    %p305 = scmp.ne.s32.totalorder %s300, %s302
    %p306 = scmp.eq.s32.totalorder %s30, 0
    %p307 = por %p305, %p306
    %p308 = scmp.ne.s32.totalorder %s300, %s302
    %p309 = scmp.eq.s32.totalorder %s35, 1
    %p310 = por %p308, %p309
    %p311 = scmp.ne.s32.totalorder %s302, %s303
    %p312 = scmp.eq.s32.totalorder %s35, 0
    %p313 = por %p311, %p312
    %p314 = scmp.ne.s32.totalorder %s302, %s303
    %p315 = scmp.eq.s32.totalorder %s36, 1
    %p316 = por %p314, %p315
    %p318 = scmp.ne.s32.totalorder %s303, %s317
    %p319 = scmp.eq.s32.totalorder %s36, 0
    %p320 = por %p318, %p319
    %s322 = sadd.s32 %s321, 1
    %p325 = scmp.eq.s32.totalorder %s30, 1
    %p326 = scmp.ne.s32.totalorder %s321, %s323
    %p327 = scmp.eq.s32.totalorder %s30, 0
    %p328 = por %p326, %p327
    %p329 = scmp.ne.s32.totalorder %s321, %s323
    %p330 = scmp.eq.s32.totalorder %s35, 1
    %p331 = por %p329, %p330
    %p332 = scmp.ne.s32.totalorder %s323, %s324
    %p333 = scmp.eq.s32.totalorder %s35, 0
    %p334 = por %p332, %p333
    %p335 = scmp.ne.s32.totalorder %s323, %s324
    %p336 = scmp.eq.s32.totalorder %s36, 1
    %p337 = por %p335, %p336
    %p339 = scmp.ne.s32.totalorder %s324, %s338
    %p340 = scmp.eq.s32.totalorder %s36, 0
    %p341 = por %p339, %p340
    %s343 = sadd.s32 %s342, 1
    %p346 = scmp.eq.s32.totalorder %s30, 1
    %p347 = scmp.ne.s32.totalorder %s342, %s344
    %p348 = scmp.eq.s32.totalorder %s30, 0
    %p349 = por %p347, %p348
    %p350 = scmp.ne.s32.totalorder %s342, %s344
    %p351 = scmp.eq.s32.totalorder %s35, 1
    %p352 = por %p350, %p351
    %p353 = scmp.ne.s32.totalorder %s344, %s345
    %p354 = scmp.eq.s32.totalorder %s35, 0
    %p355 = por %p353, %p354
    %p356 = scmp.ne.s32.totalorder %s344, %s345
    %p357 = scmp.eq.s32.totalorder %s36, 1
    %p358 = por %p356, %p357
    %p360 = scmp.ne.s32.totalorder %s345, %s359
    %p361 = scmp.eq.s32.totalorder %s36, 0
    %p362 = por %p360, %p361
    %s364 = sadd.s32 %s363, 1
    %p367 = scmp.eq.s32.totalorder %s30, 1
    %p368 = scmp.ne.s32.totalorder %s363, %s365
    %p369 = scmp.eq.s32.totalorder %s30, 0
    %p370 = por %p368, %p369
    %p371 = scmp.ne.s32.totalorder %s363, %s365
    %p372 = scmp.eq.s32.totalorder %s35, 1
    %p373 = por %p371, %p372
    %p374 = scmp.ne.s32.totalorder %s365, %s366
    %p375 = scmp.eq.s32.totalorder %s35, 0
    %p376 = por %p374, %p375
    %p377 = scmp.ne.s32.totalorder %s365, %s366
    %p378 = scmp.eq.s32.totalorder %s36, 1
    %p379 = por %p377, %p378
    %p381 = scmp.ne.s32.totalorder %s366, %s380
    %p382 = scmp.eq.s32.totalorder %s36, 0
    %p383 = por %p381, %p382
    %s385 = sadd.s32 %s384, 1
    %p388 = scmp.eq.s32.totalorder %s30, 1
    %p389 = scmp.ne.s32.totalorder %s384, %s386
    %p390 = scmp.eq.s32.totalorder %s30, 0
    %p391 = por %p389, %p390
    %p392 = scmp.ne.s32.totalorder %s384, %s386
    %p393 = scmp.eq.s32.totalorder %s35, 1
    %p394 = por %p392, %p393
    %p395 = scmp.ne.s32.totalorder %s386, %s387
    %p396 = scmp.eq.s32.totalorder %s35, 0
    %p397 = por %p395, %p396
    %p398 = scmp.ne.s32.totalorder %s386, %s387
    %p399 = scmp.eq.s32.totalorder %s36, 1
    %p400 = por %p398, %p399
    %p402 = scmp.ne.s32.totalorder %s387, %s401
    %p403 = scmp.eq.s32.totalorder %s36, 0
    %p404 = por %p402, %p403
    %s406 = sadd.s32 %s405, 1
    %p409 = scmp.eq.s32.totalorder %s30, 1
    %p410 = scmp.ne.s32.totalorder %s405, %s407
    %p411 = scmp.eq.s32.totalorder %s30, 0
    %p412 = por %p410, %p411
    %p413 = scmp.ne.s32.totalorder %s405, %s407
    %p414 = scmp.eq.s32.totalorder %s35, 1
    %p415 = por %p413, %p414
    %p416 = scmp.ne.s32.totalorder %s407, %s408
    %p417 = scmp.eq.s32.totalorder %s35, 0
    %p418 = por %p416, %p417
    %p419 = scmp.ne.s32.totalorder %s407, %s408
    %p420 = scmp.eq.s32.totalorder %s36, 1
    %p421 = por %p419, %p420
    %p423 = scmp.ne.s32.totalorder %s408, %s422
    %p424 = scmp.eq.s32.totalorder %s36, 0
    %p425 = por %p423, %p424
    %s427 = sadd.s32 %s426, 1
    %p430 = scmp.eq.s32.totalorder %s30, 1
    %p431 = scmp.ne.s32.totalorder %s426, %s428
    %p432 = scmp.eq.s32.totalorder %s30, 0
    %p433 = por %p431, %p432
    %p434 = scmp.ne.s32.totalorder %s426, %s428
    %p435 = scmp.eq.s32.totalorder %s35, 1
    %p436 = por %p434, %p435
    %p437 = scmp.ne.s32.totalorder %s428, %s429
    %p438 = scmp.eq.s32.totalorder %s35, 0
    %p439 = por %p437, %p438
    %p440 = scmp.ne.s32.totalorder %s428, %s429
    %p441 = scmp.eq.s32.totalorder %s36, 1
    %p442 = por %p440, %p441
    %p444 = scmp.ne.s32.totalorder %s429, %s443
    %p445 = scmp.eq.s32.totalorder %s36, 0
    %p446 = por %p444, %p445
    %s448 = sadd.s32 %s447, 1
    %p451 = scmp.eq.s32.totalorder %s30, 1
    %p452 = scmp.ne.s32.totalorder %s447, %s449
    %p453 = scmp.eq.s32.totalorder %s30, 0
    %p454 = por %p452, %p453
    %p455 = scmp.ne.s32.totalorder %s447, %s449
    %p456 = scmp.eq.s32.totalorder %s35, 1
    %p457 = por %p455, %p456
    %p458 = scmp.ne.s32.totalorder %s449, %s450
    %p459 = scmp.eq.s32.totalorder %s35, 0
    %p460 = por %p458, %p459
    %p461 = scmp.ne.s32.totalorder %s449, %s450
    %p462 = scmp.eq.s32.totalorder %s36, 1
    %p463 = por %p461, %p462
    %p465 = scmp.ne.s32.totalorder %s450, %s464
    %p466 = scmp.eq.s32.totalorder %s36, 0
    %p467 = por %p465, %p466
    %s469 = sadd.s32 %s468, 1
    %p472 = scmp.eq.s32.totalorder %s30, 1
    %p473 = scmp.ne.s32.totalorder %s468, %s470
    %p474 = scmp.eq.s32.totalorder %s30, 0
    %p475 = por %p473, %p474
    %p476 = scmp.ne.s32.totalorder %s468, %s470
    %p477 = scmp.eq.s32.totalorder %s35, 1
    %p478 = por %p476, %p477
    %p479 = scmp.ne.s32.totalorder %s470, %s471
    %p480 = scmp.eq.s32.totalorder %s35, 0
    %p481 = por %p479, %p480
    %p482 = scmp.ne.s32.totalorder %s470, %s471
    %p483 = scmp.eq.s32.totalorder %s36, 1
    %p484 = por %p482, %p483
    %p486 = scmp.ne.s32.totalorder %s471, %s485
    %p487 = scmp.eq.s32.totalorder %s36, 0
    %p488 = por %p486, %p487
    %s490 = sadd.s32 %s489, 1
    %p493 = scmp.eq.s32.totalorder %s30, 1
    %p494 = scmp.ne.s32.totalorder %s489, %s491
    %p495 = scmp.eq.s32.totalorder %s30, 0
    %p496 = por %p494, %p495
    %p497 = scmp.ne.s32.totalorder %s489, %s491
    %p498 = scmp.eq.s32.totalorder %s35, 1
    %p499 = por %p497, %p498
    %p500 = scmp.ne.s32.totalorder %s491, %s492
    %p501 = scmp.eq.s32.totalorder %s35, 0
    %p502 = por %p500, %p501
    %p503 = scmp.ne.s32.totalorder %s491, %s492
    %p504 = scmp.eq.s32.totalorder %s36, 1
    %p505 = por %p503, %p504
    %p507 = scmp.ne.s32.totalorder %s492, %s506
    %p508 = scmp.eq.s32.totalorder %s36, 0
    %p509 = por %p507, %p508
    %s511 = sadd.s32 %s510, 1
    %p514 = scmp.eq.s32.totalorder %s30, 1
    %p515 = scmp.ne.s32.totalorder %s510, %s512
    %p516 = scmp.eq.s32.totalorder %s30, 0
    %p517 = por %p515, %p516
    %p518 = scmp.ne.s32.totalorder %s510, %s512
    %p519 = scmp.eq.s32.totalorder %s35, 1
    %p520 = por %p518, %p519
    %p521 = scmp.ne.s32.totalorder %s512, %s513
    %p522 = scmp.eq.s32.totalorder %s35, 0
    %p523 = por %p521, %p522
    %p524 = scmp.ne.s32.totalorder %s512, %s513
    %p525 = scmp.eq.s32.totalorder %s36, 1
    %p526 = por %p524, %p525
    %p528 = scmp.ne.s32.totalorder %s513, %s527
    %p529 = scmp.eq.s32.totalorder %s36, 0
    %p530 = por %p528, %p529
    %s532 = sadd.s32 %s531, 1
    %p535 = scmp.eq.s32.totalorder %s30, 1
    %p536 = scmp.ne.s32.totalorder %s531, %s533
    %p537 = scmp.eq.s32.totalorder %s30, 0
    %p538 = por %p536, %p537
    %p539 = scmp.ne.s32.totalorder %s531, %s533
    %p540 = scmp.eq.s32.totalorder %s35, 1
    %p541 = por %p539, %p540
    %p542 = scmp.ne.s32.totalorder %s533, %s534
    %p543 = scmp.eq.s32.totalorder %s35, 0
    %p544 = por %p542, %p543
    %p545 = scmp.ne.s32.totalorder %s533, %s534
    %p546 = scmp.eq.s32.totalorder %s36, 1
    %p547 = por %p545, %p546
    %p549 = scmp.ne.s32.totalorder %s534, %s548
    %p550 = scmp.eq.s32.totalorder %s36, 0
    %p551 = por %p549, %p550
    %s552 = ssub.s32 %s30, %s37
    %p553 = scmp.eq.s32.totalorder %s552, 0
    %s555 = sadd.s32 %s554, 1
    %s556 = scalar_select %p553, %s554, %s555
    %p559 = pneg %p553
    %p560 = scmp.eq.s32.totalorder %s30, 1
    %p561 = por %p559, %p560
    %p562 = scmp.ne.s32.totalorder %s554, %s557
    %p563 = scmp.eq.s32.totalorder %s30, 0
    %p564 = por %p562, %p563
    %p565 = scmp.ne.s32.totalorder %s554, %s557
    %p566 = scmp.eq.s32.totalorder %s35, 1
    %p567 = por %p565, %p566
    %p568 = scmp.ne.s32.totalorder %s557, %s558
    %p569 = scmp.eq.s32.totalorder %s35, 0
    %p570 = por %p568, %p569
    %p571 = scmp.ne.s32.totalorder %s557, %s558
    %p572 = scmp.eq.s32.totalorder %s36, 1
    %p573 = por %p571, %p572
    %p575 = scmp.ne.s32.totalorder %s558, %s574
    %p576 = scmp.eq.s32.totalorder %s36, 0
    %p577 = por %p575, %p576
    %p578 = scmp.le.s32.totalorder 1, %s30
    %p579 = scmp.lt.s32.totalorder %s30, 3
    %p580 = pnand %p578, %p579
    %p581 = pneg %p580
    // Predicated region
    $region9: #{multimodal_decoder_forward.5} parent=5 // pred_check
      _
    $region10: #{multimodal_decoder_forward.5} parent=5 // pred_check_branch
      %583 = sbr.rel (%p580) target = $region12
    $region11: #{multimodal_decoder_forward.5} parent=5 // pred_region
      %s584 = ssub.s32 %s30, 1
      // Predicated region
      $region13: #{multimodal_decoder_forward.5} parent=11 // pred_check
        %p585 = pneg %p103
      $region14: #{multimodal_decoder_forward.5} parent=11 // pred_check_branch
        %587 = sbr.rel (%p585) target = $region16
      $region15: #{multimodal_decoder_forward.5} parent=11 // pred_region
        _
      $region16: #{multimodal_decoder_forward.5} parent=11 // pred_fallthru
        _
      // Predicated region
      $region17: #{multimodal_decoder_forward.5} parent=11 // pred_check
        %p588 = pneg %p124
      $region18: #{multimodal_decoder_forward.5} parent=11 // pred_check_branch
        %590 = sbr.rel (%p588) target = $region20
      $region19: #{multimodal_decoder_forward.5} parent=11 // pred_region
        _
      $region20: #{multimodal_decoder_forward.5} parent=11 // pred_fallthru
        _
      // Predicated region
      $region21: #{multimodal_decoder_forward.5} parent=11 // pred_check
        %p591 = pneg %p145
      $region22: #{multimodal_decoder_forward.5} parent=11 // pred_check_branch
        %593 = sbr.rel (%p591) target = $region24
      $region23: #{multimodal_decoder_forward.5} parent=11 // pred_region
        _
      $region24: #{multimodal_decoder_forward.5} parent=11 // pred_fallthru
        _
      // Predicated region
      $region25: #{multimodal_decoder_forward.5} parent=11 // pred_check
        %p594 = pneg %p166
      $region26: #{multimodal_decoder_forward.5} parent=11 // pred_check_branch
        %596 = sbr.rel (%p594) target = $region28
      $region27: #{multimodal_decoder_forward.5} parent=11 // pred_region
        _
      $region28: #{multimodal_decoder_forward.5} parent=11 // pred_fallthru
        _
      // Predicated region
      $region29: #{multimodal_decoder_forward.5} parent=11 // pred_check
        %p597 = pneg %p187
      $region30: #{multimodal_decoder_forward.5} parent=11 // pred_check_branch
        %599 = sbr.rel (%p597) target = $region32
      $region31: #{multimodal_decoder_forward.5} parent=11 // pred_region
        _
      $region32: #{multimodal_decoder_forward.5} parent=11 // pred_fallthru
        _
      // Predicated region
      $region33: #{multimodal_decoder_forward.5} parent=11 // pred_check
        %p600 = pneg %p208
      $region34: #{multimodal_decoder_forward.5} parent=11 // pred_check_branch
        %602 = sbr.rel (%p600) target = $region36
      $region35: #{multimodal_decoder_forward.5} parent=11 // pred_region
        _
      $region36: #{multimodal_decoder_forward.5} parent=11 // pred_fallthru
        _
      // Predicated region
      $region37: #{multimodal_decoder_forward.5} parent=11 // pred_check
        %p603 = pneg %p229
      $region38: #{multimodal_decoder_forward.5} parent=11 // pred_check_branch
        %605 = sbr.rel (%p603) target = $region40
      $region39: #{multimodal_decoder_forward.5} parent=11 // pred_region
        _
      $region40: #{multimodal_decoder_forward.5} parent=11 // pred_fallthru
        _
      // Predicated region
      $region41: #{multimodal_decoder_forward.5} parent=11 // pred_check
        %p606 = pneg %p250
      $region42: #{multimodal_decoder_forward.5} parent=11 // pred_check_branch
        %608 = sbr.rel (%p606) target = $region44
      $region43: #{multimodal_decoder_forward.5} parent=11 // pred_region
        _
      $region44: #{multimodal_decoder_forward.5} parent=11 // pred_fallthru
        _
      // Predicated region
      $region45: #{multimodal_decoder_forward.5} parent=11 // pred_check
        %p609 = pneg %p271
      $region46: #{multimodal_decoder_forward.5} parent=11 // pred_check_branch
        %611 = sbr.rel (%p609) target = $region48
      $region47: #{multimodal_decoder_forward.5} parent=11 // pred_region
        _
      $region48: #{multimodal_decoder_forward.5} parent=11 // pred_fallthru
        _
      // Predicated region
      $region49: #{multimodal_decoder_forward.5} parent=11 // pred_check
        %p612 = pneg %p292
      $region50: #{multimodal_decoder_forward.5} parent=11 // pred_check_branch
        %614 = sbr.rel (%p612) target = $region52
      $region51: #{multimodal_decoder_forward.5} parent=11 // pred_region
        _
      $region52: #{multimodal_decoder_forward.5} parent=11 // pred_fallthru
        _
      // Predicated region
      $region53: #{multimodal_decoder_forward.5} parent=11 // pred_check
        %p615 = pneg %p313
      $region54: #{multimodal_decoder_forward.5} parent=11 // pred_check_branch
        %617 = sbr.rel (%p615) target = $region56
      $region55: #{multimodal_decoder_forward.5} parent=11 // pred_region
        _
      $region56: #{multimodal_decoder_forward.5} parent=11 // pred_fallthru
        _
      // Predicated region
      $region57: #{multimodal_decoder_forward.5} parent=11 // pred_check
        %p618 = pneg %p334
      $region58: #{multimodal_decoder_forward.5} parent=11 // pred_check_branch
        %620 = sbr.rel (%p618) target = $region60
      $region59: #{multimodal_decoder_forward.5} parent=11 // pred_region
        _
      $region60: #{multimodal_decoder_forward.5} parent=11 // pred_fallthru
        _
      // Predicated region
      $region61: #{multimodal_decoder_forward.5} parent=11 // pred_check
        %p621 = pneg %p355
      $region62: #{multimodal_decoder_forward.5} parent=11 // pred_check_branch
        %623 = sbr.rel (%p621) target = $region64
      $region63: #{multimodal_decoder_forward.5} parent=11 // pred_region
        _
      $region64: #{multimodal_decoder_forward.5} parent=11 // pred_fallthru
        _
      // Predicated region
      $region65: #{multimodal_decoder_forward.5} parent=11 // pred_check
        %p624 = pneg %p376
      $region66: #{multimodal_decoder_forward.5} parent=11 // pred_check_branch
        %626 = sbr.rel (%p624) target = $region68
      $region67: #{multimodal_decoder_forward.5} parent=11 // pred_region
        _
      $region68: #{multimodal_decoder_forward.5} parent=11 // pred_fallthru
        _
      // Predicated region
      $region69: #{multimodal_decoder_forward.5} parent=11 // pred_check
        %p627 = pneg %p397
      $region70: #{multimodal_decoder_forward.5} parent=11 // pred_check_branch
        %629 = sbr.rel (%p627) target = $region72
      $region71: #{multimodal_decoder_forward.5} parent=11 // pred_region
        _
      $region72: #{multimodal_decoder_forward.5} parent=11 // pred_fallthru
        _
      // Predicated region
      $region73: #{multimodal_decoder_forward.5} parent=11 // pred_check
        %p630 = pneg %p418
      $region74: #{multimodal_decoder_forward.5} parent=11 // pred_check_branch
        %632 = sbr.rel (%p630) target = $region76
      $region75: #{multimodal_decoder_forward.5} parent=11 // pred_region
        _
      $region76: #{multimodal_decoder_forward.5} parent=11 // pred_fallthru
        _
      // Predicated region
      $region77: #{multimodal_decoder_forward.5} parent=11 // pred_check
        %p633 = pneg %p439
      $region78: #{multimodal_decoder_forward.5} parent=11 // pred_check_branch
        %635 = sbr.rel (%p633) target = $region80
      $region79: #{multimodal_decoder_forward.5} parent=11 // pred_region
        _
      $region80: #{multimodal_decoder_forward.5} parent=11 // pred_fallthru
        _
      // Predicated region
      $region81: #{multimodal_decoder_forward.5} parent=11 // pred_check
        %p636 = pneg %p460
      $region82: #{multimodal_decoder_forward.5} parent=11 // pred_check_branch
        %638 = sbr.rel (%p636) target = $region84
      $region83: #{multimodal_decoder_forward.5} parent=11 // pred_region
        _
      $region84: #{multimodal_decoder_forward.5} parent=11 // pred_fallthru
        _
      // Predicated region
      $region85: #{multimodal_decoder_forward.5} parent=11 // pred_check
        %p639 = pneg %p481
      $region86: #{multimodal_decoder_forward.5} parent=11 // pred_check_branch
        %641 = sbr.rel (%p639) target = $region88
      $region87: #{multimodal_decoder_forward.5} parent=11 // pred_region
        _
      $region88: #{multimodal_decoder_forward.5} parent=11 // pred_fallthru
        _
      // Predicated region
      $region89: #{multimodal_decoder_forward.5} parent=11 // pred_check
        %p642 = pneg %p502
      $region90: #{multimodal_decoder_forward.5} parent=11 // pred_check_branch
        %644 = sbr.rel (%p642) target = $region92
      $region91: #{multimodal_decoder_forward.5} parent=11 // pred_region
        _
      $region92: #{multimodal_decoder_forward.5} parent=11 // pred_fallthru
        _
      // Predicated region
      $region93: #{multimodal_decoder_forward.5} parent=11 // pred_check
        %p645 = pneg %p523
      $region94: #{multimodal_decoder_forward.5} parent=11 // pred_check_branch
        %647 = sbr.rel (%p645) target = $region96
      $region95: #{multimodal_decoder_forward.5} parent=11 // pred_region
        _
      $region96: #{multimodal_decoder_forward.5} parent=11 // pred_fallthru
        _
      // Predicated region
      $region97: #{multimodal_decoder_forward.5} parent=11 // pred_check
        %p648 = pneg %p544
      $region98: #{multimodal_decoder_forward.5} parent=11 // pred_check_branch
        %650 = sbr.rel (%p648) target = $region100
      $region99: #{multimodal_decoder_forward.5} parent=11 // pred_region
        _
      $region100: #{multimodal_decoder_forward.5} parent=11 // pred_fallthru
        _
    $region12: #{multimodal_decoder_forward.5} parent=5 // pred_fallthru
      _
    %p651 = scmp.lt.s32.totalorder %s30, 2
    // Predicated region
    $region101: #{multimodal_decoder_forward.5} parent=5 // pred_check
      %p652 = pneg %p651
    $region102: #{multimodal_decoder_forward.5} parent=5 // pred_check_branch
      %654 = sbr.rel (%p652) target = $region104
    $region103: #{multimodal_decoder_forward.5} parent=5 // pred_region
      // Predicated region
      $region105: #{multimodal_decoder_forward.5} parent=103 // pred_check
        %p655 = pneg %p50
      $region106: #{multimodal_decoder_forward.5} parent=103 // pred_check_branch
        %657 = sbr.rel (%p655) target = $region108
      $region107: #{multimodal_decoder_forward.5} parent=103 // pred_region
        %p658 = scmp.lt.s32.totalorder %s30, 1
        %s659 = scalar_select %p658, %s30, 1
        %s660 = smul.addr %s659, 4
        %s661 = scalar_lea.vmem %s0, %s660
      $region108: #{multimodal_decoder_forward.5} parent=103 // pred_fallthru
        _
      // Predicated region
      $region109: #{multimodal_decoder_forward.5} parent=103 // pred_check
        %p662 = pneg %p76
      $region110: #{multimodal_decoder_forward.5} parent=103 // pred_check_branch
        %664 = sbr.rel (%p662) target = $region112
      $region111: #{multimodal_decoder_forward.5} parent=103 // pred_region
        %p665 = scmp.lt.s32.totalorder %s30, 1
        %s666 = scalar_select %p665, %s30, 1
        %s667 = smul.addr %s666, 2
        %s668 = smul.addr %s667, 4
        %s669 = scalar_lea.vmem %s1, %s668
      $region112: #{multimodal_decoder_forward.5} parent=103 // pred_fallthru
        _
    $region104: #{multimodal_decoder_forward.5} parent=5 // pred_fallthru
      _
    %p670 = scmp.le.s32.totalorder 1, %s30
    %p671 = scmp.lt.s32.totalorder %s30, 3
    %p672 = pnand %p670, %p671
    %p673 = pneg %p672
    // Predicated region
    $region113: #{multimodal_decoder_forward.5} parent=5 // pred_check
      _
    $region114: #{multimodal_decoder_forward.5} parent=5 // pred_check_branch
      %675 = sbr.rel (%p672) target = $region116
    $region115: #{multimodal_decoder_forward.5} parent=5 // pred_region
      %s676 = ssub.s32 %s30, 1
      %p677 = scmp.lt.s32.totalorder %s35, 1
      %s678 = scalar_select %p677, %s35, 1
      %s679 = smul.addr %s678, 4
      %s680 = scalar_lea.vmem %s0, %s679
      %p681 = pneg %p56
      %p682 = pneg %p53
      %p683 = scmp.lt.s32.totalorder %s35, 1
      %s684 = scalar_select %p683, %s35, 1
      %s685 = smul.addr %s684, 2
      %s686 = smul.addr %s685, 4
      %s687 = scalar_lea.vmem %s1, %s686
      %p688 = pneg %p82
      %p689 = pneg %p79
      %p690 = pneg %p103
      %p691 = pneg %p100
      %p692 = pneg %p124
      %p693 = pneg %p121
      %p694 = pneg %p145
      %p695 = pneg %p142
      %p696 = pneg %p166
      %p697 = pneg %p163
      %p698 = pneg %p187
      %p699 = pneg %p184
      %p700 = pneg %p208
      %p701 = pneg %p205
      %p702 = pneg %p229
      %p703 = pneg %p226
      %p704 = pneg %p250
      %p705 = pneg %p247
      %p706 = pneg %p271
      %p707 = pneg %p268
      %p708 = pneg %p292
      %p709 = pneg %p289
      %p710 = pneg %p313
      %p711 = pneg %p310
      %p712 = pneg %p334
      %p713 = pneg %p331
      %p714 = pneg %p355
      %p715 = pneg %p352
      %p716 = pneg %p376
      %p717 = pneg %p373
      %p718 = pneg %p397
      %p719 = pneg %p394
      %p720 = pneg %p418
      %p721 = pneg %p415
      %p722 = pneg %p439
      %p723 = pneg %p436
      %p724 = pneg %p460
      %p725 = pneg %p457
      %p726 = pneg %p481
      %p727 = pneg %p478
      %p728 = pneg %p502
      %p729 = pneg %p499
      %p730 = pneg %p523
      %p731 = pneg %p520
      %p732 = pneg %p544
      %p733 = pneg %p541
      %p734 = pneg %p570
      %p735 = pneg %p567
      %p736 = scmp.lt.s32.totalorder %s35, 1
      %s737 = scalar_select %p736, %s35, 1
      %s738 = smul.addr %s737, 4
      %s739 = scalar_lea.vmem %s24, %s738
      %p740 = scmp.lt.s32.totalorder %s35, 1
      %s741 = scalar_select %p740, %s35, 1
      %s742 = smul.addr %s741, 4
      %s743 = scalar_lea.vmem %s0, %s742
      %p744 = scmp.lt.s32.totalorder %s35, 1
      %s745 = scalar_select %p744, %s35, 1
      %s746 = smul.addr %s745, 2
      %s747 = smul.addr %s746, 4
      %s748 = scalar_lea.vmem %s1, %s747
      %p749 = scmp.lt.s32.totalorder %s35, 1
      %s750 = scalar_select %p749, %s35, 1
      %s751 = smul.addr %s750, 4
      %s752 = scalar_lea.vmem %s24, %s751
      %v754 = vld [vmem:[%s743] sm:$0xf]
      %v755 = vunpack.c.l.bf16 %v754
      %v756 = vld [vmem:[%s4] sm:$0xf]
      %v757 = vld [vmem:[%s4 + $0x4] sm:$0xf]
      %v758 = vld [vmem:[%s4 + $0x8] sm:$0xf]
      %v759 = vld [vmem:[%s4 + $0xc] sm:$0xf]
      %v760 = vld [vmem:[%s5] sm:$0x1]
      %v762 = vperm.slane %v760, 0
      %v768 = vunpack.c.l.b16 %v756
      %v769 = vunpack.c.l.b16 %v757
      %v770 = vunpack.c.l.b16 %v758
      %v771 = vunpack.c.l.b16 %v759
      %v772 = vpack.c.b16 %v769, %v768
      %v773 = vpack.c.b16 %v771, %v770
      %vm776 = vcmask 261120
      %v778 = vsel %vm776, %v754, 0
      %780 = vmatpush.bf16.msra.mxu0 0
      %781 = vmatpush.bf16.msra.mxu0 0
      %782 = vmatpush.bf16.msra.mxu0 0
      %783 = vmatpush.bf16.msra.mxu0 0
      %784 = vmatpush.bf16.msra.mxu0 0
      %785 = vmatpush.bf16.msra.mxu0 0
      %786 = vmatpush.bf16.msra.mxu0 %v773
      %787 = vmatpush.bf16.msra.mxu0 %v772
      %788 = vmatmul.bf16.gmra.mxu0 %v778
      %v789 = vpop.f32.mrf.mxu0
      %v790 = vadd.f32 %v762, %v789
      %v791 = vpop.f32.mrf.mxu0
      %792 = vdwg.mxu0
      %v793 = vld [vmem:[%s2] sm:$0xff]
      %v794 = vld [vmem:[%s3] sm:$0x1]
      %v796 = vperm.slane %v794, 0
      %v798 = vadd.f32 %v793, %v796
      %v799 = vld [vmem:[%s6] sm:$0xf]
      %v800 = vld [vmem:[%s6 + $0x4] sm:$0xf]
      %v801 = vld [vmem:[%s6 + $0x8] sm:$0xf]
      %v802 = vld [vmem:[%s6 + $0xc] sm:$0xf]
      %v803 = vpack.c.bf16 %v790, %v790
      %v805 = vunpack.c.l.b16 %v803
      %v806 = vpack.c.b16 %v805, %v805
      %807 = vrot.lane.b32.xlu0 %v806, 96
      %v808 = vpop.permute.xlu0 %807
      %vm809 = vcmask 31744
      %v811 = vsel %vm809, %v803, 0
      %v814 = vsel %vm809, %v808, 0
      %816 = vmatpush.bf16.xpose.msra.mxu0 0
      %817 = vmatpush.bf16.xpose.msra.mxu0 0
      %818 = vmatpush.bf16.xpose.msra.mxu0 0
      %819 = vmatpush.bf16.xpose.msra.mxu0 0
      %820 = vmatpush.bf16.xpose.msra.mxu0 0
      %821 = vmatpush.bf16.xpose.msra.mxu0 0
      %822 = vmatpush.bf16.xpose.msra.mxu0 0
      %823 = vmatpush.bf16.xpose.msra.mxu0 %v814
      %824 = vmatmul.bf16.gmra.mxu0 %v811
      %v825 = vpop.f32.mrf.mxu0
      %v826 = vadd.f32 %v798, %v825
      %v827 = vpop.f32.mrf.mxu0
      %828 = vdwg.mxu0
      %vm829 = vcmask 64512
      %v830 = vsel %vm829, %v826, -inf
      %831 = vmax.xlane.f32.xlu0 %v830
      %v832 = vpop.xlane.xlu0 %831
      %v833 = vsub.f32 %v826, %v832
      %v834 = vmul.f32 %v833, 1.442695
      %v835 = vpow.pop %v834
      %v836 = vsel %vm829, %v835, 0.0
      %837 = vadd.xlane.f32.xlu0 %v836
      %v838 = vpop.xlane.xlu0 %837
      %v839 = vrcp.pop %v838
      %v840 = vmul.f32 %v835, %v839
      %v841 = vpack.c.bf16 %v840, %v840
      %842 = vrot.lane.b32.xlu0 %v806, 64
      %v843 = vpop.permute.xlu0 %842
      %v845 = vsel %vm829, %v841, 0
      %vm847 = vcmask 1043456
      %v849 = vsel %vm847, %v843, 0
      %851 = vmatpush.bf16.msra.mxu0 0
      %852 = vmatpush.bf16.msra.mxu0 0
      %853 = vmatpush.bf16.msra.mxu0 0
      %854 = vmatpush.bf16.msra.mxu0 0
      %855 = vmatpush.bf16.msra.mxu0 0
      %856 = vmatpush.bf16.msra.mxu0 0
      %857 = vmatpush.bf16.msra.mxu0 0
      %858 = vmatpush.bf16.msra.mxu0 %v849
      %859 = vmatmul.bf16.gmra.mxu0 %v845
      %v860 = vpop.f32.mrf.mxu0
      %v861 = vadd.f32 0.0, %v860
      %v862 = vpop.f32.mrf.mxu0
      %863 = vdwg.mxu0
      %864 = vrot.lane.b32.xlu0 %v806, 124
      %v865 = vpop.permute.xlu0 %864
      %866 = vrot.lane.b32.xlu0 %v806, 92
      %v867 = vpop.permute.xlu0 %866
      %v869 = vsel %vm809, %v865, 0
      %v872 = vsel %vm809, %v867, 0
      %874 = vmatpush.bf16.xpose.msra.mxu0 0
      %875 = vmatpush.bf16.xpose.msra.mxu0 0
      %876 = vmatpush.bf16.xpose.msra.mxu0 0
      %877 = vmatpush.bf16.xpose.msra.mxu0 0
      %878 = vmatpush.bf16.xpose.msra.mxu0 0
      %879 = vmatpush.bf16.xpose.msra.mxu0 0
      %880 = vmatpush.bf16.xpose.msra.mxu0 0
      %881 = vmatpush.bf16.xpose.msra.mxu0 %v872
      %882 = vmatmul.bf16.gmra.mxu0 %v869
      %v883 = vpop.f32.mrf.mxu0
      %v884 = vadd.f32 %v798, %v883
      %v885 = vpop.f32.mrf.mxu0
      %886 = vdwg.mxu0
      %v887 = vsel %vm829, %v884, -inf
      %888 = vmax.xlane.f32.xlu0 %v887
      %v889 = vpop.xlane.xlu0 %888
      %v890 = vsub.f32 %v884, %v889
      %v891 = vmul.f32 %v890, 1.442695
      %v892 = vpow.pop %v891
      %v893 = vsel %vm829, %v892, 0.0
      %894 = vadd.xlane.f32.xlu0 %v893
      %v895 = vpop.xlane.xlu0 %894
      %v896 = vrcp.pop %v895
      %v897 = vmul.f32 %v892, %v896
      %v898 = vpack.c.bf16 %v897, %v897
      %899 = vrot.lane.b32.xlu0 %v806, 60
      %v900 = vpop.permute.xlu0 %899
      %v902 = vsel %vm829, %v898, 0
      %v905 = vsel %vm847, %v900, 0
      %907 = vmatpush.bf16.msra.mxu0 0
      %908 = vmatpush.bf16.msra.mxu0 0
      %909 = vmatpush.bf16.msra.mxu0 0
      %910 = vmatpush.bf16.msra.mxu0 0
      %911 = vmatpush.bf16.msra.mxu0 0
      %912 = vmatpush.bf16.msra.mxu0 0
      %913 = vmatpush.bf16.msra.mxu0 0
      %914 = vmatpush.bf16.msra.mxu0 %v905
      %915 = vmatmul.bf16.gmra.mxu0 %v902
      %v916 = vpop.f32.mrf.mxu0
      %v917 = vadd.f32 0.0, %v916
      %v918 = vpop.f32.mrf.mxu0
      %919 = vdwg.mxu0
      %920 = vrot.lane.b32.xlu0 %v806, 120
      %v921 = vpop.permute.xlu0 %920
      %922 = vrot.lane.b32.xlu0 %v806, 88
      %v923 = vpop.permute.xlu0 %922
      %v925 = vsel %vm809, %v921, 0
      %v928 = vsel %vm809, %v923, 0
      %930 = vmatpush.bf16.xpose.msra.mxu0 0
      %931 = vmatpush.bf16.xpose.msra.mxu0 0
      %932 = vmatpush.bf16.xpose.msra.mxu0 0
      %933 = vmatpush.bf16.xpose.msra.mxu0 0
      %934 = vmatpush.bf16.xpose.msra.mxu0 0
      %935 = vmatpush.bf16.xpose.msra.mxu0 0
      %936 = vmatpush.bf16.xpose.msra.mxu0 0
      %937 = vmatpush.bf16.xpose.msra.mxu0 %v928
      %938 = vmatmul.bf16.gmra.mxu0 %v925
      %v939 = vpop.f32.mrf.mxu0
      %v940 = vadd.f32 %v798, %v939
      %v941 = vpop.f32.mrf.mxu0
      %942 = vdwg.mxu0
      %v943 = vsel %vm829, %v940, -inf
      %944 = vmax.xlane.f32.xlu0 %v943
      %v945 = vpop.xlane.xlu0 %944
      %v946 = vsub.f32 %v940, %v945
      %v947 = vmul.f32 %v946, 1.442695
      %v948 = vpow.pop %v947
      %v949 = vsel %vm829, %v948, 0.0
      %950 = vadd.xlane.f32.xlu0 %v949
      %v951 = vpop.xlane.xlu0 %950
      %v952 = vrcp.pop %v951
      %v953 = vmul.f32 %v948, %v952
      %v954 = vpack.c.bf16 %v953, %v953
      %955 = vrot.lane.b32.xlu0 %v806, 56
      %v956 = vpop.permute.xlu0 %955
      %v958 = vsel %vm829, %v954, 0
      %v961 = vsel %vm847, %v956, 0
      %963 = vmatpush.bf16.msra.mxu0 0
      %964 = vmatpush.bf16.msra.mxu0 0
      %965 = vmatpush.bf16.msra.mxu0 0
      %966 = vmatpush.bf16.msra.mxu0 0
      %967 = vmatpush.bf16.msra.mxu0 0
      %968 = vmatpush.bf16.msra.mxu0 0
      %969 = vmatpush.bf16.msra.mxu0 0
      %970 = vmatpush.bf16.msra.mxu0 %v961
      %971 = vmatmul.bf16.gmra.mxu0 %v958
      %v972 = vpop.f32.mrf.mxu0
      %v973 = vadd.f32 0.0, %v972
      %v974 = vpop.f32.mrf.mxu0
      %975 = vdwg.mxu0
      %976 = vrot.lane.b32.xlu0 %v806, 116
      %v977 = vpop.permute.xlu0 %976
      %978 = vrot.lane.b32.xlu0 %v806, 84
      %v979 = vpop.permute.xlu0 %978
      %v981 = vsel %vm809, %v977, 0
      %v984 = vsel %vm809, %v979, 0
      %986 = vmatpush.bf16.xpose.msra.mxu0 0
      %987 = vmatpush.bf16.xpose.msra.mxu0 0
      %988 = vmatpush.bf16.xpose.msra.mxu0 0
      %989 = vmatpush.bf16.xpose.msra.mxu0 0
      %990 = vmatpush.bf16.xpose.msra.mxu0 0
      %991 = vmatpush.bf16.xpose.msra.mxu0 0
      %992 = vmatpush.bf16.xpose.msra.mxu0 0
      %993 = vmatpush.bf16.xpose.msra.mxu0 %v984
      %994 = vmatmul.bf16.gmra.mxu0 %v981
      %v995 = vpop.f32.mrf.mxu0
      %v996 = vadd.f32 %v798, %v995
      %v997 = vpop.f32.mrf.mxu0
      %998 = vdwg.mxu0
      %v999 = vsel %vm829, %v996, -inf
      %1000 = vmax.xlane.f32.xlu0 %v999
      %v1001 = vpop.xlane.xlu0 %1000
      %v1002 = vsub.f32 %v996, %v1001
      %v1003 = vmul.f32 %v1002, 1.442695
      %v1004 = vpow.pop %v1003
      %v1005 = vsel %vm829, %v1004, 0.0
      %1006 = vadd.xlane.f32.xlu0 %v1005
      %v1007 = vpop.xlane.xlu0 %1006
      %v1008 = vrcp.pop %v1007
      %v1009 = vmul.f32 %v1004, %v1008
      %v1010 = vpack.c.bf16 %v1009, %v1009
      %1011 = vrot.lane.b32.xlu0 %v806, 52
      %v1012 = vpop.permute.xlu0 %1011
      %v1014 = vsel %vm829, %v1010, 0
      %v1017 = vsel %vm847, %v1012, 0
      %1019 = vmatpush.bf16.msra.mxu0 0
      %1020 = vmatpush.bf16.msra.mxu0 0
      %1021 = vmatpush.bf16.msra.mxu0 0
      %1022 = vmatpush.bf16.msra.mxu0 0
      %1023 = vmatpush.bf16.msra.mxu0 0
      %1024 = vmatpush.bf16.msra.mxu0 0
      %1025 = vmatpush.bf16.msra.mxu0 0
      %1026 = vmatpush.bf16.msra.mxu0 %v1017
      %1027 = vmatmul.bf16.gmra.mxu0 %v1014
      %v1028 = vpop.f32.mrf.mxu0
      %v1029 = vadd.f32 0.0, %v1028
      %v1030 = vpop.f32.mrf.mxu0
      %1031 = vdwg.mxu0
      %1032 = vrot.lane.b32.xlu0 %v806, 112
      %v1033 = vpop.permute.xlu0 %1032
      %1034 = vrot.lane.b32.xlu0 %v806, 80
      %v1035 = vpop.permute.xlu0 %1034
      %v1037 = vsel %vm809, %v1033, 0
      %v1040 = vsel %vm809, %v1035, 0
      %1042 = vmatpush.bf16.xpose.msra.mxu0 0
      %1043 = vmatpush.bf16.xpose.msra.mxu0 0
      %1044 = vmatpush.bf16.xpose.msra.mxu0 0
      %1045 = vmatpush.bf16.xpose.msra.mxu0 0
      %1046 = vmatpush.bf16.xpose.msra.mxu0 0
      %1047 = vmatpush.bf16.xpose.msra.mxu0 0
      %1048 = vmatpush.bf16.xpose.msra.mxu0 0
      %1049 = vmatpush.bf16.xpose.msra.mxu0 %v1040
      %1050 = vmatmul.bf16.gmra.mxu0 %v1037
      %v1051 = vpop.f32.mrf.mxu0
      %v1052 = vadd.f32 %v798, %v1051
      %v1053 = vpop.f32.mrf.mxu0
      %1054 = vdwg.mxu0
      %v1055 = vsel %vm829, %v1052, -inf
      %1056 = vmax.xlane.f32.xlu0 %v1055
      %v1057 = vpop.xlane.xlu0 %1056
      %v1058 = vsub.f32 %v1052, %v1057
      %v1059 = vmul.f32 %v1058, 1.442695
      %v1060 = vpow.pop %v1059
      %v1061 = vsel %vm829, %v1060, 0.0
      %1062 = vadd.xlane.f32.xlu0 %v1061
      %v1063 = vpop.xlane.xlu0 %1062
      %v1064 = vrcp.pop %v1063
      %v1065 = vmul.f32 %v1060, %v1064
      %v1066 = vpack.c.bf16 %v1065, %v1065
      %1067 = vrot.lane.b32.xlu0 %v806, 48
      %v1068 = vpop.permute.xlu0 %1067
      %v1070 = vsel %vm829, %v1066, 0
      %v1073 = vsel %vm847, %v1068, 0
      %1075 = vmatpush.bf16.msra.mxu0 0
      %1076 = vmatpush.bf16.msra.mxu0 0
      %1077 = vmatpush.bf16.msra.mxu0 0
      %1078 = vmatpush.bf16.msra.mxu0 0
      %1079 = vmatpush.bf16.msra.mxu0 0
      %1080 = vmatpush.bf16.msra.mxu0 0
      %1081 = vmatpush.bf16.msra.mxu0 0
      %1082 = vmatpush.bf16.msra.mxu0 %v1073
      %1083 = vmatmul.bf16.gmra.mxu0 %v1070
      %v1084 = vpop.f32.mrf.mxu0
      %v1085 = vadd.f32 0.0, %v1084
      %v1086 = vpop.f32.mrf.mxu0
      %1087 = vdwg.mxu0
      %1088 = vrot.lane.b32.xlu0 %v806, 108
      %v1089 = vpop.permute.xlu0 %1088
      %1090 = vrot.lane.b32.xlu0 %v806, 76
      %v1091 = vpop.permute.xlu0 %1090
      %v1093 = vsel %vm809, %v1089, 0
      %v1096 = vsel %vm809, %v1091, 0
      %1098 = vmatpush.bf16.xpose.msra.mxu0 0
      %1099 = vmatpush.bf16.xpose.msra.mxu0 0
      %1100 = vmatpush.bf16.xpose.msra.mxu0 0
      %1101 = vmatpush.bf16.xpose.msra.mxu0 0
      %1102 = vmatpush.bf16.xpose.msra.mxu0 0
      %1103 = vmatpush.bf16.xpose.msra.mxu0 0
      %1104 = vmatpush.bf16.xpose.msra.mxu0 0
      %1105 = vmatpush.bf16.xpose.msra.mxu0 %v1096
      %1106 = vmatmul.bf16.gmra.mxu0 %v1093
      %v1107 = vpop.f32.mrf.mxu0
      %v1108 = vadd.f32 %v798, %v1107
      %v1109 = vpop.f32.mrf.mxu0
      %1110 = vdwg.mxu0
      %v1111 = vsel %vm829, %v1108, -inf
      %1112 = vmax.xlane.f32.xlu0 %v1111
      %v1113 = vpop.xlane.xlu0 %1112
      %v1114 = vsub.f32 %v1108, %v1113
      %v1115 = vmul.f32 %v1114, 1.442695
      %v1116 = vpow.pop %v1115
      %v1117 = vsel %vm829, %v1116, 0.0
      %1118 = vadd.xlane.f32.xlu0 %v1117
      %v1119 = vpop.xlane.xlu0 %1118
      %v1120 = vrcp.pop %v1119
      %v1121 = vmul.f32 %v1116, %v1120
      %v1122 = vpack.c.bf16 %v1121, %v1121
      %1123 = vrot.lane.b32.xlu0 %v806, 44
      %v1124 = vpop.permute.xlu0 %1123
      %v1126 = vsel %vm829, %v1122, 0
      %v1129 = vsel %vm847, %v1124, 0
      %1131 = vmatpush.bf16.msra.mxu0 0
      %1132 = vmatpush.bf16.msra.mxu0 0
      %1133 = vmatpush.bf16.msra.mxu0 0
      %1134 = vmatpush.bf16.msra.mxu0 0
      %1135 = vmatpush.bf16.msra.mxu0 0
      %1136 = vmatpush.bf16.msra.mxu0 0
      %1137 = vmatpush.bf16.msra.mxu0 0
      %1138 = vmatpush.bf16.msra.mxu0 %v1129
      %1139 = vmatmul.bf16.gmra.mxu0 %v1126
      %v1140 = vpop.f32.mrf.mxu0
      %v1141 = vadd.f32 0.0, %v1140
      %v1142 = vpop.f32.mrf.mxu0
      %1143 = vdwg.mxu0
      %1144 = vrot.lane.b32.xlu0 %v806, 104
      %v1145 = vpop.permute.xlu0 %1144
      %1146 = vrot.lane.b32.xlu0 %v806, 72
      %v1147 = vpop.permute.xlu0 %1146
      %v1149 = vsel %vm809, %v1145, 0
      %v1152 = vsel %vm809, %v1147, 0
      %1154 = vmatpush.bf16.xpose.msra.mxu0 0
      %1155 = vmatpush.bf16.xpose.msra.mxu0 0
      %1156 = vmatpush.bf16.xpose.msra.mxu0 0
      %1157 = vmatpush.bf16.xpose.msra.mxu0 0
      %1158 = vmatpush.bf16.xpose.msra.mxu0 0
      %1159 = vmatpush.bf16.xpose.msra.mxu0 0
      %1160 = vmatpush.bf16.xpose.msra.mxu0 0
      %1161 = vmatpush.bf16.xpose.msra.mxu0 %v1152
      %1162 = vmatmul.bf16.gmra.mxu0 %v1149
      %v1163 = vpop.f32.mrf.mxu0
      %v1164 = vadd.f32 %v798, %v1163
      %v1165 = vpop.f32.mrf.mxu0
      %1166 = vdwg.mxu0
      %v1167 = vsel %vm829, %v1164, -inf
      %1168 = vmax.xlane.f32.xlu0 %v1167
      %v1169 = vpop.xlane.xlu0 %1168
      %v1170 = vsub.f32 %v1164, %v1169
      %v1171 = vmul.f32 %v1170, 1.442695
      %v1172 = vpow.pop %v1171
      %v1173 = vsel %vm829, %v1172, 0.0
      %1174 = vadd.xlane.f32.xlu0 %v1173
      %v1175 = vpop.xlane.xlu0 %1174
      %v1176 = vrcp.pop %v1175
      %v1177 = vmul.f32 %v1172, %v1176
      %v1178 = vpack.c.bf16 %v1177, %v1177
      %1179 = vrot.lane.b32.xlu0 %v806, 40
      %v1180 = vpop.permute.xlu0 %1179
      %v1182 = vsel %vm829, %v1178, 0
      %v1185 = vsel %vm847, %v1180, 0
      %1187 = vmatpush.bf16.msra.mxu0 0
      %1188 = vmatpush.bf16.msra.mxu0 0
      %1189 = vmatpush.bf16.msra.mxu0 0
      %1190 = vmatpush.bf16.msra.mxu0 0
      %1191 = vmatpush.bf16.msra.mxu0 0
      %1192 = vmatpush.bf16.msra.mxu0 0
      %1193 = vmatpush.bf16.msra.mxu0 0
      %1194 = vmatpush.bf16.msra.mxu0 %v1185
      %1195 = vmatmul.bf16.gmra.mxu0 %v1182
      %v1196 = vpop.f32.mrf.mxu0
      %v1197 = vadd.f32 0.0, %v1196
      %v1198 = vpop.f32.mrf.mxu0
      %1199 = vdwg.mxu0
      %1200 = vrot.lane.b32.xlu0 %v806, 100
      %v1201 = vpop.permute.xlu0 %1200
      %1202 = vrot.lane.b32.xlu0 %v806, 68
      %v1203 = vpop.permute.xlu0 %1202
      %v1205 = vsel %vm809, %v1201, 0
      %v1208 = vsel %vm809, %v1203, 0
      %1210 = vmatpush.bf16.xpose.msra.mxu0 0
      %1211 = vmatpush.bf16.xpose.msra.mxu0 0
      %1212 = vmatpush.bf16.xpose.msra.mxu0 0
      %1213 = vmatpush.bf16.xpose.msra.mxu0 0
      %1214 = vmatpush.bf16.xpose.msra.mxu0 0
      %1215 = vmatpush.bf16.xpose.msra.mxu0 0
      %1216 = vmatpush.bf16.xpose.msra.mxu0 0
      %1217 = vmatpush.bf16.xpose.msra.mxu0 %v1208
      %1218 = vmatmul.bf16.gmra.mxu0 %v1205
      %v1219 = vpop.f32.mrf.mxu0
      %v1220 = vadd.f32 %v798, %v1219
      %v1221 = vpop.f32.mrf.mxu0
      %1222 = vdwg.mxu0
      %v1223 = vsel %vm829, %v1220, -inf
      %1224 = vmax.xlane.f32.xlu0 %v1223
      %v1225 = vpop.xlane.xlu0 %1224
      %v1226 = vsub.f32 %v1220, %v1225
      %v1227 = vmul.f32 %v1226, 1.442695
      %v1228 = vpow.pop %v1227
      %v1229 = vsel %vm829, %v1228, 0.0
      %1230 = vadd.xlane.f32.xlu0 %v1229
      %v1231 = vpop.xlane.xlu0 %1230
      %v1232 = vrcp.pop %v1231
      %v1233 = vmul.f32 %v1228, %v1232
      %v1234 = vpack.c.bf16 %v1233, %v1233
      %1235 = vrot.lane.b32.xlu0 %v806, 36
      %v1236 = vpop.permute.xlu0 %1235
      %v1238 = vsel %vm829, %v1234, 0
      %v1241 = vsel %vm847, %v1236, 0
      %1243 = vmatpush.bf16.msra.mxu0 0
      %1244 = vmatpush.bf16.msra.mxu0 0
      %1245 = vmatpush.bf16.msra.mxu0 0
      %1246 = vmatpush.bf16.msra.mxu0 0
      %1247 = vmatpush.bf16.msra.mxu0 0
      %1248 = vmatpush.bf16.msra.mxu0 0
      %1249 = vmatpush.bf16.msra.mxu0 0
      %1250 = vmatpush.bf16.msra.mxu0 %v1241
      %1251 = vmatmul.bf16.gmra.mxu0 %v1238
      %v1252 = vpop.f32.mrf.mxu0
      %v1253 = vadd.f32 0.0, %v1252
      %v1254 = vpop.f32.mrf.mxu0
      %1255 = vdwg.mxu0
      %1257 = vrot.lane.b32.xlu0 %v917, 4
      %v1258 = vpop.permute.xlu0 %1257
      %1261 = vrot.lane.b32.xlu0 %v973, 8
      %v1262 = vpop.permute.xlu0 %1261
      %1265 = vrot.lane.b32.xlu0 %v1029, 12
      %v1266 = vpop.permute.xlu0 %1265
      %1269 = vrot.lane.b32.xlu0 %v1085, 16
      %v1270 = vpop.permute.xlu0 %1269
      %1273 = vrot.lane.b32.xlu0 %v1141, 20
      %v1274 = vpop.permute.xlu0 %1273
      %1277 = vrot.lane.b32.xlu0 %v1197, 24
      %v1278 = vpop.permute.xlu0 %1277
      %1281 = vrot.lane.b32.xlu0 %v1253, 28
      %v1282 = vpop.permute.xlu0 %1281
      %v1284 = vsel %vm809, %v861, %v1258
      %v1285 = vsel %vm829, %v1284, %v1262
      %vm1286 = vcmask 97280
      %v1287 = vsel %vm1286, %v1285, %v1266
      %vm1288 = vcmask 130048
      %v1289 = vsel %vm1288, %v1287, %v1270
      %vm1290 = vcmask 162816
      %v1291 = vsel %vm1290, %v1289, %v1274
      %vm1292 = vcmask 195584
      %v1293 = vsel %vm1292, %v1291, %v1278
      %vm1294 = vcmask 228352
      %v1295 = vsel %vm1294, %v1293, %v1282
      %v1296 = vpack.c.bf16 %v1295, %v1295
      %v1297 = vld [vmem:[%s7] sm:$0x1]
      %v1299 = vperm.slane %v1297, 0
      %v1305 = vunpack.c.l.b16 %v799
      %v1306 = vunpack.c.l.b16 %v800
      %v1307 = vunpack.c.l.b16 %v801
      %v1308 = vunpack.c.l.b16 %v802
      %v1309 = vpack.c.b16 %v1306, %v1305
      %v1310 = vpack.c.b16 %v1308, %v1307
      %v1314 = vsel %vm776, %v1296, 0
      %1316 = vmatpush.bf16.msra.mxu0 0
      %1317 = vmatpush.bf16.msra.mxu0 0
      %1318 = vmatpush.bf16.msra.mxu0 0
      %1319 = vmatpush.bf16.msra.mxu0 0
      %1320 = vmatpush.bf16.msra.mxu0 0
      %1321 = vmatpush.bf16.msra.mxu0 0
      %1322 = vmatpush.bf16.msra.mxu0 %v1310
      %1323 = vmatpush.bf16.msra.mxu0 %v1309
      %1324 = vmatmul.bf16.gmra.mxu0 %v1314
      %v1325 = vpop.f32.mrf.mxu0
      %v1326 = vadd.f32 %v1299, %v1325
      %v1327 = vpop.f32.mrf.mxu0
      %1328 = vdwg.mxu0
      %v1329 = vadd.f32 %v755, %v1326
      %v1330 = vld [vmem:[%s8] sm:$0x1]
      %v1331 = vld [vmem:[%s9] sm:$0x1]
      %v1332 = vsel %vm776, %v1329, 0.0
      %1333 = vadd.xlane.f32.xlu0 %v1332
      %v1334 = vpop.xlane.xlu0 %1333
      %v1335 = vrcp.pop 32.0
      %v1336 = vmul.f32 32.0, %v1335
      %v1337 = vsub.f32 1.0, %v1336
      %v1338 = vmul.f32 %v1335, %v1337
      %v1339 = vadd.f32 %v1335, %v1338
      %vm1340 = vweird.f32 %v1335
      %v1341 = vsel %vm1340, %v1335, %v1339
      %v1342 = vmul.f32 %v1334, %v1341
      %v1343 = vsub.f32 %v1329, %v1342
      %v1344 = vmul.f32 %v1343, %v1343
      %v1345 = vsel %vm776, %v1344, 0.0
      %1346 = vadd.xlane.f32.xlu0 %v1345
      %v1347 = vpop.xlane.xlu0 %1346
      %v1348 = vmul.f32 %v1347, %v1341
      %v1349 = vadd.f32 %v1348, 1e-05
      %v1350 = vrsqrt.pop %v1349
      %v1351 = vmul.f32 %v1350, %v1349
      %v1352 = vmul.f32 %v1351, %v1350
      %v1353 = vmul.f32 0.5, %v1352
      %v1354 = vsub.f32 1.5, %v1353
      %v1355 = vmul.f32 %v1350, %v1354
      %vm1356 = vweird.f32 %v1349
      %vm1357 = vweird.f32 %v1350
      %vm1358 = vmor %vm1356, %vm1357
      %v1359 = vsel %vm1358, %v1350, %v1355
      %v1360 = vmul.f32 %v1343, %v1359
      %v1362 = vperm.slane %v1330, 0
      %v1364 = vmul.f32 %v1360, %v1362
      %v1366 = vperm.slane %v1331, 0
      %v1368 = vadd.f32 %v1364, %v1366
      %v1369 = vld [vmem:[%s748] sm:$0xf]
      %v1370 = vld [vmem:[%s748 + $0x4] sm:$0x3]
      %v1371 = vpack.c.bf16 %v1368, %v1368
      %v1372 = vld [vmem:[%s10] sm:$0xf]
      %v1373 = vld [vmem:[%s10 + $0x4] sm:$0xf]
      %v1374 = vld [vmem:[%s10 + $0x8] sm:$0xf]
      %v1375 = vld [vmem:[%s10 + $0xc] sm:$0xf]
      %v1376 = vld [vmem:[%s11] sm:$0x1]
      %v1378 = vperm.slane %v1376, 0
      %v1384 = vunpack.c.l.b16 %v1372
      %v1385 = vunpack.c.l.b16 %v1373
      %v1386 = vunpack.c.l.b16 %v1374
      %v1387 = vunpack.c.l.b16 %v1375
      %v1388 = vpack.c.b16 %v1385, %v1384
      %v1389 = vpack.c.b16 %v1387, %v1386
      %v1393 = vsel %vm776, %v1371, 0
      %1395 = vmatpush.bf16.msra.mxu0 0
      %1396 = vmatpush.bf16.msra.mxu0 0
      %1397 = vmatpush.bf16.msra.mxu0 0
      %1398 = vmatpush.bf16.msra.mxu0 0
      %1399 = vmatpush.bf16.msra.mxu0 0
      %1400 = vmatpush.bf16.msra.mxu0 0
      %1401 = vmatpush.bf16.msra.mxu0 %v1389
      %1402 = vmatpush.bf16.msra.mxu0 %v1388
      %1403 = vmatmul.bf16.gmra.mxu0 %v1393
      %v1404 = vpop.f32.mrf.mxu0
      %v1405 = vadd.f32 %v1378, %v1404
      %v1406 = vpop.f32.mrf.mxu0
      %1407 = vdwg.mxu0
      %v1408 = vld [vmem:[%s12] sm:$0xf]
      %v1409 = vld [vmem:[%s12 + $0x4] sm:$0xf]
      %v1410 = vld [vmem:[%s12 + $0x8] sm:$0xf]
      %v1411 = vld [vmem:[%s12 + $0xc] sm:$0xf]
      %v1412 = vld [vmem:[%s13] sm:$0x1]
      %v1414 = vperm.slane %v1412, 0
      %v1418 = vunpack.c.l.b16 %v1369
      %v1419 = vunpack.c.l.b16 %v1370
      %v1420 = vpack.c.b16 %v1419, %v1418
      %v1425 = vunpack.c.l.b16 %v1408
      %v1426 = vunpack.c.l.b16 %v1409
      %v1427 = vunpack.c.l.b16 %v1410
      %v1428 = vunpack.c.l.b16 %v1411
      %v1429 = vpack.c.b16 %v1426, %v1425
      %v1430 = vpack.c.b16 %v1428, %v1427
      %v1434 = vsel %vm776, %v1420, 0
      %1436 = vmatpush.bf16.msra.mxu0 0
      %1437 = vmatpush.bf16.msra.mxu0 0
      %1438 = vmatpush.bf16.msra.mxu0 0
      %1439 = vmatpush.bf16.msra.mxu0 0
      %1440 = vmatpush.bf16.msra.mxu0 0
      %1441 = vmatpush.bf16.msra.mxu0 0
      %1442 = vmatpush.bf16.msra.mxu0 %v1430
      %1443 = vmatpush.bf16.msra.mxu0 %v1429
      %1444 = vmatmul.bf16.gmra.mxu0 %v1434
      %v1445 = vpop.f32.mrf.mxu0
      %v1446 = vadd.f32 %v1414, %v1445
      %v1447 = vpop.f32.mrf.mxu0
      %v1448 = vadd.f32 %v1414, %v1447
      %1449 = vdwg.mxu0
      %v1450 = vld [vmem:[%s14] sm:$0xf]
      %v1451 = vld [vmem:[%s14 + $0x4] sm:$0xf]
      %v1452 = vld [vmem:[%s14 + $0x8] sm:$0xf]
      %v1453 = vld [vmem:[%s14 + $0xc] sm:$0xf]
      %v1454 = vpack.c.bf16 %v1405, %v1405
      %v1455 = vpack.c.bf16 %v1446, %v1446
      %v1456 = vpack.c.bf16 %v1448, %v1448
      %v1459 = vunpack.c.l.b16 %v1455
      %v1460 = vunpack.c.l.b16 %v1456
      %v1461 = vpack.c.b16 %v1460, %v1459
      %v1463 = vsel %vm809, %v1454, 0
      %v1466 = vsel %vm809, %v1461, 0
      %1468 = vmatpush.bf16.xpose.msra.mxu0 0
      %1469 = vmatpush.bf16.xpose.msra.mxu0 0
      %1470 = vmatpush.bf16.xpose.msra.mxu0 0
      %1471 = vmatpush.bf16.xpose.msra.mxu0 0
      %1472 = vmatpush.bf16.xpose.msra.mxu0 0
      %1473 = vmatpush.bf16.xpose.msra.mxu0 0
      %1474 = vmatpush.bf16.xpose.msra.mxu0 0
      %1475 = vmatpush.bf16.xpose.msra.mxu0 %v1466
      %1476 = vmatmul.bf16.gmra.mxu0 %v1463
      %v1477 = vpop.f32.mrf.mxu0
      %v1478 = vadd.f32 0.0, %v1477
      %v1479 = vpop.f32.mrf.mxu0
      %1480 = vdwg.mxu0
      %v1481 = vsel %vm1286, %v1478, -inf
      %1482 = vmax.xlane.f32.xlu0 %v1481
      %v1483 = vpop.xlane.xlu0 %1482
      %v1484 = vsub.f32 %v1478, %v1483
      %v1485 = vmul.f32 %v1484, 1.442695
      %v1486 = vpow.pop %v1485
      %v1487 = vsel %vm1286, %v1486, 0.0
      %1488 = vadd.xlane.f32.xlu0 %v1487
      %v1489 = vpop.xlane.xlu0 %1488
      %v1490 = vrcp.pop %v1489
      %v1491 = vmul.f32 %v1486, %v1490
      %v1492 = vpack.c.bf16 %v1491, %v1491
      %1493 = vrot.lane.b32.xlu0 %v1461, 96
      %v1494 = vpop.permute.xlu0 %1493
      %v1496 = vsel %vm1286, %v1492, 0
      %vm1498 = vcmask 1045504
      %v1500 = vsel %vm1498, %v1494, 0
      %1502 = vmatpush.bf16.msra.mxu0 0
      %1503 = vmatpush.bf16.msra.mxu0 0
      %1504 = vmatpush.bf16.msra.mxu0 0
      %1505 = vmatpush.bf16.msra.mxu0 0
      %1506 = vmatpush.bf16.msra.mxu0 0
      %1507 = vmatpush.bf16.msra.mxu0 0
      %1508 = vmatpush.bf16.msra.mxu0 0
      %1509 = vmatpush.bf16.msra.mxu0 %v1500
      %1510 = vmatmul.bf16.gmra.mxu0 %v1496
      %v1511 = vpop.f32.mrf.mxu0
      %v1512 = vadd.f32 0.0, %v1511
      %v1513 = vpop.f32.mrf.mxu0
      %1514 = vdwg.mxu0
      %v1516 = vunpack.c.l.b16 %v1454
      %v1517 = vpack.c.b16 %v1516, %v1516
      %1518 = vrot.lane.b32.xlu0 %v1517, 124
      %v1519 = vpop.permute.xlu0 %1518
      %1520 = vrot.lane.b32.xlu0 %v1461, 124
      %v1521 = vpop.permute.xlu0 %1520
      %v1523 = vsel %vm809, %v1519, 0
      %v1526 = vsel %vm809, %v1521, 0
      %1528 = vmatpush.bf16.xpose.msra.mxu0 0
      %1529 = vmatpush.bf16.xpose.msra.mxu0 0
      %1530 = vmatpush.bf16.xpose.msra.mxu0 0
      %1531 = vmatpush.bf16.xpose.msra.mxu0 0
      %1532 = vmatpush.bf16.xpose.msra.mxu0 0
      %1533 = vmatpush.bf16.xpose.msra.mxu0 0
      %1534 = vmatpush.bf16.xpose.msra.mxu0 0
      %1535 = vmatpush.bf16.xpose.msra.mxu0 %v1526
      %1536 = vmatmul.bf16.gmra.mxu0 %v1523
      %v1537 = vpop.f32.mrf.mxu0
      %v1538 = vadd.f32 0.0, %v1537
      %v1539 = vpop.f32.mrf.mxu0
      %1540 = vdwg.mxu0
      %v1541 = vsel %vm1286, %v1538, -inf
      %1542 = vmax.xlane.f32.xlu0 %v1541
      %v1543 = vpop.xlane.xlu0 %1542
      %v1544 = vsub.f32 %v1538, %v1543
      %v1545 = vmul.f32 %v1544, 1.442695
      %v1546 = vpow.pop %v1545
      %v1547 = vsel %vm1286, %v1546, 0.0
      %1548 = vadd.xlane.f32.xlu0 %v1547
      %v1549 = vpop.xlane.xlu0 %1548
      %v1550 = vrcp.pop %v1549
      %v1551 = vmul.f32 %v1546, %v1550
      %v1552 = vpack.c.bf16 %v1551, %v1551
      %1553 = vrot.lane.b32.xlu0 %v1461, 92
      %v1554 = vpop.permute.xlu0 %1553
      %v1556 = vsel %vm1286, %v1552, 0
      %v1559 = vsel %vm1498, %v1554, 0
      %1561 = vmatpush.bf16.msra.mxu0 0
      %1562 = vmatpush.bf16.msra.mxu0 0
      %1563 = vmatpush.bf16.msra.mxu0 0
      %1564 = vmatpush.bf16.msra.mxu0 0
      %1565 = vmatpush.bf16.msra.mxu0 0
      %1566 = vmatpush.bf16.msra.mxu0 0
      %1567 = vmatpush.bf16.msra.mxu0 0
      %1568 = vmatpush.bf16.msra.mxu0 %v1559
      %1569 = vmatmul.bf16.gmra.mxu0 %v1556
      %v1570 = vpop.f32.mrf.mxu0
      %v1571 = vadd.f32 0.0, %v1570
      %v1572 = vpop.f32.mrf.mxu0
      %1573 = vdwg.mxu0
      %1574 = vrot.lane.b32.xlu0 %v1517, 120
      %v1575 = vpop.permute.xlu0 %1574
      %1576 = vrot.lane.b32.xlu0 %v1461, 120
      %v1577 = vpop.permute.xlu0 %1576
      %v1579 = vsel %vm809, %v1575, 0
      %v1582 = vsel %vm809, %v1577, 0
      %1584 = vmatpush.bf16.xpose.msra.mxu0 0
      %1585 = vmatpush.bf16.xpose.msra.mxu0 0
      %1586 = vmatpush.bf16.xpose.msra.mxu0 0
      %1587 = vmatpush.bf16.xpose.msra.mxu0 0
      %1588 = vmatpush.bf16.xpose.msra.mxu0 0
      %1589 = vmatpush.bf16.xpose.msra.mxu0 0
      %1590 = vmatpush.bf16.xpose.msra.mxu0 0
      %1591 = vmatpush.bf16.xpose.msra.mxu0 %v1582
      %1592 = vmatmul.bf16.gmra.mxu0 %v1579
      %v1593 = vpop.f32.mrf.mxu0
      %v1594 = vadd.f32 0.0, %v1593
      %v1595 = vpop.f32.mrf.mxu0
      %1596 = vdwg.mxu0
      %v1597 = vsel %vm1286, %v1594, -inf
      %1598 = vmax.xlane.f32.xlu0 %v1597
      %v1599 = vpop.xlane.xlu0 %1598
      %v1600 = vsub.f32 %v1594, %v1599
      %v1601 = vmul.f32 %v1600, 1.442695
      %v1602 = vpow.pop %v1601
      %v1603 = vsel %vm1286, %v1602, 0.0
      %1604 = vadd.xlane.f32.xlu0 %v1603
      %v1605 = vpop.xlane.xlu0 %1604
      %v1606 = vrcp.pop %v1605
      %v1607 = vmul.f32 %v1602, %v1606
      %v1608 = vpack.c.bf16 %v1607, %v1607
      %1609 = vrot.lane.b32.xlu0 %v1461, 88
      %v1610 = vpop.permute.xlu0 %1609
      %v1612 = vsel %vm1286, %v1608, 0
      %v1615 = vsel %vm1498, %v1610, 0
      %1617 = vmatpush.bf16.msra.mxu0 0
      %1618 = vmatpush.bf16.msra.mxu0 0
      %1619 = vmatpush.bf16.msra.mxu0 0
      %1620 = vmatpush.bf16.msra.mxu0 0
      %1621 = vmatpush.bf16.msra.mxu0 0
      %1622 = vmatpush.bf16.msra.mxu0 0
      %1623 = vmatpush.bf16.msra.mxu0 0
      %1624 = vmatpush.bf16.msra.mxu0 %v1615
      %1625 = vmatmul.bf16.gmra.mxu0 %v1612
      %v1626 = vpop.f32.mrf.mxu0
      %v1627 = vadd.f32 0.0, %v1626
      %v1628 = vpop.f32.mrf.mxu0
      %1629 = vdwg.mxu0
      %1630 = vrot.lane.b32.xlu0 %v1517, 116
      %v1631 = vpop.permute.xlu0 %1630
      %1632 = vrot.lane.b32.xlu0 %v1461, 116
      %v1633 = vpop.permute.xlu0 %1632
      %v1635 = vsel %vm809, %v1631, 0
      %v1638 = vsel %vm809, %v1633, 0
      %1640 = vmatpush.bf16.xpose.msra.mxu0 0
      %1641 = vmatpush.bf16.xpose.msra.mxu0 0
      %1642 = vmatpush.bf16.xpose.msra.mxu0 0
      %1643 = vmatpush.bf16.xpose.msra.mxu0 0
      %1644 = vmatpush.bf16.xpose.msra.mxu0 0
      %1645 = vmatpush.bf16.xpose.msra.mxu0 0
      %1646 = vmatpush.bf16.xpose.msra.mxu0 0
      %1647 = vmatpush.bf16.xpose.msra.mxu0 %v1638
      %1648 = vmatmul.bf16.gmra.mxu0 %v1635
      %v1649 = vpop.f32.mrf.mxu0
      %v1650 = vadd.f32 0.0, %v1649
      %v1651 = vpop.f32.mrf.mxu0
      %1652 = vdwg.mxu0
      %v1653 = vsel %vm1286, %v1650, -inf
      %1654 = vmax.xlane.f32.xlu0 %v1653
      %v1655 = vpop.xlane.xlu0 %1654
      %v1656 = vsub.f32 %v1650, %v1655
      %v1657 = vmul.f32 %v1656, 1.442695
      %v1658 = vpow.pop %v1657
      %v1659 = vsel %vm1286, %v1658, 0.0
      %1660 = vadd.xlane.f32.xlu0 %v1659
      %v1661 = vpop.xlane.xlu0 %1660
      %v1662 = vrcp.pop %v1661
      %v1663 = vmul.f32 %v1658, %v1662
      %v1664 = vpack.c.bf16 %v1663, %v1663
      %1665 = vrot.lane.b32.xlu0 %v1461, 84
      %v1666 = vpop.permute.xlu0 %1665
      %v1668 = vsel %vm1286, %v1664, 0
      %v1671 = vsel %vm1498, %v1666, 0
      %1673 = vmatpush.bf16.msra.mxu0 0
      %1674 = vmatpush.bf16.msra.mxu0 0
      %1675 = vmatpush.bf16.msra.mxu0 0
      %1676 = vmatpush.bf16.msra.mxu0 0
      %1677 = vmatpush.bf16.msra.mxu0 0
      %1678 = vmatpush.bf16.msra.mxu0 0
      %1679 = vmatpush.bf16.msra.mxu0 0
      %1680 = vmatpush.bf16.msra.mxu0 %v1671
      %1681 = vmatmul.bf16.gmra.mxu0 %v1668
      %v1682 = vpop.f32.mrf.mxu0
      %v1683 = vadd.f32 0.0, %v1682
      %v1684 = vpop.f32.mrf.mxu0
      %1685 = vdwg.mxu0
      %1686 = vrot.lane.b32.xlu0 %v1517, 112
      %v1687 = vpop.permute.xlu0 %1686
      %1688 = vrot.lane.b32.xlu0 %v1461, 112
      %v1689 = vpop.permute.xlu0 %1688
      %v1691 = vsel %vm809, %v1687, 0
      %v1694 = vsel %vm809, %v1689, 0
      %1696 = vmatpush.bf16.xpose.msra.mxu0 0
      %1697 = vmatpush.bf16.xpose.msra.mxu0 0
      %1698 = vmatpush.bf16.xpose.msra.mxu0 0
      %1699 = vmatpush.bf16.xpose.msra.mxu0 0
      %1700 = vmatpush.bf16.xpose.msra.mxu0 0
      %1701 = vmatpush.bf16.xpose.msra.mxu0 0
      %1702 = vmatpush.bf16.xpose.msra.mxu0 0
      %1703 = vmatpush.bf16.xpose.msra.mxu0 %v1694
      %1704 = vmatmul.bf16.gmra.mxu0 %v1691
      %v1705 = vpop.f32.mrf.mxu0
      %v1706 = vadd.f32 0.0, %v1705
      %v1707 = vpop.f32.mrf.mxu0
      %1708 = vdwg.mxu0
      %v1709 = vsel %vm1286, %v1706, -inf
      %1710 = vmax.xlane.f32.xlu0 %v1709
      %v1711 = vpop.xlane.xlu0 %1710
      %v1712 = vsub.f32 %v1706, %v1711
      %v1713 = vmul.f32 %v1712, 1.442695
      %v1714 = vpow.pop %v1713
      %v1715 = vsel %vm1286, %v1714, 0.0
      %1716 = vadd.xlane.f32.xlu0 %v1715
      %v1717 = vpop.xlane.xlu0 %1716
      %v1718 = vrcp.pop %v1717
      %v1719 = vmul.f32 %v1714, %v1718
      %v1720 = vpack.c.bf16 %v1719, %v1719
      %1721 = vrot.lane.b32.xlu0 %v1461, 80
      %v1722 = vpop.permute.xlu0 %1721
      %v1724 = vsel %vm1286, %v1720, 0
      %v1727 = vsel %vm1498, %v1722, 0
      %1729 = vmatpush.bf16.msra.mxu0 0
      %1730 = vmatpush.bf16.msra.mxu0 0
      %1731 = vmatpush.bf16.msra.mxu0 0
      %1732 = vmatpush.bf16.msra.mxu0 0
      %1733 = vmatpush.bf16.msra.mxu0 0
      %1734 = vmatpush.bf16.msra.mxu0 0
      %1735 = vmatpush.bf16.msra.mxu0 0
      %1736 = vmatpush.bf16.msra.mxu0 %v1727
      %1737 = vmatmul.bf16.gmra.mxu0 %v1724
      %v1738 = vpop.f32.mrf.mxu0
      %v1739 = vadd.f32 0.0, %v1738
      %v1740 = vpop.f32.mrf.mxu0
      %1741 = vdwg.mxu0
      %1742 = vrot.lane.b32.xlu0 %v1517, 108
      %v1743 = vpop.permute.xlu0 %1742
      %1744 = vrot.lane.b32.xlu0 %v1461, 108
      %v1745 = vpop.permute.xlu0 %1744
      %v1747 = vsel %vm809, %v1743, 0
      %v1750 = vsel %vm809, %v1745, 0
      %1752 = vmatpush.bf16.xpose.msra.mxu0 0
      %1753 = vmatpush.bf16.xpose.msra.mxu0 0
      %1754 = vmatpush.bf16.xpose.msra.mxu0 0
      %1755 = vmatpush.bf16.xpose.msra.mxu0 0
      %1756 = vmatpush.bf16.xpose.msra.mxu0 0
      %1757 = vmatpush.bf16.xpose.msra.mxu0 0
      %1758 = vmatpush.bf16.xpose.msra.mxu0 0
      %1759 = vmatpush.bf16.xpose.msra.mxu0 %v1750
      %1760 = vmatmul.bf16.gmra.mxu0 %v1747
      %v1761 = vpop.f32.mrf.mxu0
      %v1762 = vadd.f32 0.0, %v1761
      %v1763 = vpop.f32.mrf.mxu0
      %1764 = vdwg.mxu0
      %v1765 = vsel %vm1286, %v1762, -inf
      %1766 = vmax.xlane.f32.xlu0 %v1765
      %v1767 = vpop.xlane.xlu0 %1766
      %v1768 = vsub.f32 %v1762, %v1767
      %v1769 = vmul.f32 %v1768, 1.442695
      %v1770 = vpow.pop %v1769
      %v1771 = vsel %vm1286, %v1770, 0.0
      %1772 = vadd.xlane.f32.xlu0 %v1771
      %v1773 = vpop.xlane.xlu0 %1772
      %v1774 = vrcp.pop %v1773
      %v1775 = vmul.f32 %v1770, %v1774
      %v1776 = vpack.c.bf16 %v1775, %v1775
      %1777 = vrot.lane.b32.xlu0 %v1461, 76
      %v1778 = vpop.permute.xlu0 %1777
      %v1780 = vsel %vm1286, %v1776, 0
      %v1783 = vsel %vm1498, %v1778, 0
      %1785 = vmatpush.bf16.msra.mxu0 0
      %1786 = vmatpush.bf16.msra.mxu0 0
      %1787 = vmatpush.bf16.msra.mxu0 0
      %1788 = vmatpush.bf16.msra.mxu0 0
      %1789 = vmatpush.bf16.msra.mxu0 0
      %1790 = vmatpush.bf16.msra.mxu0 0
      %1791 = vmatpush.bf16.msra.mxu0 0
      %1792 = vmatpush.bf16.msra.mxu0 %v1783
      %1793 = vmatmul.bf16.gmra.mxu0 %v1780
      %v1794 = vpop.f32.mrf.mxu0
      %v1795 = vadd.f32 0.0, %v1794
      %v1796 = vpop.f32.mrf.mxu0
      %1797 = vdwg.mxu0
      %1798 = vrot.lane.b32.xlu0 %v1517, 104
      %v1799 = vpop.permute.xlu0 %1798
      %1800 = vrot.lane.b32.xlu0 %v1461, 104
      %v1801 = vpop.permute.xlu0 %1800
      %v1803 = vsel %vm809, %v1799, 0
      %v1806 = vsel %vm809, %v1801, 0
      %1808 = vmatpush.bf16.xpose.msra.mxu0 0
      %1809 = vmatpush.bf16.xpose.msra.mxu0 0
      %1810 = vmatpush.bf16.xpose.msra.mxu0 0
      %1811 = vmatpush.bf16.xpose.msra.mxu0 0
      %1812 = vmatpush.bf16.xpose.msra.mxu0 0
      %1813 = vmatpush.bf16.xpose.msra.mxu0 0
      %1814 = vmatpush.bf16.xpose.msra.mxu0 0
      %1815 = vmatpush.bf16.xpose.msra.mxu0 %v1806
      %1816 = vmatmul.bf16.gmra.mxu0 %v1803
      %v1817 = vpop.f32.mrf.mxu0
      %v1818 = vadd.f32 0.0, %v1817
      %v1819 = vpop.f32.mrf.mxu0
      %1820 = vdwg.mxu0
      %v1821 = vsel %vm1286, %v1818, -inf
      %1822 = vmax.xlane.f32.xlu0 %v1821
      %v1823 = vpop.xlane.xlu0 %1822
      %v1824 = vsub.f32 %v1818, %v1823
      %v1825 = vmul.f32 %v1824, 1.442695
      %v1826 = vpow.pop %v1825
      %v1827 = vsel %vm1286, %v1826, 0.0
      %1828 = vadd.xlane.f32.xlu0 %v1827
      %v1829 = vpop.xlane.xlu0 %1828
      %v1830 = vrcp.pop %v1829
      %v1831 = vmul.f32 %v1826, %v1830
      %v1832 = vpack.c.bf16 %v1831, %v1831
      %1833 = vrot.lane.b32.xlu0 %v1461, 72
      %v1834 = vpop.permute.xlu0 %1833
      %v1836 = vsel %vm1286, %v1832, 0
      %v1839 = vsel %vm1498, %v1834, 0
      %1841 = vmatpush.bf16.msra.mxu0 0
      %1842 = vmatpush.bf16.msra.mxu0 0
      %1843 = vmatpush.bf16.msra.mxu0 0
      %1844 = vmatpush.bf16.msra.mxu0 0
      %1845 = vmatpush.bf16.msra.mxu0 0
      %1846 = vmatpush.bf16.msra.mxu0 0
      %1847 = vmatpush.bf16.msra.mxu0 0
      %1848 = vmatpush.bf16.msra.mxu0 %v1839
      %1849 = vmatmul.bf16.gmra.mxu0 %v1836
      %v1850 = vpop.f32.mrf.mxu0
      %v1851 = vadd.f32 0.0, %v1850
      %v1852 = vpop.f32.mrf.mxu0
      %1853 = vdwg.mxu0
      %1854 = vrot.lane.b32.xlu0 %v1517, 100
      %v1855 = vpop.permute.xlu0 %1854
      %1856 = vrot.lane.b32.xlu0 %v1461, 100
      %v1857 = vpop.permute.xlu0 %1856
      %v1859 = vsel %vm809, %v1855, 0
      %v1862 = vsel %vm809, %v1857, 0
      %1864 = vmatpush.bf16.xpose.msra.mxu0 0
      %1865 = vmatpush.bf16.xpose.msra.mxu0 0
      %1866 = vmatpush.bf16.xpose.msra.mxu0 0
      %1867 = vmatpush.bf16.xpose.msra.mxu0 0
      %1868 = vmatpush.bf16.xpose.msra.mxu0 0
      %1869 = vmatpush.bf16.xpose.msra.mxu0 0
      %1870 = vmatpush.bf16.xpose.msra.mxu0 0
      %1871 = vmatpush.bf16.xpose.msra.mxu0 %v1862
      %1872 = vmatmul.bf16.gmra.mxu0 %v1859
      %v1873 = vpop.f32.mrf.mxu0
      %v1874 = vadd.f32 0.0, %v1873
      %v1875 = vpop.f32.mrf.mxu0
      %1876 = vdwg.mxu0
      %v1877 = vsel %vm1286, %v1874, -inf
      %1878 = vmax.xlane.f32.xlu0 %v1877
      %v1879 = vpop.xlane.xlu0 %1878
      %v1880 = vsub.f32 %v1874, %v1879
      %v1881 = vmul.f32 %v1880, 1.442695
      %v1882 = vpow.pop %v1881
      %v1883 = vsel %vm1286, %v1882, 0.0
      %1884 = vadd.xlane.f32.xlu0 %v1883
      %v1885 = vpop.xlane.xlu0 %1884
      %v1886 = vrcp.pop %v1885
      %v1887 = vmul.f32 %v1882, %v1886
      %v1888 = vpack.c.bf16 %v1887, %v1887
      %1889 = vrot.lane.b32.xlu0 %v1461, 68
      %v1890 = vpop.permute.xlu0 %1889
      %v1892 = vsel %vm1286, %v1888, 0
      %v1895 = vsel %vm1498, %v1890, 0
      %1897 = vmatpush.bf16.msra.mxu0 0
      %1898 = vmatpush.bf16.msra.mxu0 0
      %1899 = vmatpush.bf16.msra.mxu0 0
      %1900 = vmatpush.bf16.msra.mxu0 0
      %1901 = vmatpush.bf16.msra.mxu0 0
      %1902 = vmatpush.bf16.msra.mxu0 0
      %1903 = vmatpush.bf16.msra.mxu0 0
      %1904 = vmatpush.bf16.msra.mxu0 %v1895
      %1905 = vmatmul.bf16.gmra.mxu0 %v1892
      %v1906 = vpop.f32.mrf.mxu0
      %v1907 = vadd.f32 0.0, %v1906
      %v1908 = vpop.f32.mrf.mxu0
      %1909 = vdwg.mxu0
      %1911 = vrot.lane.b32.xlu0 %v1571, 4
      %v1912 = vpop.permute.xlu0 %1911
      %1915 = vrot.lane.b32.xlu0 %v1627, 8
      %v1916 = vpop.permute.xlu0 %1915
      %1919 = vrot.lane.b32.xlu0 %v1683, 12
      %v1920 = vpop.permute.xlu0 %1919
      %1923 = vrot.lane.b32.xlu0 %v1739, 16
      %v1924 = vpop.permute.xlu0 %1923
      %1927 = vrot.lane.b32.xlu0 %v1795, 20
      %v1928 = vpop.permute.xlu0 %1927
      %1931 = vrot.lane.b32.xlu0 %v1851, 24
      %v1932 = vpop.permute.xlu0 %1931
      %1935 = vrot.lane.b32.xlu0 %v1907, 28
      %v1936 = vpop.permute.xlu0 %1935
      %v1938 = vsel %vm809, %v1512, %v1912
      %v1939 = vsel %vm829, %v1938, %v1916
      %v1940 = vsel %vm1286, %v1939, %v1920
      %v1941 = vsel %vm1288, %v1940, %v1924
      %v1942 = vsel %vm1290, %v1941, %v1928
      %v1943 = vsel %vm1292, %v1942, %v1932
      %v1944 = vsel %vm1294, %v1943, %v1936
      %v1945 = vpack.c.bf16 %v1944, %v1944
      %v1946 = vld [vmem:[%s15] sm:$0x1]
      %v1948 = vperm.slane %v1946, 0
      %v1954 = vunpack.c.l.b16 %v1450
      %v1955 = vunpack.c.l.b16 %v1451
      %v1956 = vunpack.c.l.b16 %v1452
      %v1957 = vunpack.c.l.b16 %v1453
      %v1958 = vpack.c.b16 %v1955, %v1954
      %v1959 = vpack.c.b16 %v1957, %v1956
      %v1963 = vsel %vm776, %v1945, 0
      %1965 = vmatpush.bf16.msra.mxu0 0
      %1966 = vmatpush.bf16.msra.mxu0 0
      %1967 = vmatpush.bf16.msra.mxu0 0
      %1968 = vmatpush.bf16.msra.mxu0 0
      %1969 = vmatpush.bf16.msra.mxu0 0
      %1970 = vmatpush.bf16.msra.mxu0 0
      %1971 = vmatpush.bf16.msra.mxu0 %v1959
      %1972 = vmatpush.bf16.msra.mxu0 %v1958
      %1973 = vmatmul.bf16.gmra.mxu0 %v1963
      %v1974 = vpop.f32.mrf.mxu0
      %v1975 = vadd.f32 %v1948, %v1974
      %v1976 = vpop.f32.mrf.mxu0
      %1977 = vdwg.mxu0
      %v1978 = vadd.f32 %v1368, %v1975
      %v1979 = vld [vmem:[%s16] sm:$0x1]
      %v1980 = vld [vmem:[%s17] sm:$0x1]
      %v1981 = vsel %vm776, %v1978, 0.0
      %1982 = vadd.xlane.f32.xlu0 %v1981
      %v1983 = vpop.xlane.xlu0 %1982
      %v1984 = vmul.f32 %v1983, %v1341
      %v1985 = vsub.f32 %v1978, %v1984
      %v1986 = vmul.f32 %v1985, %v1985
      %v1987 = vsel %vm776, %v1986, 0.0
      %1988 = vadd.xlane.f32.xlu0 %v1987
      %v1989 = vpop.xlane.xlu0 %1988
      %v1990 = vmul.f32 %v1989, %v1341
      %v1991 = vadd.f32 %v1990, 1e-05
      %v1992 = vrsqrt.pop %v1991
      %v1993 = vmul.f32 %v1992, %v1991
      %v1994 = vmul.f32 %v1993, %v1992
      %v1995 = vmul.f32 0.5, %v1994
      %v1996 = vsub.f32 1.5, %v1995
      %v1997 = vmul.f32 %v1992, %v1996
      %vm1998 = vweird.f32 %v1991
      %vm1999 = vweird.f32 %v1992
      %vm2000 = vmor %vm1998, %vm1999
      %v2001 = vsel %vm2000, %v1992, %v1997
      %v2002 = vmul.f32 %v1985, %v2001
      %v2004 = vperm.slane %v1979, 0
      %v2006 = vmul.f32 %v2002, %v2004
      %v2008 = vperm.slane %v1980, 0
      %v2010 = vadd.f32 %v2006, %v2008
      %v2011 = vpack.c.bf16 %v2010, %v2010
      %v2012 = vld [vmem:[%s18] sm:$0xff]
      %v2013 = vld [vmem:[%s18 + $0x8] sm:$0xff]
      %v2014 = vld [vmem:[%s18 + $0x10] sm:$0xff]
      %v2015 = vld [vmem:[%s18 + $0x18] sm:$0xff]
      %v2016 = vld [vmem:[%s18 + $0x20] sm:$0xff]
      %v2017 = vld [vmem:[%s18 + $0x28] sm:$0xff]
      %v2018 = vld [vmem:[%s18 + $0x30] sm:$0xff]
      %v2019 = vld [vmem:[%s18 + $0x38] sm:$0xff]
      %v2020 = vld [vmem:[%s18 + $0x40] sm:$0xff]
      %v2021 = vld [vmem:[%s18 + $0x48] sm:$0xff]
      %v2022 = vld [vmem:[%s18 + $0x50] sm:$0xff]
      %v2023 = vld [vmem:[%s18 + $0x58] sm:$0xff]
      %v2024 = vld [vmem:[%s18 + $0x60] sm:$0xff]
      %v2025 = vld [vmem:[%s18 + $0x68] sm:$0xff]
      %v2026 = vld [vmem:[%s18 + $0x70] sm:$0xff]
      %v2027 = vld [vmem:[%s18 + $0x78] sm:$0xff]
      %v2028 = vld [vmem:[%s18 + $0x80] sm:$0xff]
      %v2029 = vld [vmem:[%s18 + $0x88] sm:$0xff]
      %v2030 = vld [vmem:[%s18 + $0x90] sm:$0xff]
      %v2031 = vld [vmem:[%s18 + $0x98] sm:$0xff]
      %v2032 = vld [vmem:[%s18 + $0xa0] sm:$0xff]
      %v2033 = vld [vmem:[%s18 + $0xa8] sm:$0xff]
      %v2034 = vld [vmem:[%s18 + $0xb0] sm:$0xff]
      %v2035 = vld [vmem:[%s18 + $0xb8] sm:$0xff]
      %v2036 = vld [vmem:[%s18 + $0xc0] sm:$0xff]
      %v2037 = vld [vmem:[%s18 + $0xc8] sm:$0xff]
      %v2038 = vld [vmem:[%s18 + $0xd0] sm:$0xff]
      %v2039 = vld [vmem:[%s18 + $0xd8] sm:$0xff]
      %v2040 = vld [vmem:[%s18 + $0xe0] sm:$0xff]
      %v2041 = vld [vmem:[%s18 + $0xe8] sm:$0xff]
      %v2042 = vld [vmem:[%s18 + $0xf0] sm:$0xff]
      %v2043 = vld [vmem:[%s18 + $0xf8] sm:$0xff]
      %v2044 = vld [vmem:[%s19] sm:$0xff]
      %v2045 = vld [vmem:[%s19 + $0x8] sm:$0xff]
      %v2048 = vperm.slane %v2044, 0
      %v2049 = vperm.slane %v2044, 1
      %v2050 = vperm.slane %v2044, 2
      %v2051 = vperm.slane %v2044, 3
      %v2052 = vperm.slane %v2044, 4
      %v2053 = vperm.slane %v2044, 5
      %v2054 = vperm.slane %v2044, 6
      %v2055 = vperm.slane %v2044, 7
      %v2056 = vperm.slane %v2045, 0
      %v2057 = vperm.slane %v2045, 1
      %v2058 = vperm.slane %v2045, 2
      %v2059 = vperm.slane %v2045, 3
      %v2060 = vperm.slane %v2045, 4
      %v2061 = vperm.slane %v2045, 5
      %v2062 = vperm.slane %v2045, 6
      %v2063 = vperm.slane %v2045, 7
      %v2112 = vunpack.c.l.b16 %v2012
      %v2113 = vunpack.c.h.b16 %v2012
      %v2114 = vunpack.c.l.b16 %v2013
      %v2115 = vunpack.c.h.b16 %v2013
      %v2116 = vunpack.c.l.b16 %v2014
      %v2117 = vunpack.c.h.b16 %v2014
      %v2118 = vunpack.c.l.b16 %v2015
      %v2119 = vunpack.c.h.b16 %v2015
      %v2120 = vunpack.c.l.b16 %v2016
      %v2121 = vunpack.c.h.b16 %v2016
      %v2122 = vunpack.c.l.b16 %v2017
      %v2123 = vunpack.c.h.b16 %v2017
      %v2124 = vunpack.c.l.b16 %v2018
      %v2125 = vunpack.c.h.b16 %v2018
      %v2126 = vunpack.c.l.b16 %v2019
      %v2127 = vunpack.c.h.b16 %v2019
      %v2128 = vunpack.c.l.b16 %v2020
      %v2129 = vunpack.c.h.b16 %v2020
      %v2130 = vunpack.c.l.b16 %v2021
      %v2131 = vunpack.c.h.b16 %v2021
      %v2132 = vunpack.c.l.b16 %v2022
      %v2133 = vunpack.c.h.b16 %v2022
      %v2134 = vunpack.c.l.b16 %v2023
      %v2135 = vunpack.c.h.b16 %v2023
      %v2136 = vunpack.c.l.b16 %v2024
      %v2137 = vunpack.c.h.b16 %v2024
      %v2138 = vunpack.c.l.b16 %v2025
      %v2139 = vunpack.c.h.b16 %v2025
      %v2140 = vunpack.c.l.b16 %v2026
      %v2141 = vunpack.c.h.b16 %v2026
      %v2142 = vunpack.c.l.b16 %v2027
      %v2143 = vunpack.c.h.b16 %v2027
      %v2144 = vunpack.c.l.b16 %v2028
      %v2145 = vunpack.c.h.b16 %v2028
      %v2146 = vunpack.c.l.b16 %v2029
      %v2147 = vunpack.c.h.b16 %v2029
      %v2148 = vunpack.c.l.b16 %v2030
      %v2149 = vunpack.c.h.b16 %v2030
      %v2150 = vunpack.c.l.b16 %v2031
      %v2151 = vunpack.c.h.b16 %v2031
      %v2152 = vunpack.c.l.b16 %v2032
      %v2153 = vunpack.c.h.b16 %v2032
      %v2154 = vunpack.c.l.b16 %v2033
      %v2155 = vunpack.c.h.b16 %v2033
      %v2156 = vunpack.c.l.b16 %v2034
      %v2157 = vunpack.c.h.b16 %v2034
      %v2158 = vunpack.c.l.b16 %v2035
      %v2159 = vunpack.c.h.b16 %v2035
      %v2160 = vunpack.c.l.b16 %v2036
      %v2161 = vunpack.c.h.b16 %v2036
      %v2162 = vunpack.c.l.b16 %v2037
      %v2163 = vunpack.c.h.b16 %v2037
      %v2164 = vunpack.c.l.b16 %v2038
      %v2165 = vunpack.c.h.b16 %v2038
      %v2166 = vunpack.c.l.b16 %v2039
      %v2167 = vunpack.c.h.b16 %v2039
      %v2168 = vunpack.c.l.b16 %v2040
      %v2169 = vunpack.c.h.b16 %v2040
      %v2170 = vunpack.c.l.b16 %v2041
      %v2171 = vunpack.c.h.b16 %v2041
      %v2172 = vunpack.c.l.b16 %v2042
      %v2173 = vunpack.c.h.b16 %v2042
      %v2174 = vunpack.c.l.b16 %v2043
      %v2175 = vunpack.c.h.b16 %v2043
      %v2176 = vpack.c.b16 %v2128, %v2112
      %v2177 = vpack.c.b16 %v2129, %v2113
      %v2178 = vpack.c.b16 %v2130, %v2114
      %v2179 = vpack.c.b16 %v2131, %v2115
      %v2180 = vpack.c.b16 %v2132, %v2116
      %v2181 = vpack.c.b16 %v2133, %v2117
      %v2182 = vpack.c.b16 %v2134, %v2118
      %v2183 = vpack.c.b16 %v2135, %v2119
      %v2184 = vpack.c.b16 %v2136, %v2120
      %v2185 = vpack.c.b16 %v2137, %v2121
      %v2186 = vpack.c.b16 %v2138, %v2122
      %v2187 = vpack.c.b16 %v2139, %v2123
      %v2188 = vpack.c.b16 %v2140, %v2124
      %v2189 = vpack.c.b16 %v2141, %v2125
      %v2190 = vpack.c.b16 %v2142, %v2126
      %v2191 = vpack.c.b16 %v2143, %v2127
      %v2192 = vpack.c.b16 %v2160, %v2144
      %v2193 = vpack.c.b16 %v2161, %v2145
      %v2194 = vpack.c.b16 %v2162, %v2146
      %v2195 = vpack.c.b16 %v2163, %v2147
      %v2196 = vpack.c.b16 %v2164, %v2148
      %v2197 = vpack.c.b16 %v2165, %v2149
      %v2198 = vpack.c.b16 %v2166, %v2150
      %v2199 = vpack.c.b16 %v2167, %v2151
      %v2200 = vpack.c.b16 %v2168, %v2152
      %v2201 = vpack.c.b16 %v2169, %v2153
      %v2202 = vpack.c.b16 %v2170, %v2154
      %v2203 = vpack.c.b16 %v2171, %v2155
      %v2204 = vpack.c.b16 %v2172, %v2156
      %v2205 = vpack.c.b16 %v2173, %v2157
      %v2206 = vpack.c.b16 %v2174, %v2158
      %v2207 = vpack.c.b16 %v2175, %v2159
      %v2241 = vsel %vm776, %v2011, 0
      %2243 = vmatpush.bf16.msra.mxu0 0
      %2244 = vmatpush.bf16.msra.mxu0 0
      %2245 = vmatpush.bf16.msra.mxu0 0
      %2246 = vmatpush.bf16.msra.mxu0 0
      %2247 = vmatpush.bf16.msra.mxu0 0
      %2248 = vmatpush.bf16.msra.mxu0 0
      %2249 = vmatpush.bf16.msra.mxu0 %v2192
      %2250 = vmatpush.bf16.msra.mxu0 %v2176
      %2251 = vmatmul.bf16.gmra.mxu0 %v2241
      %v2252 = vpop.f32.mrf.mxu0
      %v2253 = vadd.f32 %v2048, %v2252
      %v2254 = vpop.f32.mrf.mxu0
      %2255 = vdwg.mxu0
      %2256 = vmatpush.bf16.msra.mxu0 0
      %2257 = vmatpush.bf16.msra.mxu0 0
      %2258 = vmatpush.bf16.msra.mxu0 0
      %2259 = vmatpush.bf16.msra.mxu0 0
      %2260 = vmatpush.bf16.msra.mxu0 0
      %2261 = vmatpush.bf16.msra.mxu0 0
      %2262 = vmatpush.bf16.msra.mxu0 %v2193
      %2263 = vmatpush.bf16.msra.mxu0 %v2177
      %2264 = vmatmul.bf16.gmra.mxu0 %v2241
      %v2265 = vpop.f32.mrf.mxu0
      %v2266 = vadd.f32 %v2049, %v2265
      %v2267 = vpop.f32.mrf.mxu0
      %2268 = vdwg.mxu0
      %2269 = vmatpush.bf16.msra.mxu0 0
      %2270 = vmatpush.bf16.msra.mxu0 0
      %2271 = vmatpush.bf16.msra.mxu0 0
      %2272 = vmatpush.bf16.msra.mxu0 0
      %2273 = vmatpush.bf16.msra.mxu0 0
      %2274 = vmatpush.bf16.msra.mxu0 0
      %2275 = vmatpush.bf16.msra.mxu0 %v2194
      %2276 = vmatpush.bf16.msra.mxu0 %v2178
      %2277 = vmatmul.bf16.gmra.mxu0 %v2241
      %v2278 = vpop.f32.mrf.mxu0
      %v2279 = vadd.f32 %v2050, %v2278
      %v2280 = vpop.f32.mrf.mxu0
      %2281 = vdwg.mxu0
      %2282 = vmatpush.bf16.msra.mxu0 0
      %2283 = vmatpush.bf16.msra.mxu0 0
      %2284 = vmatpush.bf16.msra.mxu0 0
      %2285 = vmatpush.bf16.msra.mxu0 0
      %2286 = vmatpush.bf16.msra.mxu0 0
      %2287 = vmatpush.bf16.msra.mxu0 0
      %2288 = vmatpush.bf16.msra.mxu0 %v2195
      %2289 = vmatpush.bf16.msra.mxu0 %v2179
      %2290 = vmatmul.bf16.gmra.mxu0 %v2241
      %v2291 = vpop.f32.mrf.mxu0
      %v2292 = vadd.f32 %v2051, %v2291
      %v2293 = vpop.f32.mrf.mxu0
      %2294 = vdwg.mxu0
      %2295 = vmatpush.bf16.msra.mxu0 0
      %2296 = vmatpush.bf16.msra.mxu0 0
      %2297 = vmatpush.bf16.msra.mxu0 0
      %2298 = vmatpush.bf16.msra.mxu0 0
      %2299 = vmatpush.bf16.msra.mxu0 0
      %2300 = vmatpush.bf16.msra.mxu0 0
      %2301 = vmatpush.bf16.msra.mxu0 %v2196
      %2302 = vmatpush.bf16.msra.mxu0 %v2180
      %2303 = vmatmul.bf16.gmra.mxu0 %v2241
      %v2304 = vpop.f32.mrf.mxu0
      %v2305 = vadd.f32 %v2052, %v2304
      %v2306 = vpop.f32.mrf.mxu0
      %2307 = vdwg.mxu0
      %2308 = vmatpush.bf16.msra.mxu0 0
      %2309 = vmatpush.bf16.msra.mxu0 0
      %2310 = vmatpush.bf16.msra.mxu0 0
      %2311 = vmatpush.bf16.msra.mxu0 0
      %2312 = vmatpush.bf16.msra.mxu0 0
      %2313 = vmatpush.bf16.msra.mxu0 0
      %2314 = vmatpush.bf16.msra.mxu0 %v2197
      %2315 = vmatpush.bf16.msra.mxu0 %v2181
      %2316 = vmatmul.bf16.gmra.mxu0 %v2241
      %v2317 = vpop.f32.mrf.mxu0
      %v2318 = vadd.f32 %v2053, %v2317
      %v2319 = vpop.f32.mrf.mxu0
      %2320 = vdwg.mxu0
      %2321 = vmatpush.bf16.msra.mxu0 0
      %2322 = vmatpush.bf16.msra.mxu0 0
      %2323 = vmatpush.bf16.msra.mxu0 0
      %2324 = vmatpush.bf16.msra.mxu0 0
      %2325 = vmatpush.bf16.msra.mxu0 0
      %2326 = vmatpush.bf16.msra.mxu0 0
      %2327 = vmatpush.bf16.msra.mxu0 %v2198
      %2328 = vmatpush.bf16.msra.mxu0 %v2182
      %2329 = vmatmul.bf16.gmra.mxu0 %v2241
      %v2330 = vpop.f32.mrf.mxu0
      %v2331 = vadd.f32 %v2054, %v2330
      %v2332 = vpop.f32.mrf.mxu0
      %2333 = vdwg.mxu0
      %2334 = vmatpush.bf16.msra.mxu0 0
      %2335 = vmatpush.bf16.msra.mxu0 0
      %2336 = vmatpush.bf16.msra.mxu0 0
      %2337 = vmatpush.bf16.msra.mxu0 0
      %2338 = vmatpush.bf16.msra.mxu0 0
      %2339 = vmatpush.bf16.msra.mxu0 0
      %2340 = vmatpush.bf16.msra.mxu0 %v2199
      %2341 = vmatpush.bf16.msra.mxu0 %v2183
      %2342 = vmatmul.bf16.gmra.mxu0 %v2241
      %v2343 = vpop.f32.mrf.mxu0
      %v2344 = vadd.f32 %v2055, %v2343
      %v2345 = vpop.f32.mrf.mxu0
      %2346 = vdwg.mxu0
      %2347 = vmatpush.bf16.msra.mxu0 0
      %2348 = vmatpush.bf16.msra.mxu0 0
      %2349 = vmatpush.bf16.msra.mxu0 0
      %2350 = vmatpush.bf16.msra.mxu0 0
      %2351 = vmatpush.bf16.msra.mxu0 0
      %2352 = vmatpush.bf16.msra.mxu0 0
      %2353 = vmatpush.bf16.msra.mxu0 %v2200
      %2354 = vmatpush.bf16.msra.mxu0 %v2184
      %2355 = vmatmul.bf16.gmra.mxu0 %v2241
      %v2356 = vpop.f32.mrf.mxu0
      %v2357 = vadd.f32 %v2056, %v2356
      %v2358 = vpop.f32.mrf.mxu0
      %2359 = vdwg.mxu0
      %2360 = vmatpush.bf16.msra.mxu0 0
      %2361 = vmatpush.bf16.msra.mxu0 0
      %2362 = vmatpush.bf16.msra.mxu0 0
      %2363 = vmatpush.bf16.msra.mxu0 0
      %2364 = vmatpush.bf16.msra.mxu0 0
      %2365 = vmatpush.bf16.msra.mxu0 0
      %2366 = vmatpush.bf16.msra.mxu0 %v2201
      %2367 = vmatpush.bf16.msra.mxu0 %v2185
      %2368 = vmatmul.bf16.gmra.mxu0 %v2241
      %v2369 = vpop.f32.mrf.mxu0
      %v2370 = vadd.f32 %v2057, %v2369
      %v2371 = vpop.f32.mrf.mxu0
      %2372 = vdwg.mxu0
      %2373 = vmatpush.bf16.msra.mxu0 0
      %2374 = vmatpush.bf16.msra.mxu0 0
      %2375 = vmatpush.bf16.msra.mxu0 0
      %2376 = vmatpush.bf16.msra.mxu0 0
      %2377 = vmatpush.bf16.msra.mxu0 0
      %2378 = vmatpush.bf16.msra.mxu0 0
      %2379 = vmatpush.bf16.msra.mxu0 %v2202
      %2380 = vmatpush.bf16.msra.mxu0 %v2186
      %2381 = vmatmul.bf16.gmra.mxu0 %v2241
      %v2382 = vpop.f32.mrf.mxu0
      %v2383 = vadd.f32 %v2058, %v2382
      %v2384 = vpop.f32.mrf.mxu0
      %2385 = vdwg.mxu0
      %2386 = vmatpush.bf16.msra.mxu0 0
      %2387 = vmatpush.bf16.msra.mxu0 0
      %2388 = vmatpush.bf16.msra.mxu0 0
      %2389 = vmatpush.bf16.msra.mxu0 0
      %2390 = vmatpush.bf16.msra.mxu0 0
      %2391 = vmatpush.bf16.msra.mxu0 0
      %2392 = vmatpush.bf16.msra.mxu0 %v2203
      %2393 = vmatpush.bf16.msra.mxu0 %v2187
      %2394 = vmatmul.bf16.gmra.mxu0 %v2241
      %v2395 = vpop.f32.mrf.mxu0
      %v2396 = vadd.f32 %v2059, %v2395
      %v2397 = vpop.f32.mrf.mxu0
      %2398 = vdwg.mxu0
      %2399 = vmatpush.bf16.msra.mxu0 0
      %2400 = vmatpush.bf16.msra.mxu0 0
      %2401 = vmatpush.bf16.msra.mxu0 0
      %2402 = vmatpush.bf16.msra.mxu0 0
      %2403 = vmatpush.bf16.msra.mxu0 0
      %2404 = vmatpush.bf16.msra.mxu0 0
      %2405 = vmatpush.bf16.msra.mxu0 %v2204
      %2406 = vmatpush.bf16.msra.mxu0 %v2188
      %2407 = vmatmul.bf16.gmra.mxu0 %v2241
      %v2408 = vpop.f32.mrf.mxu0
      %v2409 = vadd.f32 %v2060, %v2408
      %v2410 = vpop.f32.mrf.mxu0
      %2411 = vdwg.mxu0
      %2412 = vmatpush.bf16.msra.mxu0 0
      %2413 = vmatpush.bf16.msra.mxu0 0
      %2414 = vmatpush.bf16.msra.mxu0 0
      %2415 = vmatpush.bf16.msra.mxu0 0
      %2416 = vmatpush.bf16.msra.mxu0 0
      %2417 = vmatpush.bf16.msra.mxu0 0
      %2418 = vmatpush.bf16.msra.mxu0 %v2205
      %2419 = vmatpush.bf16.msra.mxu0 %v2189
      %2420 = vmatmul.bf16.gmra.mxu0 %v2241
      %v2421 = vpop.f32.mrf.mxu0
      %v2422 = vadd.f32 %v2061, %v2421
      %v2423 = vpop.f32.mrf.mxu0
      %2424 = vdwg.mxu0
      %2425 = vmatpush.bf16.msra.mxu0 0
      %2426 = vmatpush.bf16.msra.mxu0 0
      %2427 = vmatpush.bf16.msra.mxu0 0
      %2428 = vmatpush.bf16.msra.mxu0 0
      %2429 = vmatpush.bf16.msra.mxu0 0
      %2430 = vmatpush.bf16.msra.mxu0 0
      %2431 = vmatpush.bf16.msra.mxu0 %v2206
      %2432 = vmatpush.bf16.msra.mxu0 %v2190
      %2433 = vmatmul.bf16.gmra.mxu0 %v2241
      %v2434 = vpop.f32.mrf.mxu0
      %v2435 = vadd.f32 %v2062, %v2434
      %v2436 = vpop.f32.mrf.mxu0
      %2437 = vdwg.mxu0
      %2438 = vmatpush.bf16.msra.mxu0 0
      %2439 = vmatpush.bf16.msra.mxu0 0
      %2440 = vmatpush.bf16.msra.mxu0 0
      %2441 = vmatpush.bf16.msra.mxu0 0
      %2442 = vmatpush.bf16.msra.mxu0 0
      %2443 = vmatpush.bf16.msra.mxu0 0
      %2444 = vmatpush.bf16.msra.mxu0 %v2207
      %2445 = vmatpush.bf16.msra.mxu0 %v2191
      %2446 = vmatmul.bf16.gmra.mxu0 %v2241
      %v2447 = vpop.f32.mrf.mxu0
      %v2448 = vadd.f32 %v2063, %v2447
      %v2449 = vpop.f32.mrf.mxu0
      %2450 = vdwg.mxu0
      %v2451 = vmax.f32 %v2253, 0.0
      %v2452 = vmax.f32 %v2266, 0.0
      %v2453 = vmax.f32 %v2279, 0.0
      %v2454 = vmax.f32 %v2292, 0.0
      %v2455 = vmax.f32 %v2305, 0.0
      %v2456 = vmax.f32 %v2318, 0.0
      %v2457 = vmax.f32 %v2331, 0.0
      %v2458 = vmax.f32 %v2344, 0.0
      %v2459 = vmax.f32 %v2357, 0.0
      %v2460 = vmax.f32 %v2370, 0.0
      %v2461 = vmax.f32 %v2383, 0.0
      %v2462 = vmax.f32 %v2396, 0.0
      %v2463 = vmax.f32 %v2409, 0.0
      %v2464 = vmax.f32 %v2422, 0.0
      %v2465 = vmax.f32 %v2435, 0.0
      %v2466 = vmax.f32 %v2448, 0.0
      %v2467 = vpack.c.bf16 %v2451, %v2451
      %v2468 = vpack.c.bf16 %v2452, %v2452
      %v2469 = vpack.c.bf16 %v2453, %v2453
      %v2470 = vpack.c.bf16 %v2454, %v2454
      %v2471 = vpack.c.bf16 %v2455, %v2455
      %v2472 = vpack.c.bf16 %v2456, %v2456
      %v2473 = vpack.c.bf16 %v2457, %v2457
      %v2474 = vpack.c.bf16 %v2458, %v2458
      %v2475 = vpack.c.bf16 %v2459, %v2459
      %v2476 = vpack.c.bf16 %v2460, %v2460
      %v2477 = vpack.c.bf16 %v2461, %v2461
      %v2478 = vpack.c.bf16 %v2462, %v2462
      %v2479 = vpack.c.bf16 %v2463, %v2463
      %v2480 = vpack.c.bf16 %v2464, %v2464
      %v2481 = vpack.c.bf16 %v2465, %v2465
      %v2482 = vpack.c.bf16 %v2466, %v2466
      %v2483 = vld [vmem:[%s20] sm:$0xf]
      %v2484 = vld [vmem:[%s20 + $0x4] sm:$0xf]
      %v2485 = vld [vmem:[%s20 + $0x8] sm:$0xf]
      %v2486 = vld [vmem:[%s20 + $0xc] sm:$0xf]
      %v2487 = vld [vmem:[%s20 + $0x10] sm:$0xf]
      %v2488 = vld [vmem:[%s20 + $0x14] sm:$0xf]
      %v2489 = vld [vmem:[%s20 + $0x18] sm:$0xf]
      %v2490 = vld [vmem:[%s20 + $0x1c] sm:$0xf]
      %v2491 = vld [vmem:[%s20 + $0x20] sm:$0xf]
      %v2492 = vld [vmem:[%s20 + $0x24] sm:$0xf]
      %v2493 = vld [vmem:[%s20 + $0x28] sm:$0xf]
      %v2494 = vld [vmem:[%s20 + $0x2c] sm:$0xf]
      %v2495 = vld [vmem:[%s20 + $0x30] sm:$0xf]
      %v2496 = vld [vmem:[%s20 + $0x34] sm:$0xf]
      %v2497 = vld [vmem:[%s20 + $0x38] sm:$0xf]
      %v2498 = vld [vmem:[%s20 + $0x3c] sm:$0xf]
      %v2499 = vld [vmem:[%s20 + $0x40] sm:$0xf]
      %v2500 = vld [vmem:[%s20 + $0x44] sm:$0xf]
      %v2501 = vld [vmem:[%s20 + $0x48] sm:$0xf]
      %v2502 = vld [vmem:[%s20 + $0x4c] sm:$0xf]
      %v2503 = vld [vmem:[%s20 + $0x50] sm:$0xf]
      %v2504 = vld [vmem:[%s20 + $0x54] sm:$0xf]
      %v2505 = vld [vmem:[%s20 + $0x58] sm:$0xf]
      %v2506 = vld [vmem:[%s20 + $0x5c] sm:$0xf]
      %v2507 = vld [vmem:[%s20 + $0x60] sm:$0xf]
      %v2508 = vld [vmem:[%s20 + $0x64] sm:$0xf]
      %v2509 = vld [vmem:[%s20 + $0x68] sm:$0xf]
      %v2510 = vld [vmem:[%s20 + $0x6c] sm:$0xf]
      %v2511 = vld [vmem:[%s20 + $0x70] sm:$0xf]
      %v2512 = vld [vmem:[%s20 + $0x74] sm:$0xf]
      %v2513 = vld [vmem:[%s20 + $0x78] sm:$0xf]
      %v2514 = vld [vmem:[%s20 + $0x7c] sm:$0xf]
      %v2515 = vld [vmem:[%s20 + $0x80] sm:$0xf]
      %v2516 = vld [vmem:[%s20 + $0x84] sm:$0xf]
      %v2517 = vld [vmem:[%s20 + $0x88] sm:$0xf]
      %v2518 = vld [vmem:[%s20 + $0x8c] sm:$0xf]
      %v2519 = vld [vmem:[%s20 + $0x90] sm:$0xf]
      %v2520 = vld [vmem:[%s20 + $0x94] sm:$0xf]
      %v2521 = vld [vmem:[%s20 + $0x98] sm:$0xf]
      %v2522 = vld [vmem:[%s20 + $0x9c] sm:$0xf]
      %v2523 = vld [vmem:[%s20 + $0xa0] sm:$0xf]
      %v2524 = vld [vmem:[%s20 + $0xa4] sm:$0xf]
      %v2525 = vld [vmem:[%s20 + $0xa8] sm:$0xf]
      %v2526 = vld [vmem:[%s20 + $0xac] sm:$0xf]
      %v2527 = vld [vmem:[%s20 + $0xb0] sm:$0xf]
      %v2528 = vld [vmem:[%s20 + $0xb4] sm:$0xf]
      %v2529 = vld [vmem:[%s20 + $0xb8] sm:$0xf]
      %v2530 = vld [vmem:[%s20 + $0xbc] sm:$0xf]
      %v2531 = vld [vmem:[%s20 + $0xc0] sm:$0xf]
      %v2532 = vld [vmem:[%s20 + $0xc4] sm:$0xf]
      %v2533 = vld [vmem:[%s20 + $0xc8] sm:$0xf]
      %v2534 = vld [vmem:[%s20 + $0xcc] sm:$0xf]
      %v2535 = vld [vmem:[%s20 + $0xd0] sm:$0xf]
      %v2536 = vld [vmem:[%s20 + $0xd4] sm:$0xf]
      %v2537 = vld [vmem:[%s20 + $0xd8] sm:$0xf]
      %v2538 = vld [vmem:[%s20 + $0xdc] sm:$0xf]
      %v2539 = vld [vmem:[%s20 + $0xe0] sm:$0xf]
      %v2540 = vld [vmem:[%s20 + $0xe4] sm:$0xf]
      %v2541 = vld [vmem:[%s20 + $0xe8] sm:$0xf]
      %v2542 = vld [vmem:[%s20 + $0xec] sm:$0xf]
      %v2543 = vld [vmem:[%s20 + $0xf0] sm:$0xf]
      %v2544 = vld [vmem:[%s20 + $0xf4] sm:$0xf]
      %v2545 = vld [vmem:[%s20 + $0xf8] sm:$0xf]
      %v2546 = vld [vmem:[%s20 + $0xfc] sm:$0xf]
      %v2547 = vld [vmem:[%s20 + $0x100] sm:$0xf]
      %v2548 = vld [vmem:[%s20 + $0x104] sm:$0xf]
      %v2549 = vld [vmem:[%s20 + $0x108] sm:$0xf]
      %v2550 = vld [vmem:[%s20 + $0x10c] sm:$0xf]
      %v2551 = vld [vmem:[%s20 + $0x110] sm:$0xf]
      %v2552 = vld [vmem:[%s20 + $0x114] sm:$0xf]
      %v2553 = vld [vmem:[%s20 + $0x118] sm:$0xf]
      %v2554 = vld [vmem:[%s20 + $0x11c] sm:$0xf]
      %v2555 = vld [vmem:[%s20 + $0x120] sm:$0xf]
      %v2556 = vld [vmem:[%s20 + $0x124] sm:$0xf]
      %v2557 = vld [vmem:[%s20 + $0x128] sm:$0xf]
      %v2558 = vld [vmem:[%s20 + $0x12c] sm:$0xf]
      %v2559 = vld [vmem:[%s20 + $0x130] sm:$0xf]
      %v2560 = vld [vmem:[%s20 + $0x134] sm:$0xf]
      %v2561 = vld [vmem:[%s20 + $0x138] sm:$0xf]
      %v2562 = vld [vmem:[%s20 + $0x13c] sm:$0xf]
      %v2563 = vld [vmem:[%s20 + $0x140] sm:$0xf]
      %v2564 = vld [vmem:[%s20 + $0x144] sm:$0xf]
      %v2565 = vld [vmem:[%s20 + $0x148] sm:$0xf]
      %v2566 = vld [vmem:[%s20 + $0x14c] sm:$0xf]
      %v2567 = vld [vmem:[%s20 + $0x150] sm:$0xf]
      %v2568 = vld [vmem:[%s20 + $0x154] sm:$0xf]
      %v2569 = vld [vmem:[%s20 + $0x158] sm:$0xf]
      %v2570 = vld [vmem:[%s20 + $0x15c] sm:$0xf]
      %v2571 = vld [vmem:[%s20 + $0x160] sm:$0xf]
      %v2572 = vld [vmem:[%s20 + $0x164] sm:$0xf]
      %v2573 = vld [vmem:[%s20 + $0x168] sm:$0xf]
      %v2574 = vld [vmem:[%s20 + $0x16c] sm:$0xf]
      %v2575 = vld [vmem:[%s20 + $0x170] sm:$0xf]
      %v2576 = vld [vmem:[%s20 + $0x174] sm:$0xf]
      %v2577 = vld [vmem:[%s20 + $0x178] sm:$0xf]
      %v2578 = vld [vmem:[%s20 + $0x17c] sm:$0xf]
      %v2579 = vld [vmem:[%s20 + $0x180] sm:$0xf]
      %v2580 = vld [vmem:[%s20 + $0x184] sm:$0xf]
      %v2581 = vld [vmem:[%s20 + $0x188] sm:$0xf]
      %v2582 = vld [vmem:[%s20 + $0x18c] sm:$0xf]
      %v2583 = vld [vmem:[%s20 + $0x190] sm:$0xf]
      %v2584 = vld [vmem:[%s20 + $0x194] sm:$0xf]
      %v2585 = vld [vmem:[%s20 + $0x198] sm:$0xf]
      %v2586 = vld [vmem:[%s20 + $0x19c] sm:$0xf]
      %v2587 = vld [vmem:[%s20 + $0x1a0] sm:$0xf]
      %v2588 = vld [vmem:[%s20 + $0x1a4] sm:$0xf]
      %v2589 = vld [vmem:[%s20 + $0x1a8] sm:$0xf]
      %v2590 = vld [vmem:[%s20 + $0x1ac] sm:$0xf]
      %v2591 = vld [vmem:[%s20 + $0x1b0] sm:$0xf]
      %v2592 = vld [vmem:[%s20 + $0x1b4] sm:$0xf]
      %v2593 = vld [vmem:[%s20 + $0x1b8] sm:$0xf]
      %v2594 = vld [vmem:[%s20 + $0x1bc] sm:$0xf]
      %v2595 = vld [vmem:[%s20 + $0x1c0] sm:$0xf]
      %v2596 = vld [vmem:[%s20 + $0x1c4] sm:$0xf]
      %v2597 = vld [vmem:[%s20 + $0x1c8] sm:$0xf]
      %v2598 = vld [vmem:[%s20 + $0x1cc] sm:$0xf]
      %v2599 = vld [vmem:[%s20 + $0x1d0] sm:$0xf]
      %v2600 = vld [vmem:[%s20 + $0x1d4] sm:$0xf]
      %v2601 = vld [vmem:[%s20 + $0x1d8] sm:$0xf]
      %v2602 = vld [vmem:[%s20 + $0x1dc] sm:$0xf]
      %v2603 = vld [vmem:[%s20 + $0x1e0] sm:$0xf]
      %v2604 = vld [vmem:[%s20 + $0x1e4] sm:$0xf]
      %v2605 = vld [vmem:[%s20 + $0x1e8] sm:$0xf]
      %v2606 = vld [vmem:[%s20 + $0x1ec] sm:$0xf]
      %v2607 = vld [vmem:[%s20 + $0x1f0] sm:$0xf]
      %v2608 = vld [vmem:[%s20 + $0x1f4] sm:$0xf]
      %v2609 = vld [vmem:[%s20 + $0x1f8] sm:$0xf]
      %v2610 = vld [vmem:[%s20 + $0x1fc] sm:$0xf]
      %v2611 = vld [vmem:[%s20 + $0x200] sm:$0xf]
      %v2612 = vld [vmem:[%s20 + $0x204] sm:$0xf]
      %v2613 = vld [vmem:[%s20 + $0x208] sm:$0xf]
      %v2614 = vld [vmem:[%s20 + $0x20c] sm:$0xf]
      %v2615 = vld [vmem:[%s20 + $0x210] sm:$0xf]
      %v2616 = vld [vmem:[%s20 + $0x214] sm:$0xf]
      %v2617 = vld [vmem:[%s20 + $0x218] sm:$0xf]
      %v2618 = vld [vmem:[%s20 + $0x21c] sm:$0xf]
      %v2619 = vld [vmem:[%s20 + $0x220] sm:$0xf]
      %v2620 = vld [vmem:[%s20 + $0x224] sm:$0xf]
      %v2621 = vld [vmem:[%s20 + $0x228] sm:$0xf]
      %v2622 = vld [vmem:[%s20 + $0x22c] sm:$0xf]
      %v2623 = vld [vmem:[%s20 + $0x230] sm:$0xf]
      %v2624 = vld [vmem:[%s20 + $0x234] sm:$0xf]
      %v2625 = vld [vmem:[%s20 + $0x238] sm:$0xf]
      %v2626 = vld [vmem:[%s20 + $0x23c] sm:$0xf]
      %v2627 = vld [vmem:[%s20 + $0x240] sm:$0xf]
      %v2628 = vld [vmem:[%s20 + $0x244] sm:$0xf]
      %v2629 = vld [vmem:[%s20 + $0x248] sm:$0xf]
      %v2630 = vld [vmem:[%s20 + $0x24c] sm:$0xf]
      %v2631 = vld [vmem:[%s20 + $0x250] sm:$0xf]
      %v2632 = vld [vmem:[%s20 + $0x254] sm:$0xf]
      %v2633 = vld [vmem:[%s20 + $0x258] sm:$0xf]
      %v2634 = vld [vmem:[%s20 + $0x25c] sm:$0xf]
      %v2635 = vld [vmem:[%s20 + $0x260] sm:$0xf]
      %v2636 = vld [vmem:[%s20 + $0x264] sm:$0xf]
      %v2637 = vld [vmem:[%s20 + $0x268] sm:$0xf]
      %v2638 = vld [vmem:[%s20 + $0x26c] sm:$0xf]
      %v2639 = vld [vmem:[%s20 + $0x270] sm:$0xf]
      %v2640 = vld [vmem:[%s20 + $0x274] sm:$0xf]
      %v2641 = vld [vmem:[%s20 + $0x278] sm:$0xf]
      %v2642 = vld [vmem:[%s20 + $0x27c] sm:$0xf]
      %v2643 = vld [vmem:[%s20 + $0x280] sm:$0xf]
      %v2644 = vld [vmem:[%s20 + $0x284] sm:$0xf]
      %v2645 = vld [vmem:[%s20 + $0x288] sm:$0xf]
      %v2646 = vld [vmem:[%s20 + $0x28c] sm:$0xf]
      %v2647 = vld [vmem:[%s20 + $0x290] sm:$0xf]
      %v2648 = vld [vmem:[%s20 + $0x294] sm:$0xf]
      %v2649 = vld [vmem:[%s20 + $0x298] sm:$0xf]
      %v2650 = vld [vmem:[%s20 + $0x29c] sm:$0xf]
      %v2651 = vld [vmem:[%s20 + $0x2a0] sm:$0xf]
      %v2652 = vld [vmem:[%s20 + $0x2a4] sm:$0xf]
      %v2653 = vld [vmem:[%s20 + $0x2a8] sm:$0xf]
      %v2654 = vld [vmem:[%s20 + $0x2ac] sm:$0xf]
      %v2655 = vld [vmem:[%s20 + $0x2b0] sm:$0xf]
      %v2656 = vld [vmem:[%s20 + $0x2b4] sm:$0xf]
      %v2657 = vld [vmem:[%s20 + $0x2b8] sm:$0xf]
      %v2658 = vld [vmem:[%s20 + $0x2bc] sm:$0xf]
      %v2659 = vld [vmem:[%s20 + $0x2c0] sm:$0xf]
      %v2660 = vld [vmem:[%s20 + $0x2c4] sm:$0xf]
      %v2661 = vld [vmem:[%s20 + $0x2c8] sm:$0xf]
      %v2662 = vld [vmem:[%s20 + $0x2cc] sm:$0xf]
      %v2663 = vld [vmem:[%s20 + $0x2d0] sm:$0xf]
      %v2664 = vld [vmem:[%s20 + $0x2d4] sm:$0xf]
      %v2665 = vld [vmem:[%s20 + $0x2d8] sm:$0xf]
      %v2666 = vld [vmem:[%s20 + $0x2dc] sm:$0xf]
      %v2667 = vld [vmem:[%s20 + $0x2e0] sm:$0xf]
      %v2668 = vld [vmem:[%s20 + $0x2e4] sm:$0xf]
      %v2669 = vld [vmem:[%s20 + $0x2e8] sm:$0xf]
      %v2670 = vld [vmem:[%s20 + $0x2ec] sm:$0xf]
      %v2671 = vld [vmem:[%s20 + $0x2f0] sm:$0xf]
      %v2672 = vld [vmem:[%s20 + $0x2f4] sm:$0xf]
      %v2673 = vld [vmem:[%s20 + $0x2f8] sm:$0xf]
      %v2674 = vld [vmem:[%s20 + $0x2fc] sm:$0xf]
      %v2675 = vld [vmem:[%s20 + $0x300] sm:$0xf]
      %v2676 = vld [vmem:[%s20 + $0x304] sm:$0xf]
      %v2677 = vld [vmem:[%s20 + $0x308] sm:$0xf]
      %v2678 = vld [vmem:[%s20 + $0x30c] sm:$0xf]
      %v2679 = vld [vmem:[%s20 + $0x310] sm:$0xf]
      %v2680 = vld [vmem:[%s20 + $0x314] sm:$0xf]
      %v2681 = vld [vmem:[%s20 + $0x318] sm:$0xf]
      %v2682 = vld [vmem:[%s20 + $0x31c] sm:$0xf]
      %v2683 = vld [vmem:[%s20 + $0x320] sm:$0xf]
      %v2684 = vld [vmem:[%s20 + $0x324] sm:$0xf]
      %v2685 = vld [vmem:[%s20 + $0x328] sm:$0xf]
      %v2686 = vld [vmem:[%s20 + $0x32c] sm:$0xf]
      %v2687 = vld [vmem:[%s20 + $0x330] sm:$0xf]
      %v2688 = vld [vmem:[%s20 + $0x334] sm:$0xf]
      %v2689 = vld [vmem:[%s20 + $0x338] sm:$0xf]
      %v2690 = vld [vmem:[%s20 + $0x33c] sm:$0xf]
      %v2691 = vld [vmem:[%s20 + $0x340] sm:$0xf]
      %v2692 = vld [vmem:[%s20 + $0x344] sm:$0xf]
      %v2693 = vld [vmem:[%s20 + $0x348] sm:$0xf]
      %v2694 = vld [vmem:[%s20 + $0x34c] sm:$0xf]
      %v2695 = vld [vmem:[%s20 + $0x350] sm:$0xf]
      %v2696 = vld [vmem:[%s20 + $0x354] sm:$0xf]
      %v2697 = vld [vmem:[%s20 + $0x358] sm:$0xf]
      %v2698 = vld [vmem:[%s20 + $0x35c] sm:$0xf]
      %v2699 = vld [vmem:[%s20 + $0x360] sm:$0xf]
      %v2700 = vld [vmem:[%s20 + $0x364] sm:$0xf]
      %v2701 = vld [vmem:[%s20 + $0x368] sm:$0xf]
      %v2702 = vld [vmem:[%s20 + $0x36c] sm:$0xf]
      %v2703 = vld [vmem:[%s20 + $0x370] sm:$0xf]
      %v2704 = vld [vmem:[%s20 + $0x374] sm:$0xf]
      %v2705 = vld [vmem:[%s20 + $0x378] sm:$0xf]
      %v2706 = vld [vmem:[%s20 + $0x37c] sm:$0xf]
      %v2707 = vld [vmem:[%s20 + $0x380] sm:$0xf]
      %v2708 = vld [vmem:[%s20 + $0x384] sm:$0xf]
      %v2709 = vld [vmem:[%s20 + $0x388] sm:$0xf]
      %v2710 = vld [vmem:[%s20 + $0x38c] sm:$0xf]
      %v2711 = vld [vmem:[%s20 + $0x390] sm:$0xf]
      %v2712 = vld [vmem:[%s20 + $0x394] sm:$0xf]
      %v2713 = vld [vmem:[%s20 + $0x398] sm:$0xf]
      %v2714 = vld [vmem:[%s20 + $0x39c] sm:$0xf]
      %v2715 = vld [vmem:[%s20 + $0x3a0] sm:$0xf]
      %v2716 = vld [vmem:[%s20 + $0x3a4] sm:$0xf]
      %v2717 = vld [vmem:[%s20 + $0x3a8] sm:$0xf]
      %v2718 = vld [vmem:[%s20 + $0x3ac] sm:$0xf]
      %v2719 = vld [vmem:[%s20 + $0x3b0] sm:$0xf]
      %v2720 = vld [vmem:[%s20 + $0x3b4] sm:$0xf]
      %v2721 = vld [vmem:[%s20 + $0x3b8] sm:$0xf]
      %v2722 = vld [vmem:[%s20 + $0x3bc] sm:$0xf]
      %v2723 = vld [vmem:[%s20 + $0x3c0] sm:$0xf]
      %v2724 = vld [vmem:[%s20 + $0x3c4] sm:$0xf]
      %v2725 = vld [vmem:[%s20 + $0x3c8] sm:$0xf]
      %v2726 = vld [vmem:[%s20 + $0x3cc] sm:$0xf]
      %v2727 = vld [vmem:[%s20 + $0x3d0] sm:$0xf]
      %v2728 = vld [vmem:[%s20 + $0x3d4] sm:$0xf]
      %v2729 = vld [vmem:[%s20 + $0x3d8] sm:$0xf]
      %v2730 = vld [vmem:[%s20 + $0x3dc] sm:$0xf]
      %v2731 = vld [vmem:[%s20 + $0x3e0] sm:$0xf]
      %v2732 = vld [vmem:[%s20 + $0x3e4] sm:$0xf]
      %v2733 = vld [vmem:[%s20 + $0x3e8] sm:$0xf]
      %v2734 = vld [vmem:[%s20 + $0x3ec] sm:$0xf]
      %v2735 = vld [vmem:[%s20 + $0x3f0] sm:$0xf]
      %v2736 = vld [vmem:[%s20 + $0x3f4] sm:$0xf]
      %v2737 = vld [vmem:[%s20 + $0x3f8] sm:$0xf]
      %v2738 = vld [vmem:[%s20 + $0x3fc] sm:$0xf]
      %v2739 = vld [vmem:[%s21] sm:$0x1]
      %v2741 = vperm.slane %v2739, 0
      %v2999 = vunpack.c.l.b16 %v2483
      %v3000 = vunpack.c.l.b16 %v2484
      %v3001 = vunpack.c.l.b16 %v2485
      %v3002 = vunpack.c.l.b16 %v2486
      %v3003 = vunpack.c.l.b16 %v2487
      %v3004 = vunpack.c.l.b16 %v2488
      %v3005 = vunpack.c.l.b16 %v2489
      %v3006 = vunpack.c.l.b16 %v2490
      %v3007 = vunpack.c.l.b16 %v2491
      %v3008 = vunpack.c.l.b16 %v2492
      %v3009 = vunpack.c.l.b16 %v2493
      %v3010 = vunpack.c.l.b16 %v2494
      %v3011 = vunpack.c.l.b16 %v2495
      %v3012 = vunpack.c.l.b16 %v2496
      %v3013 = vunpack.c.l.b16 %v2497
      %v3014 = vunpack.c.l.b16 %v2498
      %v3015 = vunpack.c.l.b16 %v2499
      %v3016 = vunpack.c.l.b16 %v2500
      %v3017 = vunpack.c.l.b16 %v2501
      %v3018 = vunpack.c.l.b16 %v2502
      %v3019 = vunpack.c.l.b16 %v2503
      %v3020 = vunpack.c.l.b16 %v2504
      %v3021 = vunpack.c.l.b16 %v2505
      %v3022 = vunpack.c.l.b16 %v2506
      %v3023 = vunpack.c.l.b16 %v2507
      %v3024 = vunpack.c.l.b16 %v2508
      %v3025 = vunpack.c.l.b16 %v2509
      %v3026 = vunpack.c.l.b16 %v2510
      %v3027 = vunpack.c.l.b16 %v2511
      %v3028 = vunpack.c.l.b16 %v2512
      %v3029 = vunpack.c.l.b16 %v2513
      %v3030 = vunpack.c.l.b16 %v2514
      %v3031 = vunpack.c.l.b16 %v2515
      %v3032 = vunpack.c.l.b16 %v2516
      %v3033 = vunpack.c.l.b16 %v2517
      %v3034 = vunpack.c.l.b16 %v2518
      %v3035 = vunpack.c.l.b16 %v2519
      %v3036 = vunpack.c.l.b16 %v2520
      %v3037 = vunpack.c.l.b16 %v2521
      %v3038 = vunpack.c.l.b16 %v2522
      %v3039 = vunpack.c.l.b16 %v2523
      %v3040 = vunpack.c.l.b16 %v2524
      %v3041 = vunpack.c.l.b16 %v2525
      %v3042 = vunpack.c.l.b16 %v2526
      %v3043 = vunpack.c.l.b16 %v2527
      %v3044 = vunpack.c.l.b16 %v2528
      %v3045 = vunpack.c.l.b16 %v2529
      %v3046 = vunpack.c.l.b16 %v2530
      %v3047 = vunpack.c.l.b16 %v2531
      %v3048 = vunpack.c.l.b16 %v2532
      %v3049 = vunpack.c.l.b16 %v2533
      %v3050 = vunpack.c.l.b16 %v2534
      %v3051 = vunpack.c.l.b16 %v2535
      %v3052 = vunpack.c.l.b16 %v2536
      %v3053 = vunpack.c.l.b16 %v2537
      %v3054 = vunpack.c.l.b16 %v2538
      %v3055 = vunpack.c.l.b16 %v2539
      %v3056 = vunpack.c.l.b16 %v2540
      %v3057 = vunpack.c.l.b16 %v2541
      %v3058 = vunpack.c.l.b16 %v2542
      %v3059 = vunpack.c.l.b16 %v2543
      %v3060 = vunpack.c.l.b16 %v2544
      %v3061 = vunpack.c.l.b16 %v2545
      %v3062 = vunpack.c.l.b16 %v2546
      %v3063 = vunpack.c.l.b16 %v2547
      %v3064 = vunpack.c.l.b16 %v2548
      %v3065 = vunpack.c.l.b16 %v2549
      %v3066 = vunpack.c.l.b16 %v2550
      %v3067 = vunpack.c.l.b16 %v2551
      %v3068 = vunpack.c.l.b16 %v2552
      %v3069 = vunpack.c.l.b16 %v2553
      %v3070 = vunpack.c.l.b16 %v2554
      %v3071 = vunpack.c.l.b16 %v2555
      %v3072 = vunpack.c.l.b16 %v2556
      %v3073 = vunpack.c.l.b16 %v2557
      %v3074 = vunpack.c.l.b16 %v2558
      %v3075 = vunpack.c.l.b16 %v2559
      %v3076 = vunpack.c.l.b16 %v2560
      %v3077 = vunpack.c.l.b16 %v2561
      %v3078 = vunpack.c.l.b16 %v2562
      %v3079 = vunpack.c.l.b16 %v2563
      %v3080 = vunpack.c.l.b16 %v2564
      %v3081 = vunpack.c.l.b16 %v2565
      %v3082 = vunpack.c.l.b16 %v2566
      %v3083 = vunpack.c.l.b16 %v2567
      %v3084 = vunpack.c.l.b16 %v2568
      %v3085 = vunpack.c.l.b16 %v2569
      %v3086 = vunpack.c.l.b16 %v2570
      %v3087 = vunpack.c.l.b16 %v2571
      %v3088 = vunpack.c.l.b16 %v2572
      %v3089 = vunpack.c.l.b16 %v2573
      %v3090 = vunpack.c.l.b16 %v2574
      %v3091 = vunpack.c.l.b16 %v2575
      %v3092 = vunpack.c.l.b16 %v2576
      %v3093 = vunpack.c.l.b16 %v2577
      %v3094 = vunpack.c.l.b16 %v2578
      %v3095 = vunpack.c.l.b16 %v2579
      %v3096 = vunpack.c.l.b16 %v2580
      %v3097 = vunpack.c.l.b16 %v2581
      %v3098 = vunpack.c.l.b16 %v2582
      %v3099 = vunpack.c.l.b16 %v2583
      %v3100 = vunpack.c.l.b16 %v2584
      %v3101 = vunpack.c.l.b16 %v2585
      %v3102 = vunpack.c.l.b16 %v2586
      %v3103 = vunpack.c.l.b16 %v2587
      %v3104 = vunpack.c.l.b16 %v2588
      %v3105 = vunpack.c.l.b16 %v2589
      %v3106 = vunpack.c.l.b16 %v2590
      %v3107 = vunpack.c.l.b16 %v2591
      %v3108 = vunpack.c.l.b16 %v2592
      %v3109 = vunpack.c.l.b16 %v2593
      %v3110 = vunpack.c.l.b16 %v2594
      %v3111 = vunpack.c.l.b16 %v2595
      %v3112 = vunpack.c.l.b16 %v2596
      %v3113 = vunpack.c.l.b16 %v2597
      %v3114 = vunpack.c.l.b16 %v2598
      %v3115 = vunpack.c.l.b16 %v2599
      %v3116 = vunpack.c.l.b16 %v2600
      %v3117 = vunpack.c.l.b16 %v2601
      %v3118 = vunpack.c.l.b16 %v2602
      %v3119 = vunpack.c.l.b16 %v2603
      %v3120 = vunpack.c.l.b16 %v2604
      %v3121 = vunpack.c.l.b16 %v2605
      %v3122 = vunpack.c.l.b16 %v2606
      %v3123 = vunpack.c.l.b16 %v2607
      %v3124 = vunpack.c.l.b16 %v2608
      %v3125 = vunpack.c.l.b16 %v2609
      %v3126 = vunpack.c.l.b16 %v2610
      %v3127 = vunpack.c.l.b16 %v2611
      %v3128 = vunpack.c.l.b16 %v2612
      %v3129 = vunpack.c.l.b16 %v2613
      %v3130 = vunpack.c.l.b16 %v2614
      %v3131 = vunpack.c.l.b16 %v2615
      %v3132 = vunpack.c.l.b16 %v2616
      %v3133 = vunpack.c.l.b16 %v2617
      %v3134 = vunpack.c.l.b16 %v2618
      %v3135 = vunpack.c.l.b16 %v2619
      %v3136 = vunpack.c.l.b16 %v2620
      %v3137 = vunpack.c.l.b16 %v2621
      %v3138 = vunpack.c.l.b16 %v2622
      %v3139 = vunpack.c.l.b16 %v2623
      %v3140 = vunpack.c.l.b16 %v2624
      %v3141 = vunpack.c.l.b16 %v2625
      %v3142 = vunpack.c.l.b16 %v2626
      %v3143 = vunpack.c.l.b16 %v2627
      %v3144 = vunpack.c.l.b16 %v2628
      %v3145 = vunpack.c.l.b16 %v2629
      %v3146 = vunpack.c.l.b16 %v2630
      %v3147 = vunpack.c.l.b16 %v2631
      %v3148 = vunpack.c.l.b16 %v2632
      %v3149 = vunpack.c.l.b16 %v2633
      %v3150 = vunpack.c.l.b16 %v2634
      %v3151 = vunpack.c.l.b16 %v2635
      %v3152 = vunpack.c.l.b16 %v2636
      %v3153 = vunpack.c.l.b16 %v2637
      %v3154 = vunpack.c.l.b16 %v2638
      %v3155 = vunpack.c.l.b16 %v2639
      %v3156 = vunpack.c.l.b16 %v2640
      %v3157 = vunpack.c.l.b16 %v2641
      %v3158 = vunpack.c.l.b16 %v2642
      %v3159 = vunpack.c.l.b16 %v2643
      %v3160 = vunpack.c.l.b16 %v2644
      %v3161 = vunpack.c.l.b16 %v2645
      %v3162 = vunpack.c.l.b16 %v2646
      %v3163 = vunpack.c.l.b16 %v2647
      %v3164 = vunpack.c.l.b16 %v2648
      %v3165 = vunpack.c.l.b16 %v2649
      %v3166 = vunpack.c.l.b16 %v2650
      %v3167 = vunpack.c.l.b16 %v2651
      %v3168 = vunpack.c.l.b16 %v2652
      %v3169 = vunpack.c.l.b16 %v2653
      %v3170 = vunpack.c.l.b16 %v2654
      %v3171 = vunpack.c.l.b16 %v2655
      %v3172 = vunpack.c.l.b16 %v2656
      %v3173 = vunpack.c.l.b16 %v2657
      %v3174 = vunpack.c.l.b16 %v2658
      %v3175 = vunpack.c.l.b16 %v2659
      %v3176 = vunpack.c.l.b16 %v2660
      %v3177 = vunpack.c.l.b16 %v2661
      %v3178 = vunpack.c.l.b16 %v2662
      %v3179 = vunpack.c.l.b16 %v2663
      %v3180 = vunpack.c.l.b16 %v2664
      %v3181 = vunpack.c.l.b16 %v2665
      %v3182 = vunpack.c.l.b16 %v2666
      %v3183 = vunpack.c.l.b16 %v2667
      %v3184 = vunpack.c.l.b16 %v2668
      %v3185 = vunpack.c.l.b16 %v2669
      %v3186 = vunpack.c.l.b16 %v2670
      %v3187 = vunpack.c.l.b16 %v2671
      %v3188 = vunpack.c.l.b16 %v2672
      %v3189 = vunpack.c.l.b16 %v2673
      %v3190 = vunpack.c.l.b16 %v2674
      %v3191 = vunpack.c.l.b16 %v2675
      %v3192 = vunpack.c.l.b16 %v2676
      %v3193 = vunpack.c.l.b16 %v2677
      %v3194 = vunpack.c.l.b16 %v2678
      %v3195 = vunpack.c.l.b16 %v2679
      %v3196 = vunpack.c.l.b16 %v2680
      %v3197 = vunpack.c.l.b16 %v2681
      %v3198 = vunpack.c.l.b16 %v2682
      %v3199 = vunpack.c.l.b16 %v2683
      %v3200 = vunpack.c.l.b16 %v2684
      %v3201 = vunpack.c.l.b16 %v2685
      %v3202 = vunpack.c.l.b16 %v2686
      %v3203 = vunpack.c.l.b16 %v2687
      %v3204 = vunpack.c.l.b16 %v2688
      %v3205 = vunpack.c.l.b16 %v2689
      %v3206 = vunpack.c.l.b16 %v2690
      %v3207 = vunpack.c.l.b16 %v2691
      %v3208 = vunpack.c.l.b16 %v2692
      %v3209 = vunpack.c.l.b16 %v2693
      %v3210 = vunpack.c.l.b16 %v2694
      %v3211 = vunpack.c.l.b16 %v2695
      %v3212 = vunpack.c.l.b16 %v2696
      %v3213 = vunpack.c.l.b16 %v2697
      %v3214 = vunpack.c.l.b16 %v2698
      %v3215 = vunpack.c.l.b16 %v2699
      %v3216 = vunpack.c.l.b16 %v2700
      %v3217 = vunpack.c.l.b16 %v2701
      %v3218 = vunpack.c.l.b16 %v2702
      %v3219 = vunpack.c.l.b16 %v2703
      %v3220 = vunpack.c.l.b16 %v2704
      %v3221 = vunpack.c.l.b16 %v2705
      %v3222 = vunpack.c.l.b16 %v2706
      %v3223 = vunpack.c.l.b16 %v2707
      %v3224 = vunpack.c.l.b16 %v2708
      %v3225 = vunpack.c.l.b16 %v2709
      %v3226 = vunpack.c.l.b16 %v2710
      %v3227 = vunpack.c.l.b16 %v2711
      %v3228 = vunpack.c.l.b16 %v2712
      %v3229 = vunpack.c.l.b16 %v2713
      %v3230 = vunpack.c.l.b16 %v2714
      %v3231 = vunpack.c.l.b16 %v2715
      %v3232 = vunpack.c.l.b16 %v2716
      %v3233 = vunpack.c.l.b16 %v2717
      %v3234 = vunpack.c.l.b16 %v2718
      %v3235 = vunpack.c.l.b16 %v2719
      %v3236 = vunpack.c.l.b16 %v2720
      %v3237 = vunpack.c.l.b16 %v2721
      %v3238 = vunpack.c.l.b16 %v2722
      %v3239 = vunpack.c.l.b16 %v2723
      %v3240 = vunpack.c.l.b16 %v2724
      %v3241 = vunpack.c.l.b16 %v2725
      %v3242 = vunpack.c.l.b16 %v2726
      %v3243 = vunpack.c.l.b16 %v2727
      %v3244 = vunpack.c.l.b16 %v2728
      %v3245 = vunpack.c.l.b16 %v2729
      %v3246 = vunpack.c.l.b16 %v2730
      %v3247 = vunpack.c.l.b16 %v2731
      %v3248 = vunpack.c.l.b16 %v2732
      %v3249 = vunpack.c.l.b16 %v2733
      %v3250 = vunpack.c.l.b16 %v2734
      %v3251 = vunpack.c.l.b16 %v2735
      %v3252 = vunpack.c.l.b16 %v2736
      %v3253 = vunpack.c.l.b16 %v2737
      %v3254 = vunpack.c.l.b16 %v2738
      %v3255 = vpack.c.b16 %v3000, %v2999
      %v3256 = vpack.c.b16 %v3002, %v3001
      %v3257 = vpack.c.b16 %v3004, %v3003
      %v3258 = vpack.c.b16 %v3006, %v3005
      %v3259 = vpack.c.b16 %v3008, %v3007
      %v3260 = vpack.c.b16 %v3010, %v3009
      %v3261 = vpack.c.b16 %v3012, %v3011
      %v3262 = vpack.c.b16 %v3014, %v3013
      %v3263 = vpack.c.b16 %v3016, %v3015
      %v3264 = vpack.c.b16 %v3018, %v3017
      %v3265 = vpack.c.b16 %v3020, %v3019
      %v3266 = vpack.c.b16 %v3022, %v3021
      %v3267 = vpack.c.b16 %v3024, %v3023
      %v3268 = vpack.c.b16 %v3026, %v3025
      %v3269 = vpack.c.b16 %v3028, %v3027
      %v3270 = vpack.c.b16 %v3030, %v3029
      %v3271 = vpack.c.b16 %v3032, %v3031
      %v3272 = vpack.c.b16 %v3034, %v3033
      %v3273 = vpack.c.b16 %v3036, %v3035
      %v3274 = vpack.c.b16 %v3038, %v3037
      %v3275 = vpack.c.b16 %v3040, %v3039
      %v3276 = vpack.c.b16 %v3042, %v3041
      %v3277 = vpack.c.b16 %v3044, %v3043
      %v3278 = vpack.c.b16 %v3046, %v3045
      %v3279 = vpack.c.b16 %v3048, %v3047
      %v3280 = vpack.c.b16 %v3050, %v3049
      %v3281 = vpack.c.b16 %v3052, %v3051
      %v3282 = vpack.c.b16 %v3054, %v3053
      %v3283 = vpack.c.b16 %v3056, %v3055
      %v3284 = vpack.c.b16 %v3058, %v3057
      %v3285 = vpack.c.b16 %v3060, %v3059
      %v3286 = vpack.c.b16 %v3062, %v3061
      %v3287 = vpack.c.b16 %v3064, %v3063
      %v3288 = vpack.c.b16 %v3066, %v3065
      %v3289 = vpack.c.b16 %v3068, %v3067
      %v3290 = vpack.c.b16 %v3070, %v3069
      %v3291 = vpack.c.b16 %v3072, %v3071
      %v3292 = vpack.c.b16 %v3074, %v3073
      %v3293 = vpack.c.b16 %v3076, %v3075
      %v3294 = vpack.c.b16 %v3078, %v3077
      %v3295 = vpack.c.b16 %v3080, %v3079
      %v3296 = vpack.c.b16 %v3082, %v3081
      %v3297 = vpack.c.b16 %v3084, %v3083
      %v3298 = vpack.c.b16 %v3086, %v3085
      %v3299 = vpack.c.b16 %v3088, %v3087
      %v3300 = vpack.c.b16 %v3090, %v3089
      %v3301 = vpack.c.b16 %v3092, %v3091
      %v3302 = vpack.c.b16 %v3094, %v3093
      %v3303 = vpack.c.b16 %v3096, %v3095
      %v3304 = vpack.c.b16 %v3098, %v3097
      %v3305 = vpack.c.b16 %v3100, %v3099
      %v3306 = vpack.c.b16 %v3102, %v3101
      %v3307 = vpack.c.b16 %v3104, %v3103
      %v3308 = vpack.c.b16 %v3106, %v3105
      %v3309 = vpack.c.b16 %v3108, %v3107
      %v3310 = vpack.c.b16 %v3110, %v3109
      %v3311 = vpack.c.b16 %v3112, %v3111
      %v3312 = vpack.c.b16 %v3114, %v3113
      %v3313 = vpack.c.b16 %v3116, %v3115
      %v3314 = vpack.c.b16 %v3118, %v3117
      %v3315 = vpack.c.b16 %v3120, %v3119
      %v3316 = vpack.c.b16 %v3122, %v3121
      %v3317 = vpack.c.b16 %v3124, %v3123
      %v3318 = vpack.c.b16 %v3126, %v3125
      %v3319 = vpack.c.b16 %v3128, %v3127
      %v3320 = vpack.c.b16 %v3130, %v3129
      %v3321 = vpack.c.b16 %v3132, %v3131
      %v3322 = vpack.c.b16 %v3134, %v3133
      %v3323 = vpack.c.b16 %v3136, %v3135
      %v3324 = vpack.c.b16 %v3138, %v3137
      %v3325 = vpack.c.b16 %v3140, %v3139
      %v3326 = vpack.c.b16 %v3142, %v3141
      %v3327 = vpack.c.b16 %v3144, %v3143
      %v3328 = vpack.c.b16 %v3146, %v3145
      %v3329 = vpack.c.b16 %v3148, %v3147
      %v3330 = vpack.c.b16 %v3150, %v3149
      %v3331 = vpack.c.b16 %v3152, %v3151
      %v3332 = vpack.c.b16 %v3154, %v3153
      %v3333 = vpack.c.b16 %v3156, %v3155
      %v3334 = vpack.c.b16 %v3158, %v3157
      %v3335 = vpack.c.b16 %v3160, %v3159
      %v3336 = vpack.c.b16 %v3162, %v3161
      %v3337 = vpack.c.b16 %v3164, %v3163
      %v3338 = vpack.c.b16 %v3166, %v3165
      %v3339 = vpack.c.b16 %v3168, %v3167
      %v3340 = vpack.c.b16 %v3170, %v3169
      %v3341 = vpack.c.b16 %v3172, %v3171
      %v3342 = vpack.c.b16 %v3174, %v3173
      %v3343 = vpack.c.b16 %v3176, %v3175
      %v3344 = vpack.c.b16 %v3178, %v3177
      %v3345 = vpack.c.b16 %v3180, %v3179
      %v3346 = vpack.c.b16 %v3182, %v3181
      %v3347 = vpack.c.b16 %v3184, %v3183
      %v3348 = vpack.c.b16 %v3186, %v3185
      %v3349 = vpack.c.b16 %v3188, %v3187
      %v3350 = vpack.c.b16 %v3190, %v3189
      %v3351 = vpack.c.b16 %v3192, %v3191
      %v3352 = vpack.c.b16 %v3194, %v3193
      %v3353 = vpack.c.b16 %v3196, %v3195
      %v3354 = vpack.c.b16 %v3198, %v3197
      %v3355 = vpack.c.b16 %v3200, %v3199
      %v3356 = vpack.c.b16 %v3202, %v3201
      %v3357 = vpack.c.b16 %v3204, %v3203
      %v3358 = vpack.c.b16 %v3206, %v3205
      %v3359 = vpack.c.b16 %v3208, %v3207
      %v3360 = vpack.c.b16 %v3210, %v3209
      %v3361 = vpack.c.b16 %v3212, %v3211
      %v3362 = vpack.c.b16 %v3214, %v3213
      %v3363 = vpack.c.b16 %v3216, %v3215
      %v3364 = vpack.c.b16 %v3218, %v3217
      %v3365 = vpack.c.b16 %v3220, %v3219
      %v3366 = vpack.c.b16 %v3222, %v3221
      %v3367 = vpack.c.b16 %v3224, %v3223
      %v3368 = vpack.c.b16 %v3226, %v3225
      %v3369 = vpack.c.b16 %v3228, %v3227
      %v3370 = vpack.c.b16 %v3230, %v3229
      %v3371 = vpack.c.b16 %v3232, %v3231
      %v3372 = vpack.c.b16 %v3234, %v3233
      %v3373 = vpack.c.b16 %v3236, %v3235
      %v3374 = vpack.c.b16 %v3238, %v3237
      %v3375 = vpack.c.b16 %v3240, %v3239
      %v3376 = vpack.c.b16 %v3242, %v3241
      %v3377 = vpack.c.b16 %v3244, %v3243
      %v3378 = vpack.c.b16 %v3246, %v3245
      %v3379 = vpack.c.b16 %v3248, %v3247
      %v3380 = vpack.c.b16 %v3250, %v3249
      %v3381 = vpack.c.b16 %v3252, %v3251
      %v3382 = vpack.c.b16 %v3254, %v3253
      %3511 = vmatpush.bf16.msra.mxu0 %v3262
      %3512 = vmatpush.bf16.msra.mxu0 %v3261
      %3513 = vmatpush.bf16.msra.mxu0 %v3260
      %3514 = vmatpush.bf16.msra.mxu0 %v3259
      %3515 = vmatpush.bf16.msra.mxu0 %v3258
      %3516 = vmatpush.bf16.msra.mxu0 %v3257
      %3517 = vmatpush.bf16.msra.mxu0 %v3256
      %3518 = vmatpush.bf16.msra.mxu0 %v3255
      %3519 = vmatmul.bf16.gmra.mxu0 %v2467
      %v3520 = vpop.f32.mrf.mxu0
      %v3521 = vadd.f32 %v2741, %v3520
      %v3522 = vpop.f32.mrf.mxu0
      %3523 = vdwg.mxu0
      %3524 = vmatpush.bf16.msra.mxu0 %v3270
      %3525 = vmatpush.bf16.msra.mxu0 %v3269
      %3526 = vmatpush.bf16.msra.mxu0 %v3268
      %3527 = vmatpush.bf16.msra.mxu0 %v3267
      %3528 = vmatpush.bf16.msra.mxu0 %v3266
      %3529 = vmatpush.bf16.msra.mxu0 %v3265
      %3530 = vmatpush.bf16.msra.mxu0 %v3264
      %3531 = vmatpush.bf16.msra.mxu0 %v3263
      %3532 = vmatmul.bf16.gmra.mxu0 %v2468
      %v3533 = vpop.f32.mrf.mxu0
      %v3534 = vadd.f32 %v3521, %v3533
      %v3535 = vpop.f32.mrf.mxu0
      %3536 = vdwg.mxu0
      %3537 = vmatpush.bf16.msra.mxu0 %v3278
      %3538 = vmatpush.bf16.msra.mxu0 %v3277
      %3539 = vmatpush.bf16.msra.mxu0 %v3276
      %3540 = vmatpush.bf16.msra.mxu0 %v3275
      %3541 = vmatpush.bf16.msra.mxu0 %v3274
      %3542 = vmatpush.bf16.msra.mxu0 %v3273
      %3543 = vmatpush.bf16.msra.mxu0 %v3272
      %3544 = vmatpush.bf16.msra.mxu0 %v3271
      %3545 = vmatmul.bf16.gmra.mxu0 %v2469
      %v3546 = vpop.f32.mrf.mxu0
      %v3547 = vadd.f32 %v3534, %v3546
      %v3548 = vpop.f32.mrf.mxu0
      %3549 = vdwg.mxu0
      %3550 = vmatpush.bf16.msra.mxu0 %v3286
      %3551 = vmatpush.bf16.msra.mxu0 %v3285
      %3552 = vmatpush.bf16.msra.mxu0 %v3284
      %3553 = vmatpush.bf16.msra.mxu0 %v3283
      %3554 = vmatpush.bf16.msra.mxu0 %v3282
      %3555 = vmatpush.bf16.msra.mxu0 %v3281
      %3556 = vmatpush.bf16.msra.mxu0 %v3280
      %3557 = vmatpush.bf16.msra.mxu0 %v3279
      %3558 = vmatmul.bf16.gmra.mxu0 %v2470
      %v3559 = vpop.f32.mrf.mxu0
      %v3560 = vadd.f32 %v3547, %v3559
      %v3561 = vpop.f32.mrf.mxu0
      %3562 = vdwg.mxu0
      %3563 = vmatpush.bf16.msra.mxu0 %v3294
      %3564 = vmatpush.bf16.msra.mxu0 %v3293
      %3565 = vmatpush.bf16.msra.mxu0 %v3292
      %3566 = vmatpush.bf16.msra.mxu0 %v3291
      %3567 = vmatpush.bf16.msra.mxu0 %v3290
      %3568 = vmatpush.bf16.msra.mxu0 %v3289
      %3569 = vmatpush.bf16.msra.mxu0 %v3288
      %3570 = vmatpush.bf16.msra.mxu0 %v3287
      %3571 = vmatmul.bf16.gmra.mxu0 %v2471
      %v3572 = vpop.f32.mrf.mxu0
      %v3573 = vadd.f32 %v3560, %v3572
      %v3574 = vpop.f32.mrf.mxu0
      %3575 = vdwg.mxu0
      %3576 = vmatpush.bf16.msra.mxu0 %v3302
      %3577 = vmatpush.bf16.msra.mxu0 %v3301
      %3578 = vmatpush.bf16.msra.mxu0 %v3300
      %3579 = vmatpush.bf16.msra.mxu0 %v3299
      %3580 = vmatpush.bf16.msra.mxu0 %v3298
      %3581 = vmatpush.bf16.msra.mxu0 %v3297
      %3582 = vmatpush.bf16.msra.mxu0 %v3296
      %3583 = vmatpush.bf16.msra.mxu0 %v3295
      %3584 = vmatmul.bf16.gmra.mxu0 %v2472
      %v3585 = vpop.f32.mrf.mxu0
      %v3586 = vadd.f32 %v3573, %v3585
      %v3587 = vpop.f32.mrf.mxu0
      %3588 = vdwg.mxu0
      %3589 = vmatpush.bf16.msra.mxu0 %v3310
      %3590 = vmatpush.bf16.msra.mxu0 %v3309
      %3591 = vmatpush.bf16.msra.mxu0 %v3308
      %3592 = vmatpush.bf16.msra.mxu0 %v3307
      %3593 = vmatpush.bf16.msra.mxu0 %v3306
      %3594 = vmatpush.bf16.msra.mxu0 %v3305
      %3595 = vmatpush.bf16.msra.mxu0 %v3304
      %3596 = vmatpush.bf16.msra.mxu0 %v3303
      %3597 = vmatmul.bf16.gmra.mxu0 %v2473
      %v3598 = vpop.f32.mrf.mxu0
      %v3599 = vadd.f32 %v3586, %v3598
      %v3600 = vpop.f32.mrf.mxu0
      %3601 = vdwg.mxu0
      %3602 = vmatpush.bf16.msra.mxu0 %v3318
      %3603 = vmatpush.bf16.msra.mxu0 %v3317
      %3604 = vmatpush.bf16.msra.mxu0 %v3316
      %3605 = vmatpush.bf16.msra.mxu0 %v3315
      %3606 = vmatpush.bf16.msra.mxu0 %v3314
      %3607 = vmatpush.bf16.msra.mxu0 %v3313
      %3608 = vmatpush.bf16.msra.mxu0 %v3312
      %3609 = vmatpush.bf16.msra.mxu0 %v3311
      %3610 = vmatmul.bf16.gmra.mxu0 %v2474
      %v3611 = vpop.f32.mrf.mxu0
      %v3612 = vadd.f32 %v3599, %v3611
      %v3613 = vpop.f32.mrf.mxu0
      %3614 = vdwg.mxu0
      %3615 = vmatpush.bf16.msra.mxu0 %v3326
      %3616 = vmatpush.bf16.msra.mxu0 %v3325
      %3617 = vmatpush.bf16.msra.mxu0 %v3324
      %3618 = vmatpush.bf16.msra.mxu0 %v3323
      %3619 = vmatpush.bf16.msra.mxu0 %v3322
      %3620 = vmatpush.bf16.msra.mxu0 %v3321
      %3621 = vmatpush.bf16.msra.mxu0 %v3320
      %3622 = vmatpush.bf16.msra.mxu0 %v3319
      %3623 = vmatmul.bf16.gmra.mxu0 %v2475
      %v3624 = vpop.f32.mrf.mxu0
      %v3625 = vadd.f32 %v3612, %v3624
      %v3626 = vpop.f32.mrf.mxu0
      %3627 = vdwg.mxu0
      %3628 = vmatpush.bf16.msra.mxu0 %v3334
      %3629 = vmatpush.bf16.msra.mxu0 %v3333
      %3630 = vmatpush.bf16.msra.mxu0 %v3332
      %3631 = vmatpush.bf16.msra.mxu0 %v3331
      %3632 = vmatpush.bf16.msra.mxu0 %v3330
      %3633 = vmatpush.bf16.msra.mxu0 %v3329
      %3634 = vmatpush.bf16.msra.mxu0 %v3328
      %3635 = vmatpush.bf16.msra.mxu0 %v3327
      %3636 = vmatmul.bf16.gmra.mxu0 %v2476
      %v3637 = vpop.f32.mrf.mxu0
      %v3638 = vadd.f32 %v3625, %v3637
      %v3639 = vpop.f32.mrf.mxu0
      %3640 = vdwg.mxu0
      %3641 = vmatpush.bf16.msra.mxu0 %v3342
      %3642 = vmatpush.bf16.msra.mxu0 %v3341
      %3643 = vmatpush.bf16.msra.mxu0 %v3340
      %3644 = vmatpush.bf16.msra.mxu0 %v3339
      %3645 = vmatpush.bf16.msra.mxu0 %v3338
      %3646 = vmatpush.bf16.msra.mxu0 %v3337
      %3647 = vmatpush.bf16.msra.mxu0 %v3336
      %3648 = vmatpush.bf16.msra.mxu0 %v3335
      %3649 = vmatmul.bf16.gmra.mxu0 %v2477
      %v3650 = vpop.f32.mrf.mxu0
      %v3651 = vadd.f32 %v3638, %v3650
      %v3652 = vpop.f32.mrf.mxu0
      %3653 = vdwg.mxu0
      %3654 = vmatpush.bf16.msra.mxu0 %v3350
      %3655 = vmatpush.bf16.msra.mxu0 %v3349
      %3656 = vmatpush.bf16.msra.mxu0 %v3348
      %3657 = vmatpush.bf16.msra.mxu0 %v3347
      %3658 = vmatpush.bf16.msra.mxu0 %v3346
      %3659 = vmatpush.bf16.msra.mxu0 %v3345
      %3660 = vmatpush.bf16.msra.mxu0 %v3344
      %3661 = vmatpush.bf16.msra.mxu0 %v3343
      %3662 = vmatmul.bf16.gmra.mxu0 %v2478
      %v3663 = vpop.f32.mrf.mxu0
      %v3664 = vadd.f32 %v3651, %v3663
      %v3665 = vpop.f32.mrf.mxu0
      %3666 = vdwg.mxu0
      %3667 = vmatpush.bf16.msra.mxu0 %v3358
      %3668 = vmatpush.bf16.msra.mxu0 %v3357
      %3669 = vmatpush.bf16.msra.mxu0 %v3356
      %3670 = vmatpush.bf16.msra.mxu0 %v3355
      %3671 = vmatpush.bf16.msra.mxu0 %v3354
      %3672 = vmatpush.bf16.msra.mxu0 %v3353
      %3673 = vmatpush.bf16.msra.mxu0 %v3352
      %3674 = vmatpush.bf16.msra.mxu0 %v3351
      %3675 = vmatmul.bf16.gmra.mxu0 %v2479
      %v3676 = vpop.f32.mrf.mxu0
      %v3677 = vadd.f32 %v3664, %v3676
      %v3678 = vpop.f32.mrf.mxu0
      %3679 = vdwg.mxu0
      %3680 = vmatpush.bf16.msra.mxu0 %v3366
      %3681 = vmatpush.bf16.msra.mxu0 %v3365
      %3682 = vmatpush.bf16.msra.mxu0 %v3364
      %3683 = vmatpush.bf16.msra.mxu0 %v3363
      %3684 = vmatpush.bf16.msra.mxu0 %v3362
      %3685 = vmatpush.bf16.msra.mxu0 %v3361
      %3686 = vmatpush.bf16.msra.mxu0 %v3360
      %3687 = vmatpush.bf16.msra.mxu0 %v3359
      %3688 = vmatmul.bf16.gmra.mxu0 %v2480
      %v3689 = vpop.f32.mrf.mxu0
      %v3690 = vadd.f32 %v3677, %v3689
      %v3691 = vpop.f32.mrf.mxu0
      %3692 = vdwg.mxu0
      %3693 = vmatpush.bf16.msra.mxu0 %v3374
      %3694 = vmatpush.bf16.msra.mxu0 %v3373
      %3695 = vmatpush.bf16.msra.mxu0 %v3372
      %3696 = vmatpush.bf16.msra.mxu0 %v3371
      %3697 = vmatpush.bf16.msra.mxu0 %v3370
      %3698 = vmatpush.bf16.msra.mxu0 %v3369
      %3699 = vmatpush.bf16.msra.mxu0 %v3368
      %3700 = vmatpush.bf16.msra.mxu0 %v3367
      %3701 = vmatmul.bf16.gmra.mxu0 %v2481
      %v3702 = vpop.f32.mrf.mxu0
      %v3703 = vadd.f32 %v3690, %v3702
      %v3704 = vpop.f32.mrf.mxu0
      %3705 = vdwg.mxu0
      %3706 = vmatpush.bf16.msra.mxu0 %v3382
      %3707 = vmatpush.bf16.msra.mxu0 %v3381
      %3708 = vmatpush.bf16.msra.mxu0 %v3380
      %3709 = vmatpush.bf16.msra.mxu0 %v3379
      %3710 = vmatpush.bf16.msra.mxu0 %v3378
      %3711 = vmatpush.bf16.msra.mxu0 %v3377
      %3712 = vmatpush.bf16.msra.mxu0 %v3376
      %3713 = vmatpush.bf16.msra.mxu0 %v3375
      %3714 = vmatmul.bf16.gmra.mxu0 %v2482
      %v3715 = vpop.f32.mrf.mxu0
      %v3716 = vadd.f32 %v3703, %v3715
      %v3717 = vpop.f32.mrf.mxu0
      %3718 = vdwg.mxu0
      %v3719 = vadd.f32 %v2010, %v3716
      %v3720 = vld [vmem:[%s22] sm:$0x1]
      %v3721 = vld [vmem:[%s23] sm:$0x1]
      %v3722 = vsel %vm776, %v3719, 0.0
      %3723 = vadd.xlane.f32.xlu0 %v3722
      %v3724 = vpop.xlane.xlu0 %3723
      %v3725 = vmul.f32 %v3724, %v1341
      %v3726 = vsub.f32 %v3719, %v3725
      %v3727 = vmul.f32 %v3726, %v3726
      %v3728 = vsel %vm776, %v3727, 0.0
      %3729 = vadd.xlane.f32.xlu0 %v3728
      %v3730 = vpop.xlane.xlu0 %3729
      %v3731 = vmul.f32 %v3730, %v1341
      %v3732 = vadd.f32 %v3731, 1e-05
      %v3733 = vrsqrt.pop %v3732
      %v3734 = vmul.f32 %v3733, %v3732
      %v3735 = vmul.f32 %v3734, %v3733
      %v3736 = vmul.f32 0.5, %v3735
      %v3737 = vsub.f32 1.5, %v3736
      %v3738 = vmul.f32 %v3733, %v3737
      %vm3739 = vweird.f32 %v3732
      %vm3740 = vweird.f32 %v3733
      %vm3741 = vmor %vm3739, %vm3740
      %v3742 = vsel %vm3741, %v3733, %v3738
      %v3743 = vmul.f32 %v3726, %v3742
      %v3745 = vperm.slane %v3720, 0
      %v3747 = vmul.f32 %v3743, %v3745
      %v3749 = vperm.slane %v3721, 0
      %v3751 = vadd.f32 %v3747, %v3749
      %v3752 = vpack.c.bf16 %v3751, %v3751
      %vm3753 = vcmask 257024
      %3754 = vst.msk [vmem:[%s752] sm:$0xf] %vm3753, %v3752
      %p3755 = scmp.lt.s32.totalorder %s35, 1
      %s3756 = scalar_select %p3755, %s35, 1
      %s3757 = smul.addr %s3756, 4
      %s3758 = scalar_lea.vmem %s24, %s3757
      // Predicated region
      $region117: #{multimodal_decoder_forward.5} parent=115 // pred_check
        %p3759 = pneg %p567
      $region118: #{multimodal_decoder_forward.5} parent=115 // pred_check_branch
        %3761 = sbr.rel (%p3759) target = $region120
      $region119: #{multimodal_decoder_forward.5} parent=115 // pred_region
        _
      $region120: #{multimodal_decoder_forward.5} parent=115 // pred_fallthru
        _
    $region116: #{multimodal_decoder_forward.5} parent=5 // pred_fallthru
      _
    %p3762 = scmp.le.s32.totalorder 2, %s30
    // Predicated region
    $region121: #{multimodal_decoder_forward.5} parent=5 // pred_check
      %p3763 = pneg %p3762
    $region122: #{multimodal_decoder_forward.5} parent=5 // pred_check_branch
      %3765 = sbr.rel (%p3763) target = $region124
    $region123: #{multimodal_decoder_forward.5} parent=5 // pred_region
      %s3766 = ssub.s32 %s30, 2
      // Predicated region
      $region125: #{multimodal_decoder_forward.5} parent=123 // pred_check
        %p3767 = pneg %p573
      $region126: #{multimodal_decoder_forward.5} parent=123 // pred_check_branch
        %3769 = sbr.rel (%p3767) target = $region128
      $region127: #{multimodal_decoder_forward.5} parent=123 // pred_region
        %p3770 = scmp.lt.s32.totalorder %s36, 1
        %s3771 = scalar_select %p3770, %s36, 1
        %s3772 = smul.addr %s3771, 4
        %s3773 = scalar_lea.vmem %s24, %s3772
      $region128: #{multimodal_decoder_forward.5} parent=123 // pred_fallthru
        _
    $region124: #{multimodal_decoder_forward.5} parent=5 // pred_fallthru
      _
  $region6: #{multimodal_decoder_forward.5} parent=0 // loop_footer
    %s34 = sadd.s32 1, %s30
  $region7: #{multimodal_decoder_forward.5} parent=0 // loop_footer_branch
    %29 = sbr.rel target = $region3
  $region8: #{multimodal_decoder_forward.5} parent=0 // loop_exit
    _

</llo_original>
